<compile_context>
chip_gen: v6e
topology: v6e:2x2x1
jax: 0.10.0
libtpu: 0.0.40
codegen_flags: <defaults>
</compile_context>

<pallas_src>
import jax
import jax.numpy as jnp
from jax import lax
from jax.experimental import pallas as pl
from jax.experimental.pallas import tpu as pltpu


def lstm_dir_kernel(x_ref,          # (T, B, D)   f32   (shared by both dirs)
                    wih_ref,        # (D, 4H)     bf16  (this direction)
                    b_ref,          # (1, 4H)     f32   (fused b_ih + b_hh)
                    whh_ref,        # (H, 4H)     bf16
                    hc_ref,         # (B, 2H)     f32   out: [h | c]
                    gates_ref):     # (T, B, 4H)  f32   VMEM scratch
    T, B, D = x_ref.shape
    G = whh_ref.shape[1]
    H = G // 4
    d = pl.program_id(0)            # 0 = forward, 1 = backward (time-reversed)

    # ---- hoisted input projection: one (T*B, D) x (D, 4H) MXU matmul -------
    # Result goes straight to VMEM scratch; the loop only loads (B, 4H) slices.
    x_all = x_ref[...].reshape(T * B, D).astype(jnp.bfloat16)
    gates_ref[...] = (
        jnp.dot(x_all, wih_ref[...], preferred_element_type=jnp.float32)
        + b_ref[...]
    ).reshape(T, B, G)

    def gate_math(gates, c):
        # PyTorch gate order: [i, f, g, o]; elementwise math kept in f32.
        i_g = jax.nn.sigmoid(gates[:, 0 * H:1 * H])
        f_g = jax.nn.sigmoid(gates[:, 1 * H:2 * H])
        g_g = jnp.tanh(gates[:, 2 * H:3 * H])
        o_g = jax.nn.sigmoid(gates[:, 3 * H:4 * H])
        c_new = f_g * c + i_g * g_g
        h_new = o_g * jnp.tanh(c_new)
        return h_new, c_new

    def body(t, carry):
        h, c = carry
        # scalar time index: t for forward, T-1-t for backward
        t_eff = t + d * (T - 1 - 2 * t)
        # whh_ref indexed directly in the dot: RHS streamed from VMEM, not a
        # pre-loaded value held live across the unrolled loop.
        gh = jnp.dot(h.astype(jnp.bfloat16), whh_ref[...],
                     preferred_element_type=jnp.float32)
        gates = gates_ref[t_eff] + gh
        return gate_math(gates, c)

    zeros = jnp.zeros((B, H), jnp.float32)
    h, c = lax.fori_loop(0, T, body, (zeros, zeros), unroll=min(T, 8))

    hc_ref[:, 0:H] = h
    hc_ref[:, H:2 * H] = c


def latent_decoder_kernel(hc_ref,                 # (2, B, 2H) f32
                          wlat_ref, blat_ref,     # (2, 2H, L) bf16, (1, L) f32
                          wd1_ref, bd1_ref,       # (L, 256) bf16, (1, 256) f32
                          wd2_ref, bd2_ref,       # (256, D) bf16, (1, D) f32
                          xrec_ref, z_ref):       # (B, D) f32, (B, L) f32
    # z_cat = [h_f | h_b | c_f | c_b]; wlat rows were re-ordered in
    # prepare_params so wlat[d] multiplies [h_d | c_d]. Two full-depth K=2H
    # matmuls instead of four K=H dots.
    z = (jnp.dot(hc_ref[0].astype(jnp.bfloat16), wlat_ref[0],
                 preferred_element_type=jnp.float32)
         + jnp.dot(hc_ref[1].astype(jnp.bfloat16), wlat_ref[1],
                   preferred_element_type=jnp.float32)
         + blat_ref[...])

    h_dec = jnp.maximum(
        jnp.dot(z.astype(jnp.bfloat16), wd1_ref[...],
                preferred_element_type=jnp.float32) + bd1_ref[...], 0.0)
    xrec_ref[...] = (jnp.dot(h_dec.astype(jnp.bfloat16), wd2_ref[...],
                             preferred_element_type=jnp.float32) + bd2_ref[...])
    z_ref[...] = z


def prepare_params(p):
    """One-time weight prep: transpose to (in,out), stack per-direction,
    fuse biases, cast MXU operands to bf16."""
    H = p["w_hh_f"].shape[1]
    L = p["w_lat"].shape[0]
    G = 4 * H

    wih = jnp.stack([p["w_ih_f"].T, p["w_ih_b"].T]).astype(jnp.bfloat16)   # (2,D,4H)
    b = jnp.stack([(p["b_ih_f"] + p["b_hh_f"]).reshape(1, G),
                   (p["b_ih_b"] + p["b_hh_b"]).reshape(1, G)]
                  ).astype(jnp.float32)                                    # (2,1,4H)
    whh = jnp.stack([p["w_hh_f"].T, p["w_hh_b"].T]).astype(jnp.bfloat16)   # (2,H,4H)

    # w_lat^T rows are ordered [h_f | h_b | c_f | c_b]; regroup per direction
    # so direction d multiplies [h_d | c_d].
    wlt = p["w_lat"].T                                                     # (4H, L)
    wlat = jnp.stack([
        jnp.concatenate([wlt[0 * H:1 * H], wlt[2 * H:3 * H]], axis=0),     # fwd
        jnp.concatenate([wlt[1 * H:2 * H], wlt[3 * H:4 * H]], axis=0),     # bwd
    ]).astype(jnp.bfloat16)                                                # (2,2H,L)

    return {
        "wih": wih, "b": b, "whh": whh,
        "wlat": wlat,
        "blat": p["b_lat"].reshape(1, L).astype(jnp.float32),
        "wd1": p["w_d1"].T.astype(jnp.bfloat16),                           # (L, 256)
        "bd1": p["b_d1"].reshape(1, -1).astype(jnp.float32),
        "wd2": p["w_d2"].T.astype(jnp.bfloat16),                           # (256, D)
        "bd2": p["b_d2"].reshape(1, -1).astype(jnp.float32),
    }


@jax.jit
def lstm_autoencoder_forward(x, pp):
    """x: (B, T, D) f32, pp: prepare_params() output.
    Returns (x_rec (B, D), z (B, L)) like the nn.Module."""
    B, T, D = x.shape
    H = pp["whh"].shape[1]
    G = 4 * H
    L = pp["wlat"].shape[2]
    # Alignment assumptions of the lane slices / stores inside the kernels.
    assert D % 128 == 0 and H % 128 == 0 and L % 128 == 0 and B % 8 == 0

    # TODO(synk): fold the time-major view into the input BlockSpec index_map
    # once a grid over T/B is added; at these sizes the XLA transpose is noise.
    x_tbd = jnp.transpose(x, (1, 0, 2))                 # (T, B, D)

    # --- recurrence: one grid step per direction, parallel across TCs -------
    hc = pl.pallas_call(
        lstm_dir_kernel,
        out_shape=jax.ShapeDtypeStruct((2, B, 2 * H), jnp.float32),
        grid_spec=pltpu.PrefetchScalarGridSpec(
            num_scalar_prefetch=0,
            grid=(2,),
            in_specs=[
                pl.BlockSpec((T, B, D), lambda d: (0, 0, 0)),       # x (shared)
                pl.BlockSpec((None, D, G), lambda d: (d, 0, 0)),    # W_ih[d]
                pl.BlockSpec((None, 1, G), lambda d: (d, 0, 0)),    # bias[d]
                pl.BlockSpec((None, H, G), lambda d: (d, 0, 0)),    # W_hh[d]
            ],
            out_specs=pl.BlockSpec((None, B, 2 * H), lambda d: (d, 0, 0)),
            scratch_shapes=[pltpu.VMEM((T, B, G), jnp.float32)],    # gates_x
        ),
        compiler_params=pltpu.CompilerParams(
            dimension_semantics=("parallel",)),
    )(x_tbd, pp["wih"], pp["b"], pp["whh"])

    # --- epilogue: to_latent + decoder (tiny, no grid) -----------------------
    vmem = pl.BlockSpec(memory_space=pltpu.MemorySpace.VMEM)
    x_rec, z = pl.pallas_call(
        latent_decoder_kernel,
        out_shape=(jax.ShapeDtypeStruct((B, D), jnp.float32),
                   jax.ShapeDtypeStruct((B, L), jnp.float32)),
        in_specs=[vmem] * 7,
        out_specs=(vmem, vmem),
    )(hc, pp["wlat"], pp["blat"], pp["wd1"], pp["bd1"], pp["wd2"], pp["bd2"])
    return x_rec, z


def reference_forward(x, p):
    """Pure-JAX f32 mirror of the PyTorch forward, for correctness checking."""
    B, T, D = x.shape
    H = p["w_hh_f"].shape[1]

    def run_dir(xs, wih, whh, bih, bhh):
        h = jnp.zeros((B, H), jnp.float32)
        c = jnp.zeros((B, H), jnp.float32)
        for t in range(xs.shape[0]):
            g = xs[t] @ wih.T + bih + h @ whh.T + bhh
            i = jax.nn.sigmoid(g[:, :H])
            f = jax.nn.sigmoid(g[:, H:2 * H])
            gg = jnp.tanh(g[:, 2 * H:3 * H])
            o = jax.nn.sigmoid(g[:, 3 * H:])
            c = f * c + i * gg
            h = o * jnp.tanh(c)
        return h, c

    x_tbd = jnp.transpose(x, (1, 0, 2))
    h_f, c_f = run_dir(x_tbd, p["w_ih_f"], p["w_hh_f"], p["b_ih_f"], p["b_hh_f"])
    h_b, c_b = run_dir(x_tbd[::-1], p["w_ih_b"], p["w_hh_b"], p["b_ih_b"], p["b_hh_b"])
    z_cat = jnp.concatenate([h_f, h_b, c_f, c_b], axis=1)
    z = z_cat @ p["w_lat"].T + p["b_lat"]
    x_rec = jnp.maximum(z @ p["w_d1"].T + p["b_d1"], 0.0) @ p["w_d2"].T + p["b_d2"]
    return x_rec, z


def init_params(key, input_dim, hidden_dim, latent_dim):
    ks = jax.random.split(key, 14)

    def u(k, shape, bound):
        return jax.random.uniform(k, shape, jnp.float32, -bound, bound)

    kl = hidden_dim ** -0.5
    p = {
        "w_ih_f": u(ks[0], (4 * hidden_dim, input_dim), kl),
        "w_hh_f": u(ks[1], (4 * hidden_dim, hidden_dim), kl),
        "b_ih_f": u(ks[2], (4 * hidden_dim,), kl),
        "b_hh_f": u(ks[3], (4 * hidden_dim,), kl),
        "w_ih_b": u(ks[4], (4 * hidden_dim, input_dim), kl),
        "w_hh_b": u(ks[5], (4 * hidden_dim, hidden_dim), kl),
        "b_ih_b": u(ks[6], (4 * hidden_dim,), kl),
        "b_hh_b": u(ks[7], (4 * hidden_dim,), kl),
    }
    k_lat = (4 * hidden_dim) ** -0.5
    p["w_lat"] = u(ks[8], (latent_dim, 4 * hidden_dim), k_lat)
    p["b_lat"] = u(ks[9], (latent_dim,), k_lat)
    k_d1 = latent_dim ** -0.5
    p["w_d1"] = u(ks[10], (256, latent_dim), k_d1)
    p["b_d1"] = u(ks[11], (256,), k_d1)
    k_d2 = 256 ** -0.5
    p["w_d2"] = u(ks[12], (input_dim, 256), k_d2)
    p["b_d2"] = u(ks[13], (input_dim,), k_d2)
    return p


if __name__ == "__main__":
    # Module defaults (input_dim=384, hidden_dim=256, latent_dim=128), small B/T.
    B, T = 8, 8
    input_dim, hidden_dim, latent_dim = 384, 256, 128

    key = jax.random.PRNGKey(0)
    kx, kp = jax.random.split(key)
    x = jax.random.normal(kx, (B, T, input_dim), jnp.float32)
    params = init_params(kp, input_dim, hidden_dim, latent_dim)

    prepared = jax.block_until_ready(prepare_params(params))  # one-time prep

    x_rec, z = lstm_autoencoder_forward(x, prepared)
    jax.block_until_ready((x_rec, z))

    x_rec_ref, z_ref = reference_forward(x, params)
    assert x_rec.shape == (B, input_dim) and z.shape == (B, latent_dim)
    # bf16 MXU operands vs f32 reference: recurrence rounding drift grows with T;
    # tolerance sized for short sequences.
    assert bool(jnp.allclose(z, z_ref, atol=3e-2, rtol=3e-2))
    assert bool(jnp.allclose(x_rec, x_rec_ref, atol=3e-2, rtol=3e-2))

    print("KERNEL_OK")
</pallas_src>

<mosaic_0001>
module attributes {stable_mosaic.version = 11 : i64} {
  func.func @latent_decoder_kernel(%arg0: memref<2x8x512xf32, #tpu.memory_space<vmem>>, %arg1: memref<2x512x128xbf16, #tpu.memory_space<vmem>>, %arg2: memref<1x128xf32, #tpu.memory_space<vmem>>, %arg3: memref<128x256xbf16, #tpu.memory_space<vmem>>, %arg4: memref<1x256xf32, #tpu.memory_space<vmem>>, %arg5: memref<256x384xbf16, #tpu.memory_space<vmem>>, %arg6: memref<1x384xf32, #tpu.memory_space<vmem>>, %arg7: memref<8x384xf32, #tpu.memory_space<vmem>>, %arg8: memref<8x128xf32, #tpu.memory_space<vmem>>) attributes {dimension_semantics = [], scalar_prefetch = 0 : i64, scratch_operands = 0 : i64, tpu.core_type = #tpu.core_type<tc>} {
    %c0 = arith.constant 0 : index
    %c0_0 = arith.constant 0 : index
    %c0_1 = arith.constant 0 : index
    %0 = vector.load %arg0[%c0, %c0_0, %c0_1] : memref<2x8x512xf32, #tpu.memory_space<vmem>>, vector<1x8x512xf32>
    %1 = vector.shape_cast %0 : vector<1x8x512xf32> to vector<8x512xf32>
    %2 = arith.truncf %1 : vector<8x512xf32> to vector<8x512xbf16>
    %c0_2 = arith.constant 0 : index
    %c0_3 = arith.constant 0 : index
    %c0_4 = arith.constant 0 : index
    %3 = vector.load %arg1[%c0_2, %c0_3, %c0_4] : memref<2x512x128xbf16, #tpu.memory_space<vmem>>, vector<1x512x128xbf16>
    %4 = vector.shape_cast %3 : vector<1x512x128xbf16> to vector<512x128xbf16>
    %cst = arith.constant dense<0.000000e+00> : vector<8x128xf32>
    %5 = tpu.matmul %2, %4, %cst {dimension_numbers = #tpu.dot_dimension_numbers<[1], [0], [0], [1], [0, 0, 1, 1], [], []>} : vector<8x512xbf16>, vector<512x128xbf16>, vector<8x128xf32> -> vector<8x128xf32>
    %c1 = arith.constant 1 : index
    %c0_5 = arith.constant 0 : index
    %c0_6 = arith.constant 0 : index
    %6 = vector.load %arg0[%c1, %c0_5, %c0_6] : memref<2x8x512xf32, #tpu.memory_space<vmem>>, vector<1x8x512xf32>
    %7 = vector.shape_cast %6 : vector<1x8x512xf32> to vector<8x512xf32>
    %8 = arith.truncf %7 : vector<8x512xf32> to vector<8x512xbf16>
    %c1_7 = arith.constant 1 : index
    %c0_8 = arith.constant 0 : index
    %c0_9 = arith.constant 0 : index
    %9 = vector.load %arg1[%c1_7, %c0_8, %c0_9] : memref<2x512x128xbf16, #tpu.memory_space<vmem>>, vector<1x512x128xbf16>
    %10 = vector.shape_cast %9 : vector<1x512x128xbf16> to vector<512x128xbf16>
    %cst_10 = arith.constant dense<0.000000e+00> : vector<8x128xf32>
    %11 = tpu.matmul %8, %10, %cst_10 {dimension_numbers = #tpu.dot_dimension_numbers<[1], [0], [0], [1], [0, 0, 1, 1], [], []>} : vector<8x512xbf16>, vector<512x128xbf16>, vector<8x128xf32> -> vector<8x128xf32>
    %12 = arith.addf %5, %11 : vector<8x128xf32>
    %c0_11 = arith.constant 0 : index
    %c0_12 = arith.constant 0 : index
    %13 = vector.load %arg2[%c0_11, %c0_12] : memref<1x128xf32, #tpu.memory_space<vmem>>, vector<1x128xf32>
    %14 = vector.broadcast %13 : vector<1x128xf32> to vector<8x128xf32>
    %15 = arith.addf %12, %14 : vector<8x128xf32>
    %16 = arith.truncf %15 : vector<8x128xf32> to vector<8x128xbf16>
    %c0_13 = arith.constant 0 : index
    %c0_14 = arith.constant 0 : index
    %17 = vector.load %arg3[%c0_13, %c0_14] : memref<128x256xbf16, #tpu.memory_space<vmem>>, vector<128x256xbf16>
    %cst_15 = arith.constant dense<0.000000e+00> : vector<8x256xf32>
    %18 = tpu.matmul %16, %17, %cst_15 {dimension_numbers = #tpu.dot_dimension_numbers<[1], [0], [0], [1], [0, 0, 1, 1], [], []>} : vector<8x128xbf16>, vector<128x256xbf16>, vector<8x256xf32> -> vector<8x256xf32>
    %c0_16 = arith.constant 0 : index
    %c0_17 = arith.constant 0 : index
    %19 = vector.load %arg4[%c0_16, %c0_17] : memref<1x256xf32, #tpu.memory_space<vmem>>, vector<1x256xf32>
    %20 = vector.broadcast %19 : vector<1x256xf32> to vector<8x256xf32>
    %21 = arith.addf %18, %20 : vector<8x256xf32>
    %cst_18 = arith.constant 0.000000e+00 : f32
    %22 = vector.broadcast %cst_18 : f32 to vector<8x256xf32>
    %23 = arith.maximumf %21, %22 : vector<8x256xf32>
    %24 = arith.truncf %23 : vector<8x256xf32> to vector<8x256xbf16>
    %c0_19 = arith.constant 0 : index
    %c0_20 = arith.constant 0 : index
    %25 = vector.load %arg5[%c0_19, %c0_20] : memref<256x384xbf16, #tpu.memory_space<vmem>>, vector<256x384xbf16>
    %cst_21 = arith.constant dense<0.000000e+00> : vector<8x384xf32>
    %26 = tpu.matmul %24, %25, %cst_21 {dimension_numbers = #tpu.dot_dimension_numbers<[1], [0], [0], [1], [0, 0, 1, 1], [], []>} : vector<8x256xbf16>, vector<256x384xbf16>, vector<8x384xf32> -> vector<8x384xf32>
    %c0_22 = arith.constant 0 : index
    %c0_23 = arith.constant 0 : index
    %27 = vector.load %arg6[%c0_22, %c0_23] : memref<1x384xf32, #tpu.memory_space<vmem>>, vector<1x384xf32>
    %28 = vector.broadcast %27 : vector<1x384xf32> to vector<8x384xf32>
    %29 = arith.addf %26, %28 : vector<8x384xf32>
    %c0_24 = arith.constant 0 : index
    %c0_25 = arith.constant 0 : index
    %30 = vector.load %arg7[%c0_24, %c0_25] : memref<8x384xf32, #tpu.memory_space<vmem>>, vector<8x384xf32>
    tpu.vector_store %arg7[%c0_24, %c0_25], %29 {strides = array<i32>} : memref<8x384xf32, #tpu.memory_space<vmem>>, vector<8x384xf32>,
    %c0_26 = arith.constant 0 : index
    %c0_27 = arith.constant 0 : index
    %31 = vector.load %arg8[%c0_26, %c0_27] : memref<8x128xf32, #tpu.memory_space<vmem>>, vector<8x128xf32>
    tpu.vector_store %arg8[%c0_26, %c0_27], %15 {strides = array<i32>} : memref<8x128xf32, #tpu.memory_space<vmem>>, vector<8x128xf32>,
    return
  }
}

module attributes {stable_mosaic.version = 11 : i64} {
  func.func @lstm_dir_kernel(%arg0: i32, %arg1: memref<8x8x384xf32, #tpu.memory_space<vmem>>, %arg2: memref<1x384x1024xbf16, #tpu.memory_space<vmem>>, %arg3: memref<1x1x1024xf32, #tpu.memory_space<vmem>>, %arg4: memref<1x256x1024xbf16, #tpu.memory_space<vmem>>, %arg5: memref<1x8x512xf32, #tpu.memory_space<vmem>>, %arg6: memref<8x8x1024xf32, #tpu.memory_space<vmem>>) attributes {dimension_semantics = [#tpu.dimension_semantics<parallel>], iteration_bounds = array<i64: 2>, scalar_prefetch = 0 : i64, scratch_operands = 1 : i64, tpu.core_type = #tpu.core_type<tc>, window_params = [{pipeline_mode = #tpu.pipeline_mode<synchronous>, transform_indices = @transform_0, window_bounds = array<i64: 8, 8, 384>}, {transform_indices = @transform_1, window_bounds = array<i64: 1, 384, 1024>}, {transform_indices = @transform_2, window_bounds = array<i64: 1, 1, 1024>}, {transform_indices = @transform_3, window_bounds = array<i64: 1, 256, 1024>}, {transform_indices = @transform_4, window_bounds = array<i64: 1, 8, 512>}]} {
    %c0 = arith.constant 0 : index
    %c0_0 = arith.constant 0 : index
    %c0_1 = arith.constant 0 : index
    %0 = vector.load %arg1[%c0, %c0_0, %c0_1] : memref<8x8x384xf32, #tpu.memory_space<vmem>>, vector<8x8x384xf32>
    %1 = vector.shape_cast %0 : vector<8x8x384xf32> to vector<64x384xf32>
    %2 = arith.truncf %1 : vector<64x384xf32> to vector<64x384xbf16>
    %c0_2 = arith.constant 0 : index
    %c0_3 = arith.constant 0 : index
    %c0_4 = arith.constant 0 : index
    %3 = vector.load %arg2[%c0_2, %c0_3, %c0_4] : memref<1x384x1024xbf16, #tpu.memory_space<vmem>>, vector<1x384x1024xbf16>
    %4 = vector.shape_cast %3 : vector<1x384x1024xbf16> to vector<384x1024xbf16>
    %cst = arith.constant dense<0.000000e+00> : vector<64x1024xf32>
    %5 = tpu.matmul %2, %4, %cst {dimension_numbers = #tpu.dot_dimension_numbers<[1], [0], [0], [1], [0, 0, 1, 1], [], []>} : vector<64x384xbf16>, vector<384x1024xbf16>, vector<64x1024xf32> -> vector<64x1024xf32>
    %c0_5 = arith.constant 0 : index
    %c0_6 = arith.constant 0 : index
    %c0_7 = arith.constant 0 : index
    %6 = vector.load %arg3[%c0_5, %c0_6, %c0_7] : memref<1x1x1024xf32, #tpu.memory_space<vmem>>, vector<1x1x1024xf32>
    %7 = vector.shape_cast %6 : vector<1x1x1024xf32> to vector<1x1024xf32>
    %8 = vector.broadcast %7 : vector<1x1024xf32> to vector<64x1024xf32>
    %9 = arith.addf %5, %8 : vector<64x1024xf32>
    %10 = vector.shape_cast %9 : vector<64x1024xf32> to vector<8x8x1024xf32>
    %c0_8 = arith.constant 0 : index
    %c0_9 = arith.constant 0 : index
    %c0_10 = arith.constant 0 : index
    %11 = vector.load %arg6[%c0_8, %c0_9, %c0_10] : memref<8x8x1024xf32, #tpu.memory_space<vmem>>, vector<8x8x1024xf32>
    tpu.vector_store %arg6[%c0_8, %c0_9, %c0_10], %10 {strides = array<i32>} : memref<8x8x1024xf32, #tpu.memory_space<vmem>>, vector<8x8x1024xf32>,
    %cst_11 = arith.constant 0.000000e+00 : f32
    %12 = vector.broadcast %cst_11 : f32 to vector<8x256xf32>
    %c0_i32 = arith.constant 0 : i32
    %c2_i32 = arith.constant 2 : i32
    %13 = arith.muli %c2_i32, %c0_i32 : i32
    %c7_i32 = arith.constant 7 : i32
    %14 = arith.subi %c7_i32, %13 : i32
    %15 = arith.muli %arg0, %14 : i32
    %16 = arith.addi %c0_i32, %15 : i32
    %17 = arith.truncf %12 : vector<8x256xf32> to vector<8x256xbf16>
    %c0_12 = arith.constant 0 : index
    %c0_13 = arith.constant 0 : index
    %c0_14 = arith.constant 0 : index
    %18 = vector.load %arg4[%c0_12, %c0_13, %c0_14] : memref<1x256x1024xbf16, #tpu.memory_space<vmem>>, vector<1x256x1024xbf16>
    %19 = vector.shape_cast %18 : vector<1x256x1024xbf16> to vector<256x1024xbf16>
    %cst_15 = arith.constant dense<0.000000e+00> : vector<8x1024xf32>
    %20 = tpu.matmul %17, %19, %cst_15 {dimension_numbers = #tpu.dot_dimension_numbers<[1], [0], [0], [1], [0, 0, 1, 1], [], []>} : vector<8x256xbf16>, vector<256x1024xbf16>, vector<8x1024xf32> -> vector<8x1024xf32>
    %21 = arith.index_cast %16 : i32 to index
    %c0_16 = arith.constant 0 : index
    %c0_17 = arith.constant 0 : index
    %22 = vector.load %arg6[%21, %c0_16, %c0_17] : memref<8x8x1024xf32, #tpu.memory_space<vmem>>, vector<1x8x1024xf32>
    %23 = vector.shape_cast %22 : vector<1x8x1024xf32> to vector<8x1024xf32>
    %24 = arith.addf %23, %20 : vector<8x1024xf32>
    %25 = vector.extract_strided_slice %24 {offsets = [0, 0], sizes = [8, 256], strides = [1, 1]} : vector<8x1024xf32> to vector<8x256xf32>
    %26 = arith.negf %25 : vector<8x256xf32>
    %27 = math.exp %26 : vector<8x256xf32>
    %cst_18 = arith.constant 1.000000e+00 : f32
    %28 = vector.broadcast %cst_18 : f32 to vector<8x256xf32>
    %29 = arith.addf %28, %27 : vector<8x256xf32>
    %30 = arith.divf %28, %29 : vector<8x256xf32>
    %31 = vector.extract_strided_slice %24 {offsets = [0, 256], sizes = [8, 256], strides = [1, 1]} : vector<8x1024xf32> to vector<8x256xf32>
    %32 = arith.negf %31 : vector<8x256xf32>
    %33 = math.exp %32 : vector<8x256xf32>
    %cst_19 = arith.constant 1.000000e+00 : f32
    %34 = vector.broadcast %cst_19 : f32 to vector<8x256xf32>
    %35 = arith.addf %34, %33 : vector<8x256xf32>
    %36 = arith.divf %34, %35 : vector<8x256xf32>
    %37 = vector.extract_strided_slice %24 {offsets = [0, 512], sizes = [8, 256], strides = [1, 1]} : vector<8x1024xf32> to vector<8x256xf32>
    %38 = math.tanh %37 : vector<8x256xf32>
    %39 = vector.extract_strided_slice %24 {offsets = [0, 768], sizes = [8, 256], strides = [1, 1]} : vector<8x1024xf32> to vector<8x256xf32>
    %40 = arith.negf %39 : vector<8x256xf32>
    %41 = math.exp %40 : vector<8x256xf32>
    %cst_20 = arith.constant 1.000000e+00 : f32
    %42 = vector.broadcast %cst_20 : f32 to vector<8x256xf32>
    %43 = arith.addf %42, %41 : vector<8x256xf32>
    %44 = arith.divf %42, %43 : vector<8x256xf32>
    %45 = arith.mulf %36, %12 : vector<8x256xf32>
    %46 = arith.mulf %30, %38 : vector<8x256xf32>
    %47 = arith.addf %45, %46 : vector<8x256xf32>
    %48 = math.tanh %47 : vector<8x256xf32>
    %49 = arith.mulf %44, %48 : vector<8x256xf32>
    %c1_i32 = arith.constant 1 : i32
    %c2_i32_21 = arith.constant 2 : i32
    %50 = arith.muli %c2_i32_21, %c1_i32 : i32
    %c7_i32_22 = arith.constant 7 : i32
    %51 = arith.subi %c7_i32_22, %50 : i32
    %52 = arith.muli %arg0, %51 : i32
    %53 = arith.addi %c1_i32, %52 : i32
    %54 = arith.truncf %49 : vector<8x256xf32> to vector<8x256xbf16>
    %c0_23 = arith.constant 0 : index
    %c0_24 = arith.constant 0 : index
    %c0_25 = arith.constant 0 : index
    %55 = vector.load %arg4[%c0_23, %c0_24, %c0_25] : memref<1x256x1024xbf16, #tpu.memory_space<vmem>>, vector<1x256x1024xbf16>
    %56 = vector.shape_cast %55 : vector<1x256x1024xbf16> to vector<256x1024xbf16>
    %cst_26 = arith.constant dense<0.000000e+00> : vector<8x1024xf32>
    %57 = tpu.matmul %54, %56, %cst_26 {dimension_numbers = #tpu.dot_dimension_numbers<[1], [0], [0], [1], [0, 0, 1, 1], [], []>} : vector<8x256xbf16>, vector<256x1024xbf16>, vector<8x1024xf32> -> vector<8x1024xf32>
    %58 = arith.index_cast %53 : i32 to index
    %c0_27 = arith.constant 0 : index
    %c0_28 = arith.constant 0 : index
    %59 = vector.load %arg6[%58, %c0_27, %c0_28] : memref<8x8x1024xf32, #tpu.memory_space<vmem>>, vector<1x8x1024xf32>
    %60 = vector.shape_cast %59 : vector<1x8x1024xf32> to vector<8x1024xf32>
    %61 = arith.addf %60, %57 : vector<8x1024xf32>
    %62 = vector.extract_strided_slice %61 {offsets = [0, 0], sizes = [8, 256], strides = [1, 1]} : vector<8x1024xf32> to vector<8x256xf32>
    %63 = arith.negf %62 : vector<8x256xf32>
    %64 = math.exp %63 : vector<8x256xf32>
    %cst_29 = arith.constant 1.000000e+00 : f32
    %65 = vector.broadcast %cst_29 : f32 to vector<8x256xf32>
    %66 = arith.addf %65, %64 : vector<8x256xf32>
    %67 = arith.divf %65, %66 : vector<8x256xf32>
    %68 = vector.extract_strided_slice %61 {offsets = [0, 256], sizes = [8, 256], strides = [1, 1]} : vector<8x1024xf32> to vector<8x256xf32>
    %69 = arith.negf %68 : vector<8x256xf32>
    %70 = math.exp %69 : vector<8x256xf32>
    %cst_30 = arith.constant 1.000000e+00 : f32
    %71 = vector.broadcast %cst_30 : f32 to vector<8x256xf32>
    %72 = arith.addf %71, %70 : vector<8x256xf32>
    %73 = arith.divf %71, %72 : vector<8x256xf32>
    %74 = vector.extract_strided_slice %61 {offsets = [0, 512], sizes = [8, 256], strides = [1, 1]} : vector<8x1024xf32> to vector<8x256xf32>
    %75 = math.tanh %74 : vector<8x256xf32>
    %76 = vector.extract_strided_slice %61 {offsets = [0, 768], sizes = [8, 256], strides = [1, 1]} : vector<8x1024xf32> to vector<8x256xf32>
    %77 = arith.negf %76 : vector<8x256xf32>
    %78 = math.exp %77 : vector<8x256xf32>
    %cst_31 = arith.constant 1.000000e+00 : f32
    %79 = vector.broadcast %cst_31 : f32 to vector<8x256xf32>
    %80 = arith.addf %79, %78 : vector<8x256xf32>
    %81 = arith.divf %79, %80 : vector<8x256xf32>
    %82 = arith.mulf %73, %47 : vector<8x256xf32>
    %83 = arith.mulf %67, %75 : vector<8x256xf32>
    %84 = arith.addf %82, %83 : vector<8x256xf32>
    %85 = math.tanh %84 : vector<8x256xf32>
    %86 = arith.mulf %81, %85 : vector<8x256xf32>
    %c2_i32_32 = arith.constant 2 : i32
    %c2_i32_33 = arith.constant 2 : i32
    %87 = arith.muli %c2_i32_33, %c2_i32_32 : i32
    %c7_i32_34 = arith.constant 7 : i32
    %88 = arith.subi %c7_i32_34, %87 : i32
    %89 = arith.muli %arg0, %88 : i32
    %90 = arith.addi %c2_i32_32, %89 : i32
    %91 = arith.truncf %86 : vector<8x256xf32> to vector<8x256xbf16>
    %c0_35 = arith.constant 0 : index
    %c0_36 = arith.constant 0 : index
    %c0_37 = arith.constant 0 : index
    %92 = vector.load %arg4[%c0_35, %c0_36, %c0_37] : memref<1x256x1024xbf16, #tpu.memory_space<vmem>>, vector<1x256x1024xbf16>
    %93 = vector.shape_cast %92 : vector<1x256x1024xbf16> to vector<256x1024xbf16>
    %cst_38 = arith.constant dense<0.000000e+00> : vector<8x1024xf32>
    %94 = tpu.matmul %91, %93, %cst_38 {dimension_numbers = #tpu.dot_dimension_numbers<[1], [0], [0], [1], [0, 0, 1, 1], [], []>} : vector<8x256xbf16>, vector<256x1024xbf16>, vector<8x1024xf32> -> vector<8x1024xf32>
    %95 = arith.index_cast %90 : i32 to index
    %c0_39 = arith.constant 0 : index
    %c0_40 = arith.constant 0 : index
    %96 = vector.load %arg6[%95, %c0_39, %c0_40] : memref<8x8x1024xf32, #tpu.memory_space<vmem>>, vector<1x8x1024xf32>
    %97 = vector.shape_cast %96 : vector<1x8x1024xf32> to vector<8x1024xf32>
    %98 = arith.addf %97, %94 : vector<8x1024xf32>
    %99 = vector.extract_strided_slice %98 {offsets = [0, 0], sizes = [8, 256], strides = [1, 1]} : vector<8x1024xf32> to vector<8x256xf32>
    %100 = arith.negf %99 : vector<8x256xf32>
    %101 = math.exp %100 : vector<8x256xf32>
    %cst_41 = arith.constant 1.000000e+00 : f32
    %102 = vector.broadcast %cst_41 : f32 to vector<8x256xf32>
    %103 = arith.addf %102, %101 : vector<8x256xf32>
    %104 = arith.divf %102, %103 : vector<8x256xf32>
    %105 = vector.extract_strided_slice %98 {offsets = [0, 256], sizes = [8, 256], strides = [1, 1]} : vector<8x1024xf32> to vector<8x256xf32>
    %106 = arith.negf %105 : vector<8x256xf32>
    %107 = math.exp %106 : vector<8x256xf32>
    %cst_42 = arith.constant 1.000000e+00 : f32
    %108 = vector.broadcast %cst_42 : f32 to vector<8x256xf32>
    %109 = arith.addf %108, %107 : vector<8x256xf32>
    %110 = arith.divf %108, %109 : vector<8x256xf32>
    %111 = vector.extract_strided_slice %98 {offsets = [0, 512], sizes = [8, 256], strides = [1, 1]} : vector<8x1024xf32> to vector<8x256xf32>
    %112 = math.tanh %111 : vector<8x256xf32>
    %113 = vector.extract_strided_slice %98 {offsets = [0, 768], sizes = [8, 256], strides = [1, 1]} : vector<8x1024xf32> to vector<8x256xf32>
    %114 = arith.negf %113 : vector<8x256xf32>
    %115 = math.exp %114 : vector<8x256xf32>
    %cst_43 = arith.constant 1.000000e+00 : f32
    %116 = vector.broadcast %cst_43 : f32 to vector<8x256xf32>
    %117 = arith.addf %116, %115 : vector<8x256xf32>
    %118 = arith.divf %116, %117 : vector<8x256xf32>
    %119 = arith.mulf %110, %84 : vector<8x256xf32>
    %120 = arith.mulf %104, %112 : vector<8x256xf32>
    %121 = arith.addf %119, %120 : vector<8x256xf32>
    %122 = math.tanh %121 : vector<8x256xf32>
    %123 = arith.mulf %118, %122 : vector<8x256xf32>
    %c3_i32 = arith.constant 3 : i32
    %c2_i32_44 = arith.constant 2 : i32
    %124 = arith.muli %c2_i32_44, %c3_i32 : i32
    %c7_i32_45 = arith.constant 7 : i32
    %125 = arith.subi %c7_i32_45, %124 : i32
    %126 = arith.muli %arg0, %125 : i32
    %127 = arith.addi %c3_i32, %126 : i32
    %128 = arith.truncf %123 : vector<8x256xf32> to vector<8x256xbf16>
    %c0_46 = arith.constant 0 : index
    %c0_47 = arith.constant 0 : index
    %c0_48 = arith.constant 0 : index
    %129 = vector.load %arg4[%c0_46, %c0_47, %c0_48] : memref<1x256x1024xbf16, #tpu.memory_space<vmem>>, vector<1x256x1024xbf16>
    %130 = vector.shape_cast %129 : vector<1x256x1024xbf16> to vector<256x1024xbf16>
    %cst_49 = arith.constant dense<0.000000e+00> : vector<8x1024xf32>
    %131 = tpu.matmul %128, %130, %cst_49 {dimension_numbers = #tpu.dot_dimension_numbers<[1], [0], [0], [1], [0, 0, 1, 1], [], []>} : vector<8x256xbf16>, vector<256x1024xbf16>, vector<8x1024xf32> -> vector<8x1024xf32>
    %132 = arith.index_cast %127 : i32 to index
    %c0_50 = arith.constant 0 : index
    %c0_51 = arith.constant 0 : index
    %133 = vector.load %arg6[%132, %c0_50, %c0_51] : memref<8x8x1024xf32, #tpu.memory_space<vmem>>, vector<1x8x1024xf32>
    %134 = vector.shape_cast %133 : vector<1x8x1024xf32> to vector<8x1024xf32>
    %135 = arith.addf %134, %131 : vector<8x1024xf32>
    %136 = vector.extract_strided_slice %135 {offsets = [0, 0], sizes = [8, 256], strides = [1, 1]} : vector<8x1024xf32> to vector<8x256xf32>
    %137 = arith.negf %136 : vector<8x256xf32>
    %138 = math.exp %137 : vector<8x256xf32>
    %cst_52 = arith.constant 1.000000e+00 : f32
    %139 = vector.broadcast %cst_52 : f32 to vector<8x256xf32>
    %140 = arith.addf %139, %138 : vector<8x256xf32>
    %141 = arith.divf %139, %140 : vector<8x256xf32>
    %142 = vector.extract_strided_slice %135 {offsets = [0, 256], sizes = [8, 256], strides = [1, 1]} : vector<8x1024xf32> to vector<8x256xf32>
    %143 = arith.negf %142 : vector<8x256xf32>
    %144 = math.exp %143 : vector<8x256xf32>
    %cst_53 = arith.constant 1.000000e+00 : f32
    %145 = vector.broadcast %cst_53 : f32 to vector<8x256xf32>
    %146 = arith.addf %145, %144 : vector<8x256xf32>
    %147 = arith.divf %145, %146 : vector<8x256xf32>
    %148 = vector.extract_strided_slice %135 {offsets = [0, 512], sizes = [8, 256], strides = [1, 1]} : vector<8x1024xf32> to vector<8x256xf32>
    %149 = math.tanh %148 : vector<8x256xf32>
    %150 = vector.extract_strided_slice %135 {offsets = [0, 768], sizes = [8, 256], strides = [1, 1]} : vector<8x1024xf32> to vector<8x256xf32>
    %151 = arith.negf %150 : vector<8x256xf32>
    %152 = math.exp %151 : vector<8x256xf32>
    %cst_54 = arith.constant 1.000000e+00 : f32
    %153 = vector.broadcast %cst_54 : f32 to vector<8x256xf32>
    %154 = arith.addf %153, %152 : vector<8x256xf32>
    %155 = arith.divf %153, %154 : vector<8x256xf32>
    %156 = arith.mulf %147, %121 : vector<8x256xf32>
    %157 = arith.mulf %141, %149 : vector<8x256xf32>
    %158 = arith.addf %156, %157 : vector<8x256xf32>
    %159 = math.tanh %158 : vector<8x256xf32>
    %160 = arith.mulf %155, %159 : vector<8x256xf32>
    %c4_i32 = arith.constant 4 : i32
    %c2_i32_55 = arith.constant 2 : i32
    %161 = arith.muli %c2_i32_55, %c4_i32 : i32
    %c7_i32_56 = arith.constant 7 : i32
    %162 = arith.subi %c7_i32_56, %161 : i32
    %163 = arith.muli %arg0, %162 : i32
    %164 = arith.addi %c4_i32, %163 : i32
    %165 = arith.truncf %160 : vector<8x256xf32> to vector<8x256xbf16>
    %c0_57 = arith.constant 0 : index
    %c0_58 = arith.constant 0 : index
    %c0_59 = arith.constant 0 : index
    %166 = vector.load %arg4[%c0_57, %c0_58, %c0_59] : memref<1x256x1024xbf16, #tpu.memory_space<vmem>>, vector<1x256x1024xbf16>
    %167 = vector.shape_cast %166 : vector<1x256x1024xbf16> to vector<256x1024xbf16>
    %cst_60 = arith.constant dense<0.000000e+00> : vector<8x1024xf32>
    %168 = tpu.matmul %165, %167, %cst_60 {dimension_numbers = #tpu.dot_dimension_numbers<[1], [0], [0], [1], [0, 0, 1, 1], [], []>} : vector<8x256xbf16>, vector<256x1024xbf16>, vector<8x1024xf32> -> vector<8x1024xf32>
    %169 = arith.index_cast %164 : i32 to index
    %c0_61 = arith.constant 0 : index
    %c0_62 = arith.constant 0 : index
    %170 = vector.load %arg6[%169, %c0_61, %c0_62] : memref<8x8x1024xf32, #tpu.memory_space<vmem>>, vector<1x8x1024xf32>
    %171 = vector.shape_cast %170 : vector<1x8x1024xf32> to vector<8x1024xf32>
    %172 = arith.addf %171, %168 : vector<8x1024xf32>
    %173 = vector.extract_strided_slice %172 {offsets = [0, 0], sizes = [8, 256], strides = [1, 1]} : vector<8x1024xf32> to vector<8x256xf32>
    %174 = arith.negf %173 : vector<8x256xf32>
    %175 = math.exp %174 : vector<8x256xf32>
    %cst_63 = arith.constant 1.000000e+00 : f32
    %176 = vector.broadcast %cst_63 : f32 to vector<8x256xf32>
    %177 = arith.addf %176, %175 : vector<8x256xf32>
    %178 = arith.divf %176, %177 : vector<8x256xf32>
    %179 = vector.extract_strided_slice %172 {offsets = [0, 256], sizes = [8, 256], strides = [1, 1]} : vector<8x1024xf32> to vector<8x256xf32>
    %180 = arith.negf %179 : vector<8x256xf32>
    %181 = math.exp %180 : vector<8x256xf32>
    %cst_64 = arith.constant 1.000000e+00 : f32
    %182 = vector.broadcast %cst_64 : f32 to vector<8x256xf32>
    %183 = arith.addf %182, %181 : vector<8x256xf32>
    %184 = arith.divf %182, %183 : vector<8x256xf32>
    %185 = vector.extract_strided_slice %172 {offsets = [0, 512], sizes = [8, 256], strides = [1, 1]} : vector<8x1024xf32> to vector<8x256xf32>
    %186 = math.tanh %185 : vector<8x256xf32>
    %187 = vector.extract_strided_slice %172 {offsets = [0, 768], sizes = [8, 256], strides = [1, 1]} : vector<8x1024xf32> to vector<8x256xf32>
    %188 = arith.negf %187 : vector<8x256xf32>
    %189 = math.exp %188 : vector<8x256xf32>
    %cst_65 = arith.constant 1.000000e+00 : f32
    %190 = vector.broadcast %cst_65 : f32 to vector<8x256xf32>
    %191 = arith.addf %190, %189 : vector<8x256xf32>
    %192 = arith.divf %190, %191 : vector<8x256xf32>
    %193 = arith.mulf %184, %158 : vector<8x256xf32>
    %194 = arith.mulf %178, %186 : vector<8x256xf32>
    %195 = arith.addf %193, %194 : vector<8x256xf32>
    %196 = math.tanh %195 : vector<8x256xf32>
    %197 = arith.mulf %192, %196 : vector<8x256xf32>
    %c5_i32 = arith.constant 5 : i32
    %c2_i32_66 = arith.constant 2 : i32
    %198 = arith.muli %c2_i32_66, %c5_i32 : i32
    %c7_i32_67 = arith.constant 7 : i32
    %199 = arith.subi %c7_i32_67, %198 : i32
    %200 = arith.muli %arg0, %199 : i32
    %201 = arith.addi %c5_i32, %200 : i32
    %202 = arith.truncf %197 : vector<8x256xf32> to vector<8x256xbf16>
    %c0_68 = arith.constant 0 : index
    %c0_69 = arith.constant 0 : index
    %c0_70 = arith.constant 0 : index
    %203 = vector.load %arg4[%c0_68, %c0_69, %c0_70] : memref<1x256x1024xbf16, #tpu.memory_space<vmem>>, vector<1x256x1024xbf16>
    %204 = vector.shape_cast %203 : vector<1x256x1024xbf16> to vector<256x1024xbf16>
    %cst_71 = arith.constant dense<0.000000e+00> : vector<8x1024xf32>
    %205 = tpu.matmul %202, %204, %cst_71 {dimension_numbers = #tpu.dot_dimension_numbers<[1], [0], [0], [1], [0, 0, 1, 1], [], []>} : vector<8x256xbf16>, vector<256x1024xbf16>, vector<8x1024xf32> -> vector<8x1024xf32>
    %206 = arith.index_cast %201 : i32 to index
    %c0_72 = arith.constant 0 : index
    %c0_73 = arith.constant 0 : index
    %207 = vector.load %arg6[%206, %c0_72, %c0_73] : memref<8x8x1024xf32, #tpu.memory_space<vmem>>, vector<1x8x1024xf32>
    %208 = vector.shape_cast %207 : vector<1x8x1024xf32> to vector<8x1024xf32>
    %209 = arith.addf %208, %205 : vector<8x1024xf32>
    %210 = vector.extract_strided_slice %209 {offsets = [0, 0], sizes = [8, 256], strides = [1, 1]} : vector<8x1024xf32> to vector<8x256xf32>
    %211 = arith.negf %210 : vector<8x256xf32>
    %212 = math.exp %211 : vector<8x256xf32>
    %cst_74 = arith.constant 1.000000e+00 : f32
    %213 = vector.broadcast %cst_74 : f32 to vector<8x256xf32>
    %214 = arith.addf %213, %212 : vector<8x256xf32>
    %215 = arith.divf %213, %214 : vector<8x256xf32>
    %216 = vector.extract_strided_slice %209 {offsets = [0, 256], sizes = [8, 256], strides = [1, 1]} : vector<8x1024xf32> to vector<8x256xf32>
    %217 = arith.negf %216 : vector<8x256xf32>
    %218 = math.exp %217 : vector<8x256xf32>
    %cst_75 = arith.constant 1.000000e+00 : f32
    %219 = vector.broadcast %cst_75 : f32 to vector<8x256xf32>
    %220 = arith.addf %219, %218 : vector<8x256xf32>
    %221 = arith.divf %219, %220 : vector<8x256xf32>
    %222 = vector.extract_strided_slice %209 {offsets = [0, 512], sizes = [8, 256], strides = [1, 1]} : vector<8x1024xf32> to vector<8x256xf32>
    %223 = math.tanh %222 : vector<8x256xf32>
    %224 = vector.extract_strided_slice %209 {offsets = [0, 768], sizes = [8, 256], strides = [1, 1]} : vector<8x1024xf32> to vector<8x256xf32>
    %225 = arith.negf %224 : vector<8x256xf32>
    %226 = math.exp %225 : vector<8x256xf32>
    %cst_76 = arith.constant 1.000000e+00 : f32
    %227 = vector.broadcast %cst_76 : f32 to vector<8x256xf32>
    %228 = arith.addf %227, %226 : vector<8x256xf32>
    %229 = arith.divf %227, %228 : vector<8x256xf32>
    %230 = arith.mulf %221, %195 : vector<8x256xf32>
    %231 = arith.mulf %215, %223 : vector<8x256xf32>
    %232 = arith.addf %230, %231 : vector<8x256xf32>
    %233 = math.tanh %232 : vector<8x256xf32>
    %234 = arith.mulf %229, %233 : vector<8x256xf32>
    %c6_i32 = arith.constant 6 : i32
    %c2_i32_77 = arith.constant 2 : i32
    %235 = arith.muli %c2_i32_77, %c6_i32 : i32
    %c7_i32_78 = arith.constant 7 : i32
    %236 = arith.subi %c7_i32_78, %235 : i32
    %237 = arith.muli %arg0, %236 : i32
    %238 = arith.addi %c6_i32, %237 : i32
    %239 = arith.truncf %234 : vector<8x256xf32> to vector<8x256xbf16>
    %c0_79 = arith.constant 0 : index
    %c0_80 = arith.constant 0 : index
    %c0_81 = arith.constant 0 : index
    %240 = vector.load %arg4[%c0_79, %c0_80, %c0_81] : memref<1x256x1024xbf16, #tpu.memory_space<vmem>>, vector<1x256x1024xbf16>
    %241 = vector.shape_cast %240 : vector<1x256x1024xbf16> to vector<256x1024xbf16>
    %cst_82 = arith.constant dense<0.000000e+00> : vector<8x1024xf32>
    %242 = tpu.matmul %239, %241, %cst_82 {dimension_numbers = #tpu.dot_dimension_numbers<[1], [0], [0], [1], [0, 0, 1, 1], [], []>} : vector<8x256xbf16>, vector<256x1024xbf16>, vector<8x1024xf32> -> vector<8x1024xf32>
    %243 = arith.index_cast %238 : i32 to index
    %c0_83 = arith.constant 0 : index
    %c0_84 = arith.constant 0 : index
    %244 = vector.load %arg6[%243, %c0_83, %c0_84] : memref<8x8x1024xf32, #tpu.memory_space<vmem>>, vector<1x8x1024xf32>
    %245 = vector.shape_cast %244 : vector<1x8x1024xf32> to vector<8x1024xf32>
    %246 = arith.addf %245, %242 : vector<8x1024xf32>
    %247 = vector.extract_strided_slice %246 {offsets = [0, 0], sizes = [8, 256], strides = [1, 1]} : vector<8x1024xf32> to vector<8x256xf32>
    %248 = arith.negf %247 : vector<8x256xf32>
    %249 = math.exp %248 : vector<8x256xf32>
    %cst_85 = arith.constant 1.000000e+00 : f32
    %250 = vector.broadcast %cst_85 : f32 to vector<8x256xf32>
    %251 = arith.addf %250, %249 : vector<8x256xf32>
    %252 = arith.divf %250, %251 : vector<8x256xf32>
    %253 = vector.extract_strided_slice %246 {offsets = [0, 256], sizes = [8, 256], strides = [1, 1]} : vector<8x1024xf32> to vector<8x256xf32>
    %254 = arith.negf %253 : vector<8x256xf32>
    %255 = math.exp %254 : vector<8x256xf32>
    %cst_86 = arith.constant 1.000000e+00 : f32
    %256 = vector.broadcast %cst_86 : f32 to vector<8x256xf32>
    %257 = arith.addf %256, %255 : vector<8x256xf32>
    %258 = arith.divf %256, %257 : vector<8x256xf32>
    %259 = vector.extract_strided_slice %246 {offsets = [0, 512], sizes = [8, 256], strides = [1, 1]} : vector<8x1024xf32> to vector<8x256xf32>
    %260 = math.tanh %259 : vector<8x256xf32>
    %261 = vector.extract_strided_slice %246 {offsets = [0, 768], sizes = [8, 256], strides = [1, 1]} : vector<8x1024xf32> to vector<8x256xf32>
    %262 = arith.negf %261 : vector<8x256xf32>
    %263 = math.exp %262 : vector<8x256xf32>
    %cst_87 = arith.constant 1.000000e+00 : f32
    %264 = vector.broadcast %cst_87 : f32 to vector<8x256xf32>
    %265 = arith.addf %264, %263 : vector<8x256xf32>
    %266 = arith.divf %264, %265 : vector<8x256xf32>
    %267 = arith.mulf %258, %232 : vector<8x256xf32>
    %268 = arith.mulf %252, %260 : vector<8x256xf32>
    %269 = arith.addf %267, %268 : vector<8x256xf32>
    %270 = math.tanh %269 : vector<8x256xf32>
    %271 = arith.mulf %266, %270 : vector<8x256xf32>
    %c7_i32_88 = arith.constant 7 : i32
    %c2_i32_89 = arith.constant 2 : i32
    %272 = arith.muli %c2_i32_89, %c7_i32_88 : i32
    %c7_i32_90 = arith.constant 7 : i32
    %273 = arith.subi %c7_i32_90, %272 : i32
    %274 = arith.muli %arg0, %273 : i32
    %275 = arith.addi %c7_i32_88, %274 : i32
    %276 = arith.truncf %271 : vector<8x256xf32> to vector<8x256xbf16>
    %c0_91 = arith.constant 0 : index
    %c0_92 = arith.constant 0 : index
    %c0_93 = arith.constant 0 : index
    %277 = vector.load %arg4[%c0_91, %c0_92, %c0_93] : memref<1x256x1024xbf16, #tpu.memory_space<vmem>>, vector<1x256x1024xbf16>
    %278 = vector.shape_cast %277 : vector<1x256x1024xbf16> to vector<256x1024xbf16>
    %cst_94 = arith.constant dense<0.000000e+00> : vector<8x1024xf32>
    %279 = tpu.matmul %276, %278, %cst_94 {dimension_numbers = #tpu.dot_dimension_numbers<[1], [0], [0], [1], [0, 0, 1, 1], [], []>} : vector<8x256xbf16>, vector<256x1024xbf16>, vector<8x1024xf32> -> vector<8x1024xf32>
    %280 = arith.index_cast %275 : i32 to index
    %c0_95 = arith.constant 0 : index
    %c0_96 = arith.constant 0 : index
    %281 = vector.load %arg6[%280, %c0_95, %c0_96] : memref<8x8x1024xf32, #tpu.memory_space<vmem>>, vector<1x8x1024xf32>
    %282 = vector.shape_cast %281 : vector<1x8x1024xf32> to vector<8x1024xf32>
    %283 = arith.addf %282, %279 : vector<8x1024xf32>
    %284 = vector.extract_strided_slice %283 {offsets = [0, 0], sizes = [8, 256], strides = [1, 1]} : vector<8x1024xf32> to vector<8x256xf32>
    %285 = arith.negf %284 : vector<8x256xf32>
    %286 = math.exp %285 : vector<8x256xf32>
    %cst_97 = arith.constant 1.000000e+00 : f32
    %287 = vector.broadcast %cst_97 : f32 to vector<8x256xf32>
    %288 = arith.addf %287, %286 : vector<8x256xf32>
    %289 = arith.divf %287, %288 : vector<8x256xf32>
    %290 = vector.extract_strided_slice %283 {offsets = [0, 256], sizes = [8, 256], strides = [1, 1]} : vector<8x1024xf32> to vector<8x256xf32>
    %291 = arith.negf %290 : vector<8x256xf32>
    %292 = math.exp %291 : vector<8x256xf32>
    %cst_98 = arith.constant 1.000000e+00 : f32
    %293 = vector.broadcast %cst_98 : f32 to vector<8x256xf32>
    %294 = arith.addf %293, %292 : vector<8x256xf32>
    %295 = arith.divf %293, %294 : vector<8x256xf32>
    %296 = vector.extract_strided_slice %283 {offsets = [0, 512], sizes = [8, 256], strides = [1, 1]} : vector<8x1024xf32> to vector<8x256xf32>
    %297 = math.tanh %296 : vector<8x256xf32>
    %298 = vector.extract_strided_slice %283 {offsets = [0, 768], sizes = [8, 256], strides = [1, 1]} : vector<8x1024xf32> to vector<8x256xf32>
    %299 = arith.negf %298 : vector<8x256xf32>
    %300 = math.exp %299 : vector<8x256xf32>
    %cst_99 = arith.constant 1.000000e+00 : f32
    %301 = vector.broadcast %cst_99 : f32 to vector<8x256xf32>
    %302 = arith.addf %301, %300 : vector<8x256xf32>
    %303 = arith.divf %301, %302 : vector<8x256xf32>
    %304 = arith.mulf %295, %269 : vector<8x256xf32>
    %305 = arith.mulf %289, %297 : vector<8x256xf32>
    %306 = arith.addf %304, %305 : vector<8x256xf32>
    %307 = math.tanh %306 : vector<8x256xf32>
    %308 = arith.mulf %303, %307 : vector<8x256xf32>
    %c8_i32 = arith.constant 8 : i32
    %c0_100 = arith.constant 0 : index
    %c0_101 = arith.constant 0 : index
    %c0_102 = arith.constant 0 : index
    %309 = vector.load %arg5[%c0_100, %c0_101, %c0_102] : memref<1x8x512xf32, #tpu.memory_space<vmem>>, vector<1x8x256xf32>
    %310 = vector.shape_cast %309 : vector<1x8x256xf32> to vector<8x256xf32>
    %311 = vector.shape_cast %308 : vector<8x256xf32> to vector<1x8x256xf32>
    tpu.vector_store %arg5[%c0_100, %c0_101, %c0_102], %311 {strides = array<i32>} : memref<1x8x512xf32, #tpu.memory_space<vmem>>, vector<1x8x256xf32>,
    %c0_103 = arith.constant 0 : index
    %c0_104 = arith.constant 0 : index
    %c256 = arith.constant 256 : index
    %312 = vector.load %arg5[%c0_103, %c0_104, %c256] : memref<1x8x512xf32, #tpu.memory_space<vmem>>, vector<1x8x256xf32>
    %313 = vector.shape_cast %312 : vector<1x8x256xf32> to vector<8x256xf32>
    %314 = vector.shape_cast %306 : vector<8x256xf32> to vector<1x8x256xf32>
    tpu.vector_store %arg5[%c0_103, %c0_104, %c256], %314 {strides = array<i32>} : memref<1x8x512xf32, #tpu.memory_space<vmem>>, vector<1x8x256xf32>,
    return
  }
  func.func @transform_0(%arg0: i32) -> (i32, i32, i32) {
    %c0_i32 = arith.constant 0 : i32
    %c0_i32_0 = arith.constant 0 : i32
    %c0_i32_1 = arith.constant 0 : i32
    %c0_i32_2 = arith.constant 0 : i32
    return %c0_i32, %c0_i32_0, %c0_i32_1 : i32, i32, i32
  }
  func.func @transform_1(%arg0: i32) -> (i32, i32, i32) {
    %c0_i32 = arith.constant 0 : i32
    %c0_i32_0 = arith.constant 0 : i32
    %c0_i32_1 = arith.constant 0 : i32
    return %arg0, %c0_i32, %c0_i32_0 : i32, i32, i32
  }
  func.func @transform_2(%arg0: i32) -> (i32, i32, i32) {
    %c0_i32 = arith.constant 0 : i32
    %c0_i32_0 = arith.constant 0 : i32
    %c0_i32_1 = arith.constant 0 : i32
    return %arg0, %c0_i32, %c0_i32_0 : i32, i32, i32
  }
  func.func @transform_3(%arg0: i32) -> (i32, i32, i32) {
    %c0_i32 = arith.constant 0 : i32
    %c0_i32_0 = arith.constant 0 : i32
    %c0_i32_1 = arith.constant 0 : i32
    return %arg0, %c0_i32, %c0_i32_0 : i32, i32, i32
  }
  func.func @transform_4(%arg0: i32) -> (i32, i32, i32) {
    %c0_i32 = arith.constant 0 : i32
    %c0_i32_0 = arith.constant 0 : i32
    %c0_i32_1 = arith.constant 0 : i32
    return %arg0, %c0_i32, %c0_i32_0 : i32, i32, i32
  }
}

</mosaic_0001>

<llo_original>
// kernel: lstm_autoencoder_forward.3
$region0: #{lstm_autoencoder_forward.3}
  #allocation0 [shape = 'u32[]', space=smem, size = 0x4, offset = 0x4, fixed_abs, tag = 'smem constant byte address 0x4 - core index']
  #allocation1 [shape = 'u32[144,128]{1,0:T(1,128)}', space=vmem, size = 0x12000, scoped, tag = 'internal scratch']
  %s0 = inlined_call_operand.vmem [shape: f32[2,8,512], index: 0, kind: input, shape index: {}]
  %s1 = inlined_call_operand.vmem [shape: bf16[2,512,128], index: 1, kind: input, shape index: {}]
  %s2 = inlined_call_operand.vmem [shape: f32[1,128], index: 2, kind: input, shape index: {}]
  %s3 = inlined_call_operand.vmem [shape: bf16[128,256], index: 3, kind: input, shape index: {}]
  %s4 = inlined_call_operand.vmem [shape: f32[1,256], index: 4, kind: input, shape index: {}]
  %s5 = inlined_call_operand.vmem [shape: bf16[256,384], index: 5, kind: input, shape index: {}]
  %s6 = inlined_call_operand.vmem [shape: f32[1,384], index: 6, kind: input, shape index: {}]
  %s7 = inlined_call_operand.hbm [shape: f32[8,384], index: 7, kind: output, shape index: {0}]
  %s8 = inlined_call_operand.hbm [shape: f32[8,128], index: 8, kind: output, shape index: {1}]
  %9 = xla_tuple %s7, %s8
  %s10 = sld [smem:[#allocation0]]
  $region46: #{lstm_autoencoder_forward.3} parent=0
    _
  %s12 = ssub.s32 1, %s10
  %s13 = scalar_select 0, %s12, %s10
  $region1: #{lstm_autoencoder_forward.3} parent=0
    #allocation2 [shape = 'u8[12288]{0}', space=vmem, size = 0x3000, scoped, tag = 'output window, operand 0, single buffered']
    #allocation3 [shape = 's32[1]{0}', space=sflag, size = 0x4, scoped, tag = 'scoped memory for lstm_autoencoder_forward.3']
    #allocation4 [shape = 'u8[4096]{0}', space=vmem, size = 0x1000, scoped, tag = 'output window, operand 1, single buffered']
    #allocation5 [shape = 's32[1]{0}', space=sflag, size = 0x4, scoped, tag = 'scoped memory for lstm_autoencoder_forward.3']
    %14 = vsyncpa [#allocation3], 0
    %15 = vsyncpa [#allocation5], 0
    // Predicated region
    $region2: #{lstm_autoencoder_forward.3} parent=1 // pred_check
      _
    $region3: #{lstm_autoencoder_forward.3} parent=1 // pred_check_branch
      %17 = sbr.rel (0) target = $region5
    $region4: #{lstm_autoencoder_forward.3} parent=1 // pred_region
      _
    $region5: #{lstm_autoencoder_forward.3} parent=1 // pred_fallthru
      _
    // Predicated region
    $region6: #{lstm_autoencoder_forward.3} parent=1 // pred_check
      _
    $region7: #{lstm_autoencoder_forward.3} parent=1 // pred_check_branch
      %19 = sbr.rel (0) target = $region9
    $region8: #{lstm_autoencoder_forward.3} parent=1 // pred_region
      _
    $region9: #{lstm_autoencoder_forward.3} parent=1 // pred_fallthru
      _
    // Predicated region
    $region10: #{lstm_autoencoder_forward.3} parent=1 // pred_check
      _
    $region11: #{lstm_autoencoder_forward.3} parent=1 // pred_check_branch
      %21 = sbr.rel (0) target = $region13
    $region12: #{lstm_autoencoder_forward.3} parent=1 // pred_region
      _
    $region13: #{lstm_autoencoder_forward.3} parent=1 // pred_fallthru
      _
    // Predicated region
    $region14: #{lstm_autoencoder_forward.3} parent=1 // pred_check
      _
    $region15: #{lstm_autoencoder_forward.3} parent=1 // pred_check_branch
      %23 = sbr.rel (0) target = $region17
    $region16: #{lstm_autoencoder_forward.3} parent=1 // pred_region
      _
    $region17: #{lstm_autoencoder_forward.3} parent=1 // pred_fallthru
      _
    // Predicated region
    $region18: #{lstm_autoencoder_forward.3} parent=1 // pred_check
      _
    $region19: #{lstm_autoencoder_forward.3} parent=1 // pred_check_branch
      %25 = sbr.rel (0) target = $region21
    $region20: #{lstm_autoencoder_forward.3} parent=1 // pred_region
      _
    $region21: #{lstm_autoencoder_forward.3} parent=1 // pred_fallthru
      _
    // Predicated region
    $region22: #{lstm_autoencoder_forward.3} parent=1 // pred_check
      _
    $region23: #{lstm_autoencoder_forward.3} parent=1 // pred_check_branch
      %27 = sbr.rel (0) target = $region25
    $region24: #{lstm_autoencoder_forward.3} parent=1 // pred_region
      _
    $region25: #{lstm_autoencoder_forward.3} parent=1 // pred_fallthru
      _
    // Predicated region
    $region26: #{lstm_autoencoder_forward.3} parent=1 // pred_check
      _
    $region27: #{lstm_autoencoder_forward.3} parent=1 // pred_check_branch
      %29 = sbr.rel (0) target = $region29
    $region28: #{lstm_autoencoder_forward.3} parent=1 // pred_region
      _
    $region29: #{lstm_autoencoder_forward.3} parent=1 // pred_fallthru
      _
    %v31 = vld [vmem:[%s0] sm:$0xff]
    %v32 = vld [vmem:[%s0 + $0x8] sm:$0xff]
    %v33 = vld [vmem:[%s0 + $0x10] sm:$0xff]
    %v34 = vld [vmem:[%s0 + $0x18] sm:$0xff]
    %v35 = vpack.c.bf16 %v31, %v31
    %v36 = vpack.c.bf16 %v32, %v32
    %v37 = vpack.c.bf16 %v33, %v33
    %v38 = vpack.c.bf16 %v34, %v34
    %v39 = vld [vmem:[%s1] sm:$0xf]
    %v40 = vld [vmem:[%s1 + $0x4] sm:$0xf]
    %v41 = vld [vmem:[%s1 + $0x8] sm:$0xf]
    %v42 = vld [vmem:[%s1 + $0xc] sm:$0xf]
    %v43 = vld [vmem:[%s1 + $0x10] sm:$0xf]
    %v44 = vld [vmem:[%s1 + $0x14] sm:$0xf]
    %v45 = vld [vmem:[%s1 + $0x18] sm:$0xf]
    %v46 = vld [vmem:[%s1 + $0x1c] sm:$0xf]
    %v47 = vld [vmem:[%s1 + $0x20] sm:$0xf]
    %v48 = vld [vmem:[%s1 + $0x24] sm:$0xf]
    %v49 = vld [vmem:[%s1 + $0x28] sm:$0xf]
    %v50 = vld [vmem:[%s1 + $0x2c] sm:$0xf]
    %v51 = vld [vmem:[%s1 + $0x30] sm:$0xf]
    %v52 = vld [vmem:[%s1 + $0x34] sm:$0xf]
    %v53 = vld [vmem:[%s1 + $0x38] sm:$0xf]
    %v54 = vld [vmem:[%s1 + $0x3c] sm:$0xf]
    %v55 = vld [vmem:[%s1 + $0x40] sm:$0xf]
    %v56 = vld [vmem:[%s1 + $0x44] sm:$0xf]
    %v57 = vld [vmem:[%s1 + $0x48] sm:$0xf]
    %v58 = vld [vmem:[%s1 + $0x4c] sm:$0xf]
    %v59 = vld [vmem:[%s1 + $0x50] sm:$0xf]
    %v60 = vld [vmem:[%s1 + $0x54] sm:$0xf]
    %v61 = vld [vmem:[%s1 + $0x58] sm:$0xf]
    %v62 = vld [vmem:[%s1 + $0x5c] sm:$0xf]
    %v63 = vld [vmem:[%s1 + $0x60] sm:$0xf]
    %v64 = vld [vmem:[%s1 + $0x64] sm:$0xf]
    %v65 = vld [vmem:[%s1 + $0x68] sm:$0xf]
    %v66 = vld [vmem:[%s1 + $0x6c] sm:$0xf]
    %v67 = vld [vmem:[%s1 + $0x70] sm:$0xf]
    %v68 = vld [vmem:[%s1 + $0x74] sm:$0xf]
    %v69 = vld [vmem:[%s1 + $0x78] sm:$0xf]
    %v70 = vld [vmem:[%s1 + $0x7c] sm:$0xf]
    %v71 = vld [vmem:[%s1 + $0x80] sm:$0xf]
    %v72 = vld [vmem:[%s1 + $0x84] sm:$0xf]
    %v73 = vld [vmem:[%s1 + $0x88] sm:$0xf]
    %v74 = vld [vmem:[%s1 + $0x8c] sm:$0xf]
    %v75 = vld [vmem:[%s1 + $0x90] sm:$0xf]
    %v76 = vld [vmem:[%s1 + $0x94] sm:$0xf]
    %v77 = vld [vmem:[%s1 + $0x98] sm:$0xf]
    %v78 = vld [vmem:[%s1 + $0x9c] sm:$0xf]
    %v79 = vld [vmem:[%s1 + $0xa0] sm:$0xf]
    %v80 = vld [vmem:[%s1 + $0xa4] sm:$0xf]
    %v81 = vld [vmem:[%s1 + $0xa8] sm:$0xf]
    %v82 = vld [vmem:[%s1 + $0xac] sm:$0xf]
    %v83 = vld [vmem:[%s1 + $0xb0] sm:$0xf]
    %v84 = vld [vmem:[%s1 + $0xb4] sm:$0xf]
    %v85 = vld [vmem:[%s1 + $0xb8] sm:$0xf]
    %v86 = vld [vmem:[%s1 + $0xbc] sm:$0xf]
    %v87 = vld [vmem:[%s1 + $0xc0] sm:$0xf]
    %v88 = vld [vmem:[%s1 + $0xc4] sm:$0xf]
    %v89 = vld [vmem:[%s1 + $0xc8] sm:$0xf]
    %v90 = vld [vmem:[%s1 + $0xcc] sm:$0xf]
    %v91 = vld [vmem:[%s1 + $0xd0] sm:$0xf]
    %v92 = vld [vmem:[%s1 + $0xd4] sm:$0xf]
    %v93 = vld [vmem:[%s1 + $0xd8] sm:$0xf]
    %v94 = vld [vmem:[%s1 + $0xdc] sm:$0xf]
    %v95 = vld [vmem:[%s1 + $0xe0] sm:$0xf]
    %v96 = vld [vmem:[%s1 + $0xe4] sm:$0xf]
    %v97 = vld [vmem:[%s1 + $0xe8] sm:$0xf]
    %v98 = vld [vmem:[%s1 + $0xec] sm:$0xf]
    %v99 = vld [vmem:[%s1 + $0xf0] sm:$0xf]
    %v100 = vld [vmem:[%s1 + $0xf4] sm:$0xf]
    %v101 = vld [vmem:[%s1 + $0xf8] sm:$0xf]
    %v102 = vld [vmem:[%s1 + $0xfc] sm:$0xf]
    %s103 = scalar_lea.vmem %s0, 32
    %v104 = vld [vmem:[%s103] sm:$0xff]
    %v105 = vld [vmem:[%s103 + $0x8] sm:$0xff]
    %v106 = vld [vmem:[%s103 + $0x10] sm:$0xff]
    %v107 = vld [vmem:[%s103 + $0x18] sm:$0xff]
    %v108 = vpack.c.bf16 %v104, %v104
    %v109 = vpack.c.bf16 %v105, %v105
    %v110 = vpack.c.bf16 %v106, %v106
    %v111 = vpack.c.bf16 %v107, %v107
    %s112 = scalar_lea.vmem %s1, 256
    %v113 = vld [vmem:[%s112] sm:$0xf]
    %v114 = vld [vmem:[%s112 + $0x4] sm:$0xf]
    %v115 = vld [vmem:[%s112 + $0x8] sm:$0xf]
    %v116 = vld [vmem:[%s112 + $0xc] sm:$0xf]
    %v117 = vld [vmem:[%s112 + $0x10] sm:$0xf]
    %v118 = vld [vmem:[%s112 + $0x14] sm:$0xf]
    %v119 = vld [vmem:[%s112 + $0x18] sm:$0xf]
    %v120 = vld [vmem:[%s112 + $0x1c] sm:$0xf]
    %v121 = vld [vmem:[%s112 + $0x20] sm:$0xf]
    %v122 = vld [vmem:[%s112 + $0x24] sm:$0xf]
    %v123 = vld [vmem:[%s112 + $0x28] sm:$0xf]
    %v124 = vld [vmem:[%s112 + $0x2c] sm:$0xf]
    %v125 = vld [vmem:[%s112 + $0x30] sm:$0xf]
    %v126 = vld [vmem:[%s112 + $0x34] sm:$0xf]
    %v127 = vld [vmem:[%s112 + $0x38] sm:$0xf]
    %v128 = vld [vmem:[%s112 + $0x3c] sm:$0xf]
    %v129 = vld [vmem:[%s112 + $0x40] sm:$0xf]
    %v130 = vld [vmem:[%s112 + $0x44] sm:$0xf]
    %v131 = vld [vmem:[%s112 + $0x48] sm:$0xf]
    %v132 = vld [vmem:[%s112 + $0x4c] sm:$0xf]
    %v133 = vld [vmem:[%s112 + $0x50] sm:$0xf]
    %v134 = vld [vmem:[%s112 + $0x54] sm:$0xf]
    %v135 = vld [vmem:[%s112 + $0x58] sm:$0xf]
    %v136 = vld [vmem:[%s112 + $0x5c] sm:$0xf]
    %v137 = vld [vmem:[%s112 + $0x60] sm:$0xf]
    %v138 = vld [vmem:[%s112 + $0x64] sm:$0xf]
    %v139 = vld [vmem:[%s112 + $0x68] sm:$0xf]
    %v140 = vld [vmem:[%s112 + $0x6c] sm:$0xf]
    %v141 = vld [vmem:[%s112 + $0x70] sm:$0xf]
    %v142 = vld [vmem:[%s112 + $0x74] sm:$0xf]
    %v143 = vld [vmem:[%s112 + $0x78] sm:$0xf]
    %v144 = vld [vmem:[%s112 + $0x7c] sm:$0xf]
    %v145 = vld [vmem:[%s112 + $0x80] sm:$0xf]
    %v146 = vld [vmem:[%s112 + $0x84] sm:$0xf]
    %v147 = vld [vmem:[%s112 + $0x88] sm:$0xf]
    %v148 = vld [vmem:[%s112 + $0x8c] sm:$0xf]
    %v149 = vld [vmem:[%s112 + $0x90] sm:$0xf]
    %v150 = vld [vmem:[%s112 + $0x94] sm:$0xf]
    %v151 = vld [vmem:[%s112 + $0x98] sm:$0xf]
    %v152 = vld [vmem:[%s112 + $0x9c] sm:$0xf]
    %v153 = vld [vmem:[%s112 + $0xa0] sm:$0xf]
    %v154 = vld [vmem:[%s112 + $0xa4] sm:$0xf]
    %v155 = vld [vmem:[%s112 + $0xa8] sm:$0xf]
    %v156 = vld [vmem:[%s112 + $0xac] sm:$0xf]
    %v157 = vld [vmem:[%s112 + $0xb0] sm:$0xf]
    %v158 = vld [vmem:[%s112 + $0xb4] sm:$0xf]
    %v159 = vld [vmem:[%s112 + $0xb8] sm:$0xf]
    %v160 = vld [vmem:[%s112 + $0xbc] sm:$0xf]
    %v161 = vld [vmem:[%s112 + $0xc0] sm:$0xf]
    %v162 = vld [vmem:[%s112 + $0xc4] sm:$0xf]
    %v163 = vld [vmem:[%s112 + $0xc8] sm:$0xf]
    %v164 = vld [vmem:[%s112 + $0xcc] sm:$0xf]
    %v165 = vld [vmem:[%s112 + $0xd0] sm:$0xf]
    %v166 = vld [vmem:[%s112 + $0xd4] sm:$0xf]
    %v167 = vld [vmem:[%s112 + $0xd8] sm:$0xf]
    %v168 = vld [vmem:[%s112 + $0xdc] sm:$0xf]
    %v169 = vld [vmem:[%s112 + $0xe0] sm:$0xf]
    %v170 = vld [vmem:[%s112 + $0xe4] sm:$0xf]
    %v171 = vld [vmem:[%s112 + $0xe8] sm:$0xf]
    %v172 = vld [vmem:[%s112 + $0xec] sm:$0xf]
    %v173 = vld [vmem:[%s112 + $0xf0] sm:$0xf]
    %v174 = vld [vmem:[%s112 + $0xf4] sm:$0xf]
    %v175 = vld [vmem:[%s112 + $0xf8] sm:$0xf]
    %v176 = vld [vmem:[%s112 + $0xfc] sm:$0xf]
    %v241 = vunpack.c.l.b16 %v113
    %v242 = vunpack.c.l.b16 %v114
    %v243 = vunpack.c.l.b16 %v115
    %v244 = vunpack.c.l.b16 %v116
    %v245 = vunpack.c.l.b16 %v117
    %v246 = vunpack.c.l.b16 %v118
    %v247 = vunpack.c.l.b16 %v119
    %v248 = vunpack.c.l.b16 %v120
    %v249 = vunpack.c.l.b16 %v121
    %v250 = vunpack.c.l.b16 %v122
    %v251 = vunpack.c.l.b16 %v123
    %v252 = vunpack.c.l.b16 %v124
    %v253 = vunpack.c.l.b16 %v125
    %v254 = vunpack.c.l.b16 %v126
    %v255 = vunpack.c.l.b16 %v127
    %v256 = vunpack.c.l.b16 %v128
    %v257 = vunpack.c.l.b16 %v129
    %v258 = vunpack.c.l.b16 %v130
    %v259 = vunpack.c.l.b16 %v131
    %v260 = vunpack.c.l.b16 %v132
    %v261 = vunpack.c.l.b16 %v133
    %v262 = vunpack.c.l.b16 %v134
    %v263 = vunpack.c.l.b16 %v135
    %v264 = vunpack.c.l.b16 %v136
    %v265 = vunpack.c.l.b16 %v137
    %v266 = vunpack.c.l.b16 %v138
    %v267 = vunpack.c.l.b16 %v139
    %v268 = vunpack.c.l.b16 %v140
    %v269 = vunpack.c.l.b16 %v141
    %v270 = vunpack.c.l.b16 %v142
    %v271 = vunpack.c.l.b16 %v143
    %v272 = vunpack.c.l.b16 %v144
    %v273 = vunpack.c.l.b16 %v145
    %v274 = vunpack.c.l.b16 %v146
    %v275 = vunpack.c.l.b16 %v147
    %v276 = vunpack.c.l.b16 %v148
    %v277 = vunpack.c.l.b16 %v149
    %v278 = vunpack.c.l.b16 %v150
    %v279 = vunpack.c.l.b16 %v151
    %v280 = vunpack.c.l.b16 %v152
    %v281 = vunpack.c.l.b16 %v153
    %v282 = vunpack.c.l.b16 %v154
    %v283 = vunpack.c.l.b16 %v155
    %v284 = vunpack.c.l.b16 %v156
    %v285 = vunpack.c.l.b16 %v157
    %v286 = vunpack.c.l.b16 %v158
    %v287 = vunpack.c.l.b16 %v159
    %v288 = vunpack.c.l.b16 %v160
    %v289 = vunpack.c.l.b16 %v161
    %v290 = vunpack.c.l.b16 %v162
    %v291 = vunpack.c.l.b16 %v163
    %v292 = vunpack.c.l.b16 %v164
    %v293 = vunpack.c.l.b16 %v165
    %v294 = vunpack.c.l.b16 %v166
    %v295 = vunpack.c.l.b16 %v167
    %v296 = vunpack.c.l.b16 %v168
    %v297 = vunpack.c.l.b16 %v169
    %v298 = vunpack.c.l.b16 %v170
    %v299 = vunpack.c.l.b16 %v171
    %v300 = vunpack.c.l.b16 %v172
    %v301 = vunpack.c.l.b16 %v173
    %v302 = vunpack.c.l.b16 %v174
    %v303 = vunpack.c.l.b16 %v175
    %v304 = vunpack.c.l.b16 %v176
    %v305 = vpack.c.b16 %v242, %v241
    %v306 = vpack.c.b16 %v244, %v243
    %v307 = vpack.c.b16 %v246, %v245
    %v308 = vpack.c.b16 %v248, %v247
    %v309 = vpack.c.b16 %v250, %v249
    %v310 = vpack.c.b16 %v252, %v251
    %v311 = vpack.c.b16 %v254, %v253
    %v312 = vpack.c.b16 %v256, %v255
    %v313 = vpack.c.b16 %v258, %v257
    %v314 = vpack.c.b16 %v260, %v259
    %v315 = vpack.c.b16 %v262, %v261
    %v316 = vpack.c.b16 %v264, %v263
    %v317 = vpack.c.b16 %v266, %v265
    %v318 = vpack.c.b16 %v268, %v267
    %v319 = vpack.c.b16 %v270, %v269
    %v320 = vpack.c.b16 %v272, %v271
    %v321 = vpack.c.b16 %v274, %v273
    %v322 = vpack.c.b16 %v276, %v275
    %v323 = vpack.c.b16 %v278, %v277
    %v324 = vpack.c.b16 %v280, %v279
    %v325 = vpack.c.b16 %v282, %v281
    %v326 = vpack.c.b16 %v284, %v283
    %v327 = vpack.c.b16 %v286, %v285
    %v328 = vpack.c.b16 %v288, %v287
    %v329 = vpack.c.b16 %v290, %v289
    %v330 = vpack.c.b16 %v292, %v291
    %v331 = vpack.c.b16 %v294, %v293
    %v332 = vpack.c.b16 %v296, %v295
    %v333 = vpack.c.b16 %v298, %v297
    %v334 = vpack.c.b16 %v300, %v299
    %v335 = vpack.c.b16 %v302, %v301
    %v336 = vpack.c.b16 %v304, %v303
    %369 = vmatprep.subr.bf16.mxu0 0
    %370 = vmatpush1.bf16.msra.mxu0 %v312
    %371 = vmatprep.subr.bf16.mxu0 0
    %372 = vmatpush1.bf16.msra.mxu0 %v311
    %373 = vmatprep.subr.bf16.mxu0 0
    %374 = vmatpush1.bf16.msra.mxu0 %v310
    %375 = vmatprep.subr.bf16.mxu0 0
    %376 = vmatpush1.bf16.msra.mxu0 %v309
    %377 = vmatprep.subr.bf16.mxu0 0
    %378 = vmatpush1.bf16.msra.mxu0 %v308
    %379 = vmatprep.subr.bf16.mxu0 0
    %380 = vmatpush1.bf16.msra.mxu0 %v307
    %381 = vmatprep.subr.bf16.mxu0 0
    %382 = vmatpush1.bf16.msra.mxu0 %v306
    %383 = vmatprep.subr.bf16.mxu0 0
    %384 = vmatpush1.bf16.msra.mxu0 %v305
    %385 = vmatprep.subr.bf16.mxu0 0
    %386 = vmatpush2.bf16.msra.mxu0 %v320
    %387 = vmatprep.subr.bf16.mxu0 0
    %388 = vmatpush2.bf16.msra.mxu0 %v319
    %389 = vmatprep.subr.bf16.mxu0 0
    %390 = vmatpush2.bf16.msra.mxu0 %v318
    %391 = vmatprep.subr.bf16.mxu0 0
    %392 = vmatpush2.bf16.msra.mxu0 %v317
    %393 = vmatprep.subr.bf16.mxu0 0
    %394 = vmatpush2.bf16.msra.mxu0 %v316
    %395 = vmatprep.subr.bf16.mxu0 0
    %396 = vmatpush2.bf16.msra.mxu0 %v315
    %397 = vmatprep.subr.bf16.mxu0 0
    %398 = vmatpush2.bf16.msra.mxu0 %v314
    %399 = vmatprep.subr.bf16.mxu0 0
    %400 = vmatpush2.bf16.msra.mxu0 %v313
    %401 = vmatprep.mubr.bf16.mxu0 %v109
    %402 = vmatmul.mubr.bf16.gmra.mxu0 %v108
    %v403 = vpop.f32.mrf.mxu0
    %v404 = vadd.f32 0.0, %v403
    %v405 = vpop.f32.mrf.mxu0
    %v406 = vpop.f32.mrf.mxu0
    %v407 = vpop.f32.mrf.mxu0
    %408 = vdwg.mxu0
    %409 = vmatprep.subr.bf16.mxu0 0
    %410 = vmatpush1.bf16.msra.mxu0 %v328
    %411 = vmatprep.subr.bf16.mxu0 0
    %412 = vmatpush1.bf16.msra.mxu0 %v327
    %413 = vmatprep.subr.bf16.mxu0 0
    %414 = vmatpush1.bf16.msra.mxu0 %v326
    %415 = vmatprep.subr.bf16.mxu0 0
    %416 = vmatpush1.bf16.msra.mxu0 %v325
    %417 = vmatprep.subr.bf16.mxu0 0
    %418 = vmatpush1.bf16.msra.mxu0 %v324
    %419 = vmatprep.subr.bf16.mxu0 0
    %420 = vmatpush1.bf16.msra.mxu0 %v323
    %421 = vmatprep.subr.bf16.mxu0 0
    %422 = vmatpush1.bf16.msra.mxu0 %v322
    %423 = vmatprep.subr.bf16.mxu0 0
    %424 = vmatpush1.bf16.msra.mxu0 %v321
    %425 = vmatprep.subr.bf16.mxu0 0
    %426 = vmatpush2.bf16.msra.mxu0 %v336
    %427 = vmatprep.subr.bf16.mxu0 0
    %428 = vmatpush2.bf16.msra.mxu0 %v335
    %429 = vmatprep.subr.bf16.mxu0 0
    %430 = vmatpush2.bf16.msra.mxu0 %v334
    %431 = vmatprep.subr.bf16.mxu0 0
    %432 = vmatpush2.bf16.msra.mxu0 %v333
    %433 = vmatprep.subr.bf16.mxu0 0
    %434 = vmatpush2.bf16.msra.mxu0 %v332
    %435 = vmatprep.subr.bf16.mxu0 0
    %436 = vmatpush2.bf16.msra.mxu0 %v331
    %437 = vmatprep.subr.bf16.mxu0 0
    %438 = vmatpush2.bf16.msra.mxu0 %v330
    %439 = vmatprep.subr.bf16.mxu0 0
    %440 = vmatpush2.bf16.msra.mxu0 %v329
    %441 = vmatprep.mubr.bf16.mxu0 %v111
    %442 = vmatmul.mubr.bf16.gmra.mxu0 %v110
    %v443 = vpop.f32.mrf.mxu0
    %v444 = vadd.f32 %v404, %v443
    %v445 = vpop.f32.mrf.mxu0
    %v446 = vpop.f32.mrf.mxu0
    %v447 = vpop.f32.mrf.mxu0
    %448 = vdwg.mxu0
    %v513 = vunpack.c.l.b16 %v39
    %v514 = vunpack.c.l.b16 %v40
    %v515 = vunpack.c.l.b16 %v41
    %v516 = vunpack.c.l.b16 %v42
    %v517 = vunpack.c.l.b16 %v43
    %v518 = vunpack.c.l.b16 %v44
    %v519 = vunpack.c.l.b16 %v45
    %v520 = vunpack.c.l.b16 %v46
    %v521 = vunpack.c.l.b16 %v47
    %v522 = vunpack.c.l.b16 %v48
    %v523 = vunpack.c.l.b16 %v49
    %v524 = vunpack.c.l.b16 %v50
    %v525 = vunpack.c.l.b16 %v51
    %v526 = vunpack.c.l.b16 %v52
    %v527 = vunpack.c.l.b16 %v53
    %v528 = vunpack.c.l.b16 %v54
    %v529 = vunpack.c.l.b16 %v55
    %v530 = vunpack.c.l.b16 %v56
    %v531 = vunpack.c.l.b16 %v57
    %v532 = vunpack.c.l.b16 %v58
    %v533 = vunpack.c.l.b16 %v59
    %v534 = vunpack.c.l.b16 %v60
    %v535 = vunpack.c.l.b16 %v61
    %v536 = vunpack.c.l.b16 %v62
    %v537 = vunpack.c.l.b16 %v63
    %v538 = vunpack.c.l.b16 %v64
    %v539 = vunpack.c.l.b16 %v65
    %v540 = vunpack.c.l.b16 %v66
    %v541 = vunpack.c.l.b16 %v67
    %v542 = vunpack.c.l.b16 %v68
    %v543 = vunpack.c.l.b16 %v69
    %v544 = vunpack.c.l.b16 %v70
    %v545 = vunpack.c.l.b16 %v71
    %v546 = vunpack.c.l.b16 %v72
    %v547 = vunpack.c.l.b16 %v73
    %v548 = vunpack.c.l.b16 %v74
    %v549 = vunpack.c.l.b16 %v75
    %v550 = vunpack.c.l.b16 %v76
    %v551 = vunpack.c.l.b16 %v77
    %v552 = vunpack.c.l.b16 %v78
    %v553 = vunpack.c.l.b16 %v79
    %v554 = vunpack.c.l.b16 %v80
    %v555 = vunpack.c.l.b16 %v81
    %v556 = vunpack.c.l.b16 %v82
    %v557 = vunpack.c.l.b16 %v83
    %v558 = vunpack.c.l.b16 %v84
    %v559 = vunpack.c.l.b16 %v85
    %v560 = vunpack.c.l.b16 %v86
    %v561 = vunpack.c.l.b16 %v87
    %v562 = vunpack.c.l.b16 %v88
    %v563 = vunpack.c.l.b16 %v89
    %v564 = vunpack.c.l.b16 %v90
    %v565 = vunpack.c.l.b16 %v91
    %v566 = vunpack.c.l.b16 %v92
    %v567 = vunpack.c.l.b16 %v93
    %v568 = vunpack.c.l.b16 %v94
    %v569 = vunpack.c.l.b16 %v95
    %v570 = vunpack.c.l.b16 %v96
    %v571 = vunpack.c.l.b16 %v97
    %v572 = vunpack.c.l.b16 %v98
    %v573 = vunpack.c.l.b16 %v99
    %v574 = vunpack.c.l.b16 %v100
    %v575 = vunpack.c.l.b16 %v101
    %v576 = vunpack.c.l.b16 %v102
    %v577 = vpack.c.b16 %v514, %v513
    %v578 = vpack.c.b16 %v516, %v515
    %v579 = vpack.c.b16 %v518, %v517
    %v580 = vpack.c.b16 %v520, %v519
    %v581 = vpack.c.b16 %v522, %v521
    %v582 = vpack.c.b16 %v524, %v523
    %v583 = vpack.c.b16 %v526, %v525
    %v584 = vpack.c.b16 %v528, %v527
    %v585 = vpack.c.b16 %v530, %v529
    %v586 = vpack.c.b16 %v532, %v531
    %v587 = vpack.c.b16 %v534, %v533
    %v588 = vpack.c.b16 %v536, %v535
    %v589 = vpack.c.b16 %v538, %v537
    %v590 = vpack.c.b16 %v540, %v539
    %v591 = vpack.c.b16 %v542, %v541
    %v592 = vpack.c.b16 %v544, %v543
    %v593 = vpack.c.b16 %v546, %v545
    %v594 = vpack.c.b16 %v548, %v547
    %v595 = vpack.c.b16 %v550, %v549
    %v596 = vpack.c.b16 %v552, %v551
    %v597 = vpack.c.b16 %v554, %v553
    %v598 = vpack.c.b16 %v556, %v555
    %v599 = vpack.c.b16 %v558, %v557
    %v600 = vpack.c.b16 %v560, %v559
    %v601 = vpack.c.b16 %v562, %v561
    %v602 = vpack.c.b16 %v564, %v563
    %v603 = vpack.c.b16 %v566, %v565
    %v604 = vpack.c.b16 %v568, %v567
    %v605 = vpack.c.b16 %v570, %v569
    %v606 = vpack.c.b16 %v572, %v571
    %v607 = vpack.c.b16 %v574, %v573
    %v608 = vpack.c.b16 %v576, %v575
    %641 = vmatprep.subr.bf16.mxu0 0
    %642 = vmatpush1.bf16.msra.mxu0 %v584
    %643 = vmatprep.subr.bf16.mxu0 0
    %644 = vmatpush1.bf16.msra.mxu0 %v583
    %645 = vmatprep.subr.bf16.mxu0 0
    %646 = vmatpush1.bf16.msra.mxu0 %v582
    %647 = vmatprep.subr.bf16.mxu0 0
    %648 = vmatpush1.bf16.msra.mxu0 %v581
    %649 = vmatprep.subr.bf16.mxu0 0
    %650 = vmatpush1.bf16.msra.mxu0 %v580
    %651 = vmatprep.subr.bf16.mxu0 0
    %652 = vmatpush1.bf16.msra.mxu0 %v579
    %653 = vmatprep.subr.bf16.mxu0 0
    %654 = vmatpush1.bf16.msra.mxu0 %v578
    %655 = vmatprep.subr.bf16.mxu0 0
    %656 = vmatpush1.bf16.msra.mxu0 %v577
    %657 = vmatprep.subr.bf16.mxu0 0
    %658 = vmatpush2.bf16.msra.mxu0 %v592
    %659 = vmatprep.subr.bf16.mxu0 0
    %660 = vmatpush2.bf16.msra.mxu0 %v591
    %661 = vmatprep.subr.bf16.mxu0 0
    %662 = vmatpush2.bf16.msra.mxu0 %v590
    %663 = vmatprep.subr.bf16.mxu0 0
    %664 = vmatpush2.bf16.msra.mxu0 %v589
    %665 = vmatprep.subr.bf16.mxu0 0
    %666 = vmatpush2.bf16.msra.mxu0 %v588
    %667 = vmatprep.subr.bf16.mxu0 0
    %668 = vmatpush2.bf16.msra.mxu0 %v587
    %669 = vmatprep.subr.bf16.mxu0 0
    %670 = vmatpush2.bf16.msra.mxu0 %v586
    %671 = vmatprep.subr.bf16.mxu0 0
    %672 = vmatpush2.bf16.msra.mxu0 %v585
    %673 = vmatprep.mubr.bf16.mxu0 %v36
    %674 = vmatmul.mubr.bf16.gmra.mxu0 %v35
    %v675 = vpop.f32.mrf.mxu0
    %v676 = vadd.f32 %v444, %v675
    %v677 = vpop.f32.mrf.mxu0
    %v678 = vpop.f32.mrf.mxu0
    %v679 = vpop.f32.mrf.mxu0
    %680 = vdwg.mxu0
    %681 = vmatprep.subr.bf16.mxu0 0
    %682 = vmatpush1.bf16.msra.mxu0 %v600
    %683 = vmatprep.subr.bf16.mxu0 0
    %684 = vmatpush1.bf16.msra.mxu0 %v599
    %685 = vmatprep.subr.bf16.mxu0 0
    %686 = vmatpush1.bf16.msra.mxu0 %v598
    %687 = vmatprep.subr.bf16.mxu0 0
    %688 = vmatpush1.bf16.msra.mxu0 %v597
    %689 = vmatprep.subr.bf16.mxu0 0
    %690 = vmatpush1.bf16.msra.mxu0 %v596
    %691 = vmatprep.subr.bf16.mxu0 0
    %692 = vmatpush1.bf16.msra.mxu0 %v595
    %693 = vmatprep.subr.bf16.mxu0 0
    %694 = vmatpush1.bf16.msra.mxu0 %v594
    %695 = vmatprep.subr.bf16.mxu0 0
    %696 = vmatpush1.bf16.msra.mxu0 %v593
    %697 = vmatprep.subr.bf16.mxu0 0
    %698 = vmatpush2.bf16.msra.mxu0 %v608
    %699 = vmatprep.subr.bf16.mxu0 0
    %700 = vmatpush2.bf16.msra.mxu0 %v607
    %701 = vmatprep.subr.bf16.mxu0 0
    %702 = vmatpush2.bf16.msra.mxu0 %v606
    %703 = vmatprep.subr.bf16.mxu0 0
    %704 = vmatpush2.bf16.msra.mxu0 %v605
    %705 = vmatprep.subr.bf16.mxu0 0
    %706 = vmatpush2.bf16.msra.mxu0 %v604
    %707 = vmatprep.subr.bf16.mxu0 0
    %708 = vmatpush2.bf16.msra.mxu0 %v603
    %709 = vmatprep.subr.bf16.mxu0 0
    %710 = vmatpush2.bf16.msra.mxu0 %v602
    %711 = vmatprep.subr.bf16.mxu0 0
    %712 = vmatpush2.bf16.msra.mxu0 %v601
    %713 = vmatprep.mubr.bf16.mxu0 %v38
    %714 = vmatmul.mubr.bf16.gmra.mxu0 %v37
    %v715 = vpop.f32.mrf.mxu0
    %v716 = vadd.f32 %v676, %v715
    %v717 = vpop.f32.mrf.mxu0
    %v718 = vpop.f32.mrf.mxu0
    %v719 = vpop.f32.mrf.mxu0
    %720 = vdwg.mxu0
    %v721 = vld [vmem:[%s2] sm:$0x1]
    %v723 = vlaneseq
    %v724 = vshrl.u32 %v723, 7
    %v725 = vsub.s32 0, %v724
    %v726 = vrot.slane %v721, %v725
    %v728 = vadd.f32 %v716, %v726
    %v729 = vpack.c.bf16 %v728, %v728
    %v730 = vld [vmem:[%s3] sm:$0xff]
    %v731 = vld [vmem:[%s3 + $0x8] sm:$0xff]
    %v732 = vld [vmem:[%s3 + $0x10] sm:$0xff]
    %v733 = vld [vmem:[%s3 + $0x18] sm:$0xff]
    %v734 = vld [vmem:[%s3 + $0x20] sm:$0xff]
    %v735 = vld [vmem:[%s3 + $0x28] sm:$0xff]
    %v736 = vld [vmem:[%s3 + $0x30] sm:$0xff]
    %v737 = vld [vmem:[%s3 + $0x38] sm:$0xff]
    %v738 = vld [vmem:[%s3 + $0x40] sm:$0xff]
    %v739 = vld [vmem:[%s3 + $0x48] sm:$0xff]
    %v740 = vld [vmem:[%s3 + $0x50] sm:$0xff]
    %v741 = vld [vmem:[%s3 + $0x58] sm:$0xff]
    %v742 = vld [vmem:[%s3 + $0x60] sm:$0xff]
    %v743 = vld [vmem:[%s3 + $0x68] sm:$0xff]
    %v744 = vld [vmem:[%s3 + $0x70] sm:$0xff]
    %v745 = vld [vmem:[%s3 + $0x78] sm:$0xff]
    %v746 = vld [vmem:[%s4] sm:$0x3]
    %v748 = vlaneseq
    %v749 = vshrl.u32 %v748, 7
    %v750 = vsub.s32 0, %v749
    %v751 = vrot.slane %v746, %v750
    %v752 = vlaneseq
    %v753 = vshrl.u32 %v752, 7
    %v754 = vsub.s32 1, %v753
    %v755 = vrot.slane %v746, %v754
    %v774 = vunpack.c.l.b16 %v730
    %v775 = vunpack.c.h.b16 %v730
    %v776 = vunpack.c.l.b16 %v731
    %v777 = vunpack.c.h.b16 %v731
    %v778 = vunpack.c.l.b16 %v732
    %v779 = vunpack.c.h.b16 %v732
    %v780 = vunpack.c.l.b16 %v733
    %v781 = vunpack.c.h.b16 %v733
    %v782 = vunpack.c.l.b16 %v734
    %v783 = vunpack.c.h.b16 %v734
    %v784 = vunpack.c.l.b16 %v735
    %v785 = vunpack.c.h.b16 %v735
    %v786 = vunpack.c.l.b16 %v736
    %v787 = vunpack.c.h.b16 %v736
    %v788 = vunpack.c.l.b16 %v737
    %v789 = vunpack.c.h.b16 %v737
    %v790 = vunpack.c.l.b16 %v738
    %v791 = vunpack.c.h.b16 %v738
    %v792 = vunpack.c.l.b16 %v739
    %v793 = vunpack.c.h.b16 %v739
    %v794 = vunpack.c.l.b16 %v740
    %v795 = vunpack.c.h.b16 %v740
    %v796 = vunpack.c.l.b16 %v741
    %v797 = vunpack.c.h.b16 %v741
    %v798 = vunpack.c.l.b16 %v742
    %v799 = vunpack.c.h.b16 %v742
    %v800 = vunpack.c.l.b16 %v743
    %v801 = vunpack.c.h.b16 %v743
    %v802 = vunpack.c.l.b16 %v744
    %v803 = vunpack.c.h.b16 %v744
    %v804 = vunpack.c.l.b16 %v745
    %v805 = vunpack.c.h.b16 %v745
    %v806 = vpack.c.b16 %v776, %v774
    %v807 = vpack.c.b16 %v777, %v775
    %v808 = vpack.c.b16 %v780, %v778
    %v809 = vpack.c.b16 %v781, %v779
    %v810 = vpack.c.b16 %v784, %v782
    %v811 = vpack.c.b16 %v785, %v783
    %v812 = vpack.c.b16 %v788, %v786
    %v813 = vpack.c.b16 %v789, %v787
    %v814 = vpack.c.b16 %v792, %v790
    %v815 = vpack.c.b16 %v793, %v791
    %v816 = vpack.c.b16 %v796, %v794
    %v817 = vpack.c.b16 %v797, %v795
    %v818 = vpack.c.b16 %v800, %v798
    %v819 = vpack.c.b16 %v801, %v799
    %v820 = vpack.c.b16 %v804, %v802
    %v821 = vpack.c.b16 %v805, %v803
    %838 = vmatprep.subr.bf16.mxu0 %v821
    %839 = vmatpush1.bf16.msra.mxu0 %v820
    %840 = vmatprep.subr.bf16.mxu0 %v819
    %841 = vmatpush1.bf16.msra.mxu0 %v818
    %842 = vmatprep.subr.bf16.mxu0 %v817
    %843 = vmatpush1.bf16.msra.mxu0 %v816
    %844 = vmatprep.subr.bf16.mxu0 %v815
    %845 = vmatpush1.bf16.msra.mxu0 %v814
    %846 = vmatprep.subr.bf16.mxu0 %v813
    %847 = vmatpush1.bf16.msra.mxu0 %v812
    %848 = vmatprep.subr.bf16.mxu0 %v811
    %849 = vmatpush1.bf16.msra.mxu0 %v810
    %850 = vmatprep.subr.bf16.mxu0 %v809
    %851 = vmatpush1.bf16.msra.mxu0 %v808
    %852 = vmatprep.subr.bf16.mxu0 %v807
    %853 = vmatpush1.bf16.msra.mxu0 %v806
    %854 = vmatprep.subr.bf16.mxu0 0
    %855 = vmatpush2.bf16.msra.mxu0 0
    %856 = vmatprep.subr.bf16.mxu0 0
    %857 = vmatpush2.bf16.msra.mxu0 0
    %858 = vmatprep.subr.bf16.mxu0 0
    %859 = vmatpush2.bf16.msra.mxu0 0
    %860 = vmatprep.subr.bf16.mxu0 0
    %861 = vmatpush2.bf16.msra.mxu0 0
    %862 = vmatprep.subr.bf16.mxu0 0
    %863 = vmatpush2.bf16.msra.mxu0 0
    %864 = vmatprep.subr.bf16.mxu0 0
    %865 = vmatpush2.bf16.msra.mxu0 0
    %866 = vmatprep.subr.bf16.mxu0 0
    %867 = vmatpush2.bf16.msra.mxu0 0
    %868 = vmatprep.subr.bf16.mxu0 0
    %869 = vmatpush2.bf16.msra.mxu0 0
    %870 = vmatprep.mubr.bf16.mxu0 0
    %871 = vmatmul.mubr.bf16.gmra.mxu0 %v729
    %v872 = vpop.f32.mrf.mxu0
    %v873 = vadd.f32 %v751, %v872
    %v874 = vpop.f32.mrf.mxu0
    %v875 = vadd.f32 %v755, %v874
    %v876 = vpop.f32.mrf.mxu0
    %v877 = vpop.f32.mrf.mxu0
    %878 = vdwg.mxu0
    %v879 = vmax.f32 %v873, 0.0
    %v880 = vmax.f32 %v875, 0.0
    %v881 = vpack.c.bf16 %v879, %v879
    %v882 = vpack.c.bf16 %v880, %v880
    %v883 = vld [vmem:[%s5] sm:$0xff]
    %v884 = vld [vmem:[%s5 + $0x8] sm:$0xf]
    %v885 = vld [vmem:[%s5 + $0xc] sm:$0xff]
    %v886 = vld [vmem:[%s5 + $0x14] sm:$0xf]
    %v887 = vld [vmem:[%s5 + $0x18] sm:$0xff]
    %v888 = vld [vmem:[%s5 + $0x20] sm:$0xf]
    %v889 = vld [vmem:[%s5 + $0x24] sm:$0xff]
    %v890 = vld [vmem:[%s5 + $0x2c] sm:$0xf]
    %v891 = vld [vmem:[%s5 + $0x30] sm:$0xff]
    %v892 = vld [vmem:[%s5 + $0x38] sm:$0xf]
    %v893 = vld [vmem:[%s5 + $0x3c] sm:$0xff]
    %v894 = vld [vmem:[%s5 + $0x44] sm:$0xf]
    %v895 = vld [vmem:[%s5 + $0x48] sm:$0xff]
    %v896 = vld [vmem:[%s5 + $0x50] sm:$0xf]
    %v897 = vld [vmem:[%s5 + $0x54] sm:$0xff]
    %v898 = vld [vmem:[%s5 + $0x5c] sm:$0xf]
    %v899 = vld [vmem:[%s5 + $0x60] sm:$0xff]
    %v900 = vld [vmem:[%s5 + $0x68] sm:$0xf]
    %v901 = vld [vmem:[%s5 + $0x6c] sm:$0xff]
    %v902 = vld [vmem:[%s5 + $0x74] sm:$0xf]
    %v903 = vld [vmem:[%s5 + $0x78] sm:$0xff]
    %v904 = vld [vmem:[%s5 + $0x80] sm:$0xf]
    %v905 = vld [vmem:[%s5 + $0x84] sm:$0xff]
    %v906 = vld [vmem:[%s5 + $0x8c] sm:$0xf]
    %v907 = vld [vmem:[%s5 + $0x90] sm:$0xff]
    %v908 = vld [vmem:[%s5 + $0x98] sm:$0xf]
    %v909 = vld [vmem:[%s5 + $0x9c] sm:$0xff]
    %v910 = vld [vmem:[%s5 + $0xa4] sm:$0xf]
    %v911 = vld [vmem:[%s5 + $0xa8] sm:$0xff]
    %v912 = vld [vmem:[%s5 + $0xb0] sm:$0xf]
    %v913 = vld [vmem:[%s5 + $0xb4] sm:$0xff]
    %v914 = vld [vmem:[%s5 + $0xbc] sm:$0xf]
    %v915 = vld [vmem:[%s5 + $0xc0] sm:$0xff]
    %v916 = vld [vmem:[%s5 + $0xc8] sm:$0xf]
    %v917 = vld [vmem:[%s5 + $0xcc] sm:$0xff]
    %v918 = vld [vmem:[%s5 + $0xd4] sm:$0xf]
    %v919 = vld [vmem:[%s5 + $0xd8] sm:$0xff]
    %v920 = vld [vmem:[%s5 + $0xe0] sm:$0xf]
    %v921 = vld [vmem:[%s5 + $0xe4] sm:$0xff]
    %v922 = vld [vmem:[%s5 + $0xec] sm:$0xf]
    %v923 = vld [vmem:[%s5 + $0xf0] sm:$0xff]
    %v924 = vld [vmem:[%s5 + $0xf8] sm:$0xf]
    %v925 = vld [vmem:[%s5 + $0xfc] sm:$0xff]
    %v926 = vld [vmem:[%s5 + $0x104] sm:$0xf]
    %v927 = vld [vmem:[%s5 + $0x108] sm:$0xff]
    %v928 = vld [vmem:[%s5 + $0x110] sm:$0xf]
    %v929 = vld [vmem:[%s5 + $0x114] sm:$0xff]
    %v930 = vld [vmem:[%s5 + $0x11c] sm:$0xf]
    %v931 = vld [vmem:[%s5 + $0x120] sm:$0xff]
    %v932 = vld [vmem:[%s5 + $0x128] sm:$0xf]
    %v933 = vld [vmem:[%s5 + $0x12c] sm:$0xff]
    %v934 = vld [vmem:[%s5 + $0x134] sm:$0xf]
    %v935 = vld [vmem:[%s5 + $0x138] sm:$0xff]
    %v936 = vld [vmem:[%s5 + $0x140] sm:$0xf]
    %v937 = vld [vmem:[%s5 + $0x144] sm:$0xff]
    %v938 = vld [vmem:[%s5 + $0x14c] sm:$0xf]
    %v939 = vld [vmem:[%s5 + $0x150] sm:$0xff]
    %v940 = vld [vmem:[%s5 + $0x158] sm:$0xf]
    %v941 = vld [vmem:[%s5 + $0x15c] sm:$0xff]
    %v942 = vld [vmem:[%s5 + $0x164] sm:$0xf]
    %v943 = vld [vmem:[%s5 + $0x168] sm:$0xff]
    %v944 = vld [vmem:[%s5 + $0x170] sm:$0xf]
    %v945 = vld [vmem:[%s5 + $0x174] sm:$0xff]
    %v946 = vld [vmem:[%s5 + $0x17c] sm:$0xf]
    %v947 = vld [vmem:[%s6] sm:$0x7]
    %v949 = vlaneseq
    %v950 = vshrl.u32 %v949, 7
    %v951 = vsub.s32 0, %v950
    %v952 = vrot.slane %v947, %v951
    %v953 = vlaneseq
    %v954 = vshrl.u32 %v953, 7
    %v955 = vsub.s32 1, %v954
    %v956 = vrot.slane %v947, %v955
    %v957 = vlaneseq
    %v958 = vshrl.u32 %v957, 7
    %v959 = vsub.s32 2, %v958
    %v960 = vrot.slane %v947, %v959
    %v1028 = vunpack.c.l.b16 %v883
    %v1029 = vunpack.c.h.b16 %v883
    %v1030 = vunpack.c.l.b16 %v884
    %v1031 = vunpack.c.l.b16 %v885
    %v1032 = vunpack.c.h.b16 %v885
    %v1033 = vunpack.c.l.b16 %v886
    %v1034 = vunpack.c.l.b16 %v887
    %v1035 = vunpack.c.h.b16 %v887
    %v1036 = vunpack.c.l.b16 %v888
    %v1037 = vunpack.c.l.b16 %v889
    %v1038 = vunpack.c.h.b16 %v889
    %v1039 = vunpack.c.l.b16 %v890
    %v1040 = vunpack.c.l.b16 %v891
    %v1041 = vunpack.c.h.b16 %v891
    %v1042 = vunpack.c.l.b16 %v892
    %v1043 = vunpack.c.l.b16 %v893
    %v1044 = vunpack.c.h.b16 %v893
    %v1045 = vunpack.c.l.b16 %v894
    %v1046 = vunpack.c.l.b16 %v895
    %v1047 = vunpack.c.h.b16 %v895
    %v1048 = vunpack.c.l.b16 %v896
    %v1049 = vunpack.c.l.b16 %v897
    %v1050 = vunpack.c.h.b16 %v897
    %v1051 = vunpack.c.l.b16 %v898
    %v1052 = vunpack.c.l.b16 %v899
    %v1053 = vunpack.c.h.b16 %v899
    %v1054 = vunpack.c.l.b16 %v900
    %v1055 = vunpack.c.l.b16 %v901
    %v1056 = vunpack.c.h.b16 %v901
    %v1057 = vunpack.c.l.b16 %v902
    %v1058 = vunpack.c.l.b16 %v903
    %v1059 = vunpack.c.h.b16 %v903
    %v1060 = vunpack.c.l.b16 %v904
    %v1061 = vunpack.c.l.b16 %v905
    %v1062 = vunpack.c.h.b16 %v905
    %v1063 = vunpack.c.l.b16 %v906
    %v1064 = vunpack.c.l.b16 %v907
    %v1065 = vunpack.c.h.b16 %v907
    %v1066 = vunpack.c.l.b16 %v908
    %v1067 = vunpack.c.l.b16 %v909
    %v1068 = vunpack.c.h.b16 %v909
    %v1069 = vunpack.c.l.b16 %v910
    %v1070 = vunpack.c.l.b16 %v911
    %v1071 = vunpack.c.h.b16 %v911
    %v1072 = vunpack.c.l.b16 %v912
    %v1073 = vunpack.c.l.b16 %v913
    %v1074 = vunpack.c.h.b16 %v913
    %v1075 = vunpack.c.l.b16 %v914
    %v1076 = vunpack.c.l.b16 %v915
    %v1077 = vunpack.c.h.b16 %v915
    %v1078 = vunpack.c.l.b16 %v916
    %v1079 = vunpack.c.l.b16 %v917
    %v1080 = vunpack.c.h.b16 %v917
    %v1081 = vunpack.c.l.b16 %v918
    %v1082 = vunpack.c.l.b16 %v919
    %v1083 = vunpack.c.h.b16 %v919
    %v1084 = vunpack.c.l.b16 %v920
    %v1085 = vunpack.c.l.b16 %v921
    %v1086 = vunpack.c.h.b16 %v921
    %v1087 = vunpack.c.l.b16 %v922
    %v1088 = vunpack.c.l.b16 %v923
    %v1089 = vunpack.c.h.b16 %v923
    %v1090 = vunpack.c.l.b16 %v924
    %v1091 = vunpack.c.l.b16 %v925
    %v1092 = vunpack.c.h.b16 %v925
    %v1093 = vunpack.c.l.b16 %v926
    %v1094 = vunpack.c.l.b16 %v927
    %v1095 = vunpack.c.h.b16 %v927
    %v1096 = vunpack.c.l.b16 %v928
    %v1097 = vunpack.c.l.b16 %v929
    %v1098 = vunpack.c.h.b16 %v929
    %v1099 = vunpack.c.l.b16 %v930
    %v1100 = vunpack.c.l.b16 %v931
    %v1101 = vunpack.c.h.b16 %v931
    %v1102 = vunpack.c.l.b16 %v932
    %v1103 = vunpack.c.l.b16 %v933
    %v1104 = vunpack.c.h.b16 %v933
    %v1105 = vunpack.c.l.b16 %v934
    %v1106 = vunpack.c.l.b16 %v935
    %v1107 = vunpack.c.h.b16 %v935
    %v1108 = vunpack.c.l.b16 %v936
    %v1109 = vunpack.c.l.b16 %v937
    %v1110 = vunpack.c.h.b16 %v937
    %v1111 = vunpack.c.l.b16 %v938
    %v1112 = vunpack.c.l.b16 %v939
    %v1113 = vunpack.c.h.b16 %v939
    %v1114 = vunpack.c.l.b16 %v940
    %v1115 = vunpack.c.l.b16 %v941
    %v1116 = vunpack.c.h.b16 %v941
    %v1117 = vunpack.c.l.b16 %v942
    %v1118 = vunpack.c.l.b16 %v943
    %v1119 = vunpack.c.h.b16 %v943
    %v1120 = vunpack.c.l.b16 %v944
    %v1121 = vunpack.c.l.b16 %v945
    %v1122 = vunpack.c.h.b16 %v945
    %v1123 = vunpack.c.l.b16 %v946
    %v1124 = vpack.c.b16 %v1031, %v1028
    %v1125 = vpack.c.b16 %v1032, %v1029
    %v1126 = vpack.c.b16 %v1033, %v1030
    %v1127 = vpack.c.b16 %v1037, %v1034
    %v1128 = vpack.c.b16 %v1038, %v1035
    %v1129 = vpack.c.b16 %v1039, %v1036
    %v1130 = vpack.c.b16 %v1043, %v1040
    %v1131 = vpack.c.b16 %v1044, %v1041
    %v1132 = vpack.c.b16 %v1045, %v1042
    %v1133 = vpack.c.b16 %v1049, %v1046
    %v1134 = vpack.c.b16 %v1050, %v1047
    %v1135 = vpack.c.b16 %v1051, %v1048
    %v1136 = vpack.c.b16 %v1055, %v1052
    %v1137 = vpack.c.b16 %v1056, %v1053
    %v1138 = vpack.c.b16 %v1057, %v1054
    %v1139 = vpack.c.b16 %v1061, %v1058
    %v1140 = vpack.c.b16 %v1062, %v1059
    %v1141 = vpack.c.b16 %v1063, %v1060
    %v1142 = vpack.c.b16 %v1067, %v1064
    %v1143 = vpack.c.b16 %v1068, %v1065
    %v1144 = vpack.c.b16 %v1069, %v1066
    %v1145 = vpack.c.b16 %v1073, %v1070
    %v1146 = vpack.c.b16 %v1074, %v1071
    %v1147 = vpack.c.b16 %v1075, %v1072
    %v1148 = vpack.c.b16 %v1079, %v1076
    %v1149 = vpack.c.b16 %v1080, %v1077
    %v1150 = vpack.c.b16 %v1081, %v1078
    %v1151 = vpack.c.b16 %v1085, %v1082
    %v1152 = vpack.c.b16 %v1086, %v1083
    %v1153 = vpack.c.b16 %v1087, %v1084
    %v1154 = vpack.c.b16 %v1091, %v1088
    %v1155 = vpack.c.b16 %v1092, %v1089
    %v1156 = vpack.c.b16 %v1093, %v1090
    %v1157 = vpack.c.b16 %v1097, %v1094
    %v1158 = vpack.c.b16 %v1098, %v1095
    %v1159 = vpack.c.b16 %v1099, %v1096
    %v1160 = vpack.c.b16 %v1103, %v1100
    %v1161 = vpack.c.b16 %v1104, %v1101
    %v1162 = vpack.c.b16 %v1105, %v1102
    %v1163 = vpack.c.b16 %v1109, %v1106
    %v1164 = vpack.c.b16 %v1110, %v1107
    %v1165 = vpack.c.b16 %v1111, %v1108
    %v1166 = vpack.c.b16 %v1115, %v1112
    %v1167 = vpack.c.b16 %v1116, %v1113
    %v1168 = vpack.c.b16 %v1117, %v1114
    %v1169 = vpack.c.b16 %v1121, %v1118
    %v1170 = vpack.c.b16 %v1122, %v1119
    %v1171 = vpack.c.b16 %v1123, %v1120
    %1220 = vmatprep.subr.bf16.mxu0 %v1146
    %1221 = vmatpush1.bf16.msra.mxu0 %v1145
    %1222 = vmatprep.subr.bf16.mxu0 %v1143
    %1223 = vmatpush1.bf16.msra.mxu0 %v1142
    %1224 = vmatprep.subr.bf16.mxu0 %v1140
    %1225 = vmatpush1.bf16.msra.mxu0 %v1139
    %1226 = vmatprep.subr.bf16.mxu0 %v1137
    %1227 = vmatpush1.bf16.msra.mxu0 %v1136
    %1228 = vmatprep.subr.bf16.mxu0 %v1134
    %1229 = vmatpush1.bf16.msra.mxu0 %v1133
    %1230 = vmatprep.subr.bf16.mxu0 %v1131
    %1231 = vmatpush1.bf16.msra.mxu0 %v1130
    %1232 = vmatprep.subr.bf16.mxu0 %v1128
    %1233 = vmatpush1.bf16.msra.mxu0 %v1127
    %1234 = vmatprep.subr.bf16.mxu0 %v1125
    %1235 = vmatpush1.bf16.msra.mxu0 %v1124
    %1236 = vmatprep.subr.bf16.mxu0 %v1170
    %1237 = vmatpush2.bf16.msra.mxu0 %v1169
    %1238 = vmatprep.subr.bf16.mxu0 %v1167
    %1239 = vmatpush2.bf16.msra.mxu0 %v1166
    %1240 = vmatprep.subr.bf16.mxu0 %v1164
    %1241 = vmatpush2.bf16.msra.mxu0 %v1163
    %1242 = vmatprep.subr.bf16.mxu0 %v1161
    %1243 = vmatpush2.bf16.msra.mxu0 %v1160
    %1244 = vmatprep.subr.bf16.mxu0 %v1158
    %1245 = vmatpush2.bf16.msra.mxu0 %v1157
    %1246 = vmatprep.subr.bf16.mxu0 %v1155
    %1247 = vmatpush2.bf16.msra.mxu0 %v1154
    %1248 = vmatprep.subr.bf16.mxu0 %v1152
    %1249 = vmatpush2.bf16.msra.mxu0 %v1151
    %1250 = vmatprep.subr.bf16.mxu0 %v1149
    %1251 = vmatpush2.bf16.msra.mxu0 %v1148
    %1252 = vmatprep.mubr.bf16.mxu0 %v882
    %1253 = vmatmul.mubr.bf16.gmra.mxu0 %v881
    %v1254 = vpop.f32.mrf.mxu0
    %v1255 = vadd.f32 %v952, %v1254
    %v1256 = vpop.f32.mrf.mxu0
    %v1257 = vadd.f32 %v956, %v1256
    %v1258 = vpop.f32.mrf.mxu0
    %v1259 = vpop.f32.mrf.mxu0
    %1260 = vdwg.mxu0
    %1261 = vmatprep.subr.bf16.mxu0 0
    %1262 = vmatpush1.bf16.msra.mxu0 %v1147
    %1263 = vmatprep.subr.bf16.mxu0 0
    %1264 = vmatpush1.bf16.msra.mxu0 %v1144
    %1265 = vmatprep.subr.bf16.mxu0 0
    %1266 = vmatpush1.bf16.msra.mxu0 %v1141
    %1267 = vmatprep.subr.bf16.mxu0 0
    %1268 = vmatpush1.bf16.msra.mxu0 %v1138
    %1269 = vmatprep.subr.bf16.mxu0 0
    %1270 = vmatpush1.bf16.msra.mxu0 %v1135
    %1271 = vmatprep.subr.bf16.mxu0 0
    %1272 = vmatpush1.bf16.msra.mxu0 %v1132
    %1273 = vmatprep.subr.bf16.mxu0 0
    %1274 = vmatpush1.bf16.msra.mxu0 %v1129
    %1275 = vmatprep.subr.bf16.mxu0 0
    %1276 = vmatpush1.bf16.msra.mxu0 %v1126
    %1277 = vmatprep.subr.bf16.mxu0 0
    %1278 = vmatpush2.bf16.msra.mxu0 %v1171
    %1279 = vmatprep.subr.bf16.mxu0 0
    %1280 = vmatpush2.bf16.msra.mxu0 %v1168
    %1281 = vmatprep.subr.bf16.mxu0 0
    %1282 = vmatpush2.bf16.msra.mxu0 %v1165
    %1283 = vmatprep.subr.bf16.mxu0 0
    %1284 = vmatpush2.bf16.msra.mxu0 %v1162
    %1285 = vmatprep.subr.bf16.mxu0 0
    %1286 = vmatpush2.bf16.msra.mxu0 %v1159
    %1287 = vmatprep.subr.bf16.mxu0 0
    %1288 = vmatpush2.bf16.msra.mxu0 %v1156
    %1289 = vmatprep.subr.bf16.mxu0 0
    %1290 = vmatpush2.bf16.msra.mxu0 %v1153
    %1291 = vmatprep.subr.bf16.mxu0 0
    %1292 = vmatpush2.bf16.msra.mxu0 %v1150
    %1293 = vmatprep.mubr.bf16.mxu0 %v882
    %1294 = vmatmul.mubr.bf16.gmra.mxu0 %v881
    %v1295 = vpop.f32.mrf.mxu0
    %v1296 = vadd.f32 %v960, %v1295
    %v1297 = vpop.f32.mrf.mxu0
    %v1298 = vpop.f32.mrf.mxu0
    %v1299 = vpop.f32.mrf.mxu0
    %1300 = vdwg.mxu0
    %1301 = vst [vmem:[#allocation2] sm:$0xff] %v1255
    %1302 = vst [vmem:[#allocation2 + $0x8] sm:$0xff] %v1257
    %1303 = vst [vmem:[#allocation2 + $0x10] sm:$0xff] %v1296
    %1304 = vst [vmem:[#allocation4] sm:$0xff] %v728
    // Predicated region
    $region30: #{lstm_autoencoder_forward.3} parent=1 // pred_check
      _
    $region31: #{lstm_autoencoder_forward.3} parent=1 // pred_check_branch
      %1306 = sbr.rel (0) target = $region33
    $region32: #{lstm_autoencoder_forward.3} parent=1 // pred_region
      %s1308 = ssub.s32 384, 384
      %1309 = vsyncadd [#allocation3], %s1308
      %s1311 = sshll.u32 [#allocation2], 4
      %s1312 = int_to_ptr.vmem [resolvable:$true] %s1311
      %1314 = dma.vmem_to_hbm [thread:$0]  %s1312, 384, %s7, [#allocation3]
    $region33: #{lstm_autoencoder_forward.3} parent=1 // pred_fallthru
      _
    // Predicated region
    $region34: #{lstm_autoencoder_forward.3} parent=1 // pred_check
      _
    $region35: #{lstm_autoencoder_forward.3} parent=1 // pred_check_branch
      %1316 = sbr.rel (0) target = $region37
    $region36: #{lstm_autoencoder_forward.3} parent=1 // pred_region
      %s1318 = ssub.s32 128, 128
      %1319 = vsyncadd [#allocation5], %s1318
      %s1321 = sshll.u32 [#allocation4], 4
      %s1322 = int_to_ptr.vmem [resolvable:$true] %s1321
      %1324 = dma.vmem_to_hbm [thread:$0]  %s1322, 128, %s8, [#allocation5]
    $region37: #{lstm_autoencoder_forward.3} parent=1 // pred_fallthru
      _
    // Predicated region
    $region38: #{lstm_autoencoder_forward.3} parent=1 // pred_check
      _
    $region39: #{lstm_autoencoder_forward.3} parent=1 // pred_check_branch
      %1326 = sbr.rel (0) target = $region41
    $region40: #{lstm_autoencoder_forward.3} parent=1 // pred_region
      %1327 = dma.done [#allocation3], 384
    $region41: #{lstm_autoencoder_forward.3} parent=1 // pred_fallthru
      _
    // Predicated region
    $region42: #{lstm_autoencoder_forward.3} parent=1 // pred_check
      _
    $region43: #{lstm_autoencoder_forward.3} parent=1 // pred_check_branch
      %1329 = sbr.rel (0) target = $region45
    $region44: #{lstm_autoencoder_forward.3} parent=1 // pred_region
      %1330 = dma.done [#allocation5], 128
    $region45: #{lstm_autoencoder_forward.3} parent=1 // pred_fallthru
      _
    %1331 = vsyncpa [#allocation3], 1
    %1332 = vsyncpa [#allocation5], 1

// kernel: lstm_autoencoder_forward.2
$region0: #{lstm_autoencoder_forward.2}
  #allocation0 [shape = 'u32[]', space=smem, size = 0x4, offset = 0x4, fixed_abs, tag = 'smem constant byte address 0x4 - core index']
  #allocation1 [shape = 'u32[144,128]{1,0:T(1,128)}', space=vmem, size = 0x12000, scoped, tag = 'internal scratch']
  #allocation2 [shape = 'f32[8,8,1024]{2,1,0:T(8,128)}', space=vmem, size = 0x40000, scoped, tag = 'scratch operand']
  %s0 = inlined_call_operand.vmem [shape: f32[8,8,384], index: 0, kind: input, shape index: {}]
  %s1 = inlined_call_operand.hbm [shape: bf16[2,384,1024], index: 1, kind: input, shape index: {}]
  %s2 = inlined_call_operand.hbm [shape: f32[2,1,1024], index: 2, kind: input, shape index: {}]
  %s3 = inlined_call_operand.hbm [shape: bf16[2,256,1024], index: 3, kind: input, shape index: {}]
  %s4 = inlined_call_operand.vmem [shape: f32[2,8,512], index: 4, kind: output, shape index: {}]
  %s5 = sld [smem:[#allocation0]]
  $region61: #{lstm_autoencoder_forward.2} parent=0
    _
  %s7 = ssub.s32 1, %s5
  %s8 = scalar_select 0, %s7, %s5
  $region1: #{lstm_autoencoder_forward.2} parent=0
    #allocation3 [shape = 'u8[1572864]{0}', space=vmem, size = 0x180000, scoped, tag = 'input window, operand 1']
    #allocation4 [shape = 's32[2]{0}', space=sflag, size = 0x8, scoped, tag = 'scoped memory for lstm_autoencoder_forward.2']
    #allocation5 [shape = 'u8[8192]{0}', space=vmem, size = 0x2000, scoped, tag = 'input window, operand 2']
    #allocation6 [shape = 's32[2]{0}', space=sflag, size = 0x8, scoped, tag = 'scoped memory for lstm_autoencoder_forward.2']
    #allocation7 [shape = 'u8[1048576]{0}', space=vmem, size = 0x100000, scoped, tag = 'input window, operand 3']
    %9 = vsyncpa [#allocation4], 0
    %s10 = scalar_lea.sflag [#allocation4], 1
    %11 = vsyncpa %s10, 0
    %12 = vsyncpa [#allocation6], 0
    %s13 = scalar_lea.sflag [#allocation6], 1
    %14 = vsyncpa %s13, 0
    loop: start=0, step=1, limit=4
    $region2: #{lstm_autoencoder_forward.2} parent=1 // loop_pre_header
      _
    $region3: #{lstm_autoencoder_forward.2} parent=1 // loop_header
      %s16 = sphi 0, %s20
      %p17 = scmp.ge.s32.totalorder %s16, 4
      %s24 = sphi 0, %s24
      %s26 = sphi 0, %s24
      %s27 = sphi 0, %s26
      %s41 = sphi 0, %s27
      %s47 = sphi 0, %s49
      %s50 = sphi 0, %s47
      %s51 = sphi 0, %s50
      %s67 = sphi 0, %s51
      %s73 = sphi 0, %s75
      %s76 = sphi 0, %s73
      %s77 = sphi 0, %s76
      %s93 = sphi 0, %s77
      %s99 = sphi 0, %s101
      %s102 = sphi 0, %s99
      %s103 = sphi 0, %s102
      %s119 = sphi 0, %s103
      %s125 = sphi 0, %s127
      %s128 = sphi 0, %s125
      %s129 = sphi 0, %s128
      %s145 = sphi 0, %s129
    $region4: #{lstm_autoencoder_forward.2} parent=1 // loop_header_branch
      %19 = sbr.rel (%p17) target = $region8
    $region5: #{lstm_autoencoder_forward.2} parent=1 // loop_body
      %s21 = ssub.s32 %s16, 1
      %s22 = ssub.s32 %s16, 2
      %s23 = sadd.s32 %s16, 1
      %s25 = sadd.s32 %s24, 1
      %p28 = scmp.eq.s32.totalorder %s16, 1
      %p29 = scmp.ne.s32.totalorder %s24, %s26
      %p30 = scmp.eq.s32.totalorder %s16, 0
      %p31 = por %p29, %p30
      %p32 = scmp.ne.s32.totalorder %s24, %s26
      %p33 = scmp.eq.s32.totalorder %s21, 1
      %p34 = por %p32, %p33
      %p35 = scmp.ne.s32.totalorder %s26, %s27
      %p36 = scmp.eq.s32.totalorder %s21, 0
      %p37 = por %p35, %p36
      %p38 = scmp.ne.s32.totalorder %s26, %s27
      %p39 = scmp.eq.s32.totalorder %s22, 1
      %p40 = por %p38, %p39
      %p42 = scmp.ne.s32.totalorder %s27, %s41
      %p43 = scmp.eq.s32.totalorder %s22, 0
      %p44 = por %p42, %p43
      %s45 = ssub.s32 %s16, %s23
      %p46 = scmp.eq.s32.totalorder %s45, 0
      %s48 = sadd.s32 %s47, 1
      %s49 = scalar_select %p46, %s47, %s48
      %p52 = pneg %p46
      %p53 = scmp.eq.s32.totalorder %s16, 1
      %p54 = por %p52, %p53
      %p55 = scmp.ne.s32.totalorder %s47, %s50
      %p56 = scmp.eq.s32.totalorder %s16, 0
      %p57 = por %p55, %p56
      %p58 = scmp.ne.s32.totalorder %s47, %s50
      %p59 = scmp.eq.s32.totalorder %s21, 1
      %p60 = por %p58, %p59
      %p61 = scmp.ne.s32.totalorder %s50, %s51
      %p62 = scmp.eq.s32.totalorder %s21, 0
      %p63 = por %p61, %p62
      %p64 = scmp.ne.s32.totalorder %s50, %s51
      %p65 = scmp.eq.s32.totalorder %s22, 1
      %p66 = por %p64, %p65
      %p68 = scmp.ne.s32.totalorder %s51, %s67
      %p69 = scmp.eq.s32.totalorder %s22, 0
      %p70 = por %p68, %p69
      %s71 = ssub.s32 %s16, %s23
      %p72 = scmp.eq.s32.totalorder %s71, 0
      %s74 = sadd.s32 %s73, 1
      %s75 = scalar_select %p72, %s73, %s74
      %p78 = pneg %p72
      %p79 = scmp.eq.s32.totalorder %s16, 1
      %p80 = por %p78, %p79
      %p81 = scmp.ne.s32.totalorder %s73, %s76
      %p82 = scmp.eq.s32.totalorder %s16, 0
      %p83 = por %p81, %p82
      %p84 = scmp.ne.s32.totalorder %s73, %s76
      %p85 = scmp.eq.s32.totalorder %s21, 1
      %p86 = por %p84, %p85
      %p87 = scmp.ne.s32.totalorder %s76, %s77
      %p88 = scmp.eq.s32.totalorder %s21, 0
      %p89 = por %p87, %p88
      %p90 = scmp.ne.s32.totalorder %s76, %s77
      %p91 = scmp.eq.s32.totalorder %s22, 1
      %p92 = por %p90, %p91
      %p94 = scmp.ne.s32.totalorder %s77, %s93
      %p95 = scmp.eq.s32.totalorder %s22, 0
      %p96 = por %p94, %p95
      %s97 = ssub.s32 %s16, %s23
      %p98 = scmp.eq.s32.totalorder %s97, 0
      %s100 = sadd.s32 %s99, 1
      %s101 = scalar_select %p98, %s99, %s100
      %p104 = pneg %p98
      %p105 = scmp.eq.s32.totalorder %s16, 1
      %p106 = por %p104, %p105
      %p107 = scmp.ne.s32.totalorder %s99, %s102
      %p108 = scmp.eq.s32.totalorder %s16, 0
      %p109 = por %p107, %p108
      %p110 = scmp.ne.s32.totalorder %s99, %s102
      %p111 = scmp.eq.s32.totalorder %s21, 1
      %p112 = por %p110, %p111
      %p113 = scmp.ne.s32.totalorder %s102, %s103
      %p114 = scmp.eq.s32.totalorder %s21, 0
      %p115 = por %p113, %p114
      %p116 = scmp.ne.s32.totalorder %s102, %s103
      %p117 = scmp.eq.s32.totalorder %s22, 1
      %p118 = por %p116, %p117
      %p120 = scmp.ne.s32.totalorder %s103, %s119
      %p121 = scmp.eq.s32.totalorder %s22, 0
      %p122 = por %p120, %p121
      %s123 = ssub.s32 %s16, %s23
      %p124 = scmp.eq.s32.totalorder %s123, 0
      %s126 = sadd.s32 %s125, 1
      %s127 = scalar_select %p124, %s125, %s126
      %p130 = pneg %p124
      %p131 = scmp.eq.s32.totalorder %s16, 1
      %p132 = por %p130, %p131
      %p133 = scmp.ne.s32.totalorder %s125, %s128
      %p134 = scmp.eq.s32.totalorder %s16, 0
      %p135 = por %p133, %p134
      %p136 = scmp.ne.s32.totalorder %s125, %s128
      %p137 = scmp.eq.s32.totalorder %s21, 1
      %p138 = por %p136, %p137
      %p139 = scmp.ne.s32.totalorder %s128, %s129
      %p140 = scmp.eq.s32.totalorder %s21, 0
      %p141 = por %p139, %p140
      %p142 = scmp.ne.s32.totalorder %s128, %s129
      %p143 = scmp.eq.s32.totalorder %s22, 1
      %p144 = por %p142, %p143
      %p146 = scmp.ne.s32.totalorder %s129, %s145
      %p147 = scmp.eq.s32.totalorder %s22, 0
      %p148 = por %p146, %p147
      %p149 = scmp.le.s32.totalorder 1, %s16
      %p150 = scmp.lt.s32.totalorder %s16, 3
      %p151 = pnand %p149, %p150
      %p152 = pneg %p151
      // Predicated region
      $region9: #{lstm_autoencoder_forward.2} parent=5 // pred_check
        _
      $region10: #{lstm_autoencoder_forward.2} parent=5 // pred_check_branch
        %154 = sbr.rel (%p151) target = $region12
      $region11: #{lstm_autoencoder_forward.2} parent=5 // pred_region
        %s155 = ssub.s32 %s16, 1
        // Predicated region
        $region13: #{lstm_autoencoder_forward.2} parent=11 // pred_check
          %p156 = pneg %p37
        $region14: #{lstm_autoencoder_forward.2} parent=11 // pred_check_branch
          %158 = sbr.rel (%p156) target = $region16
        $region15: #{lstm_autoencoder_forward.2} parent=11 // pred_region
          _
        $region16: #{lstm_autoencoder_forward.2} parent=11 // pred_fallthru
          _
      $region12: #{lstm_autoencoder_forward.2} parent=5 // pred_fallthru
        _
      %p159 = scmp.lt.s32.totalorder %s16, 2
      // Predicated region
      $region17: #{lstm_autoencoder_forward.2} parent=5 // pred_check
        %p160 = pneg %p159
      $region18: #{lstm_autoencoder_forward.2} parent=5 // pred_check_branch
        %162 = sbr.rel (%p160) target = $region20
      $region19: #{lstm_autoencoder_forward.2} parent=5 // pred_region
        // Predicated region
        $region21: #{lstm_autoencoder_forward.2} parent=19 // pred_check
          %p163 = pneg %p57
        $region22: #{lstm_autoencoder_forward.2} parent=19 // pred_check_branch
          %165 = sbr.rel (%p163) target = $region24
        $region23: #{lstm_autoencoder_forward.2} parent=19 // pred_region
          %s166 = sand.u32 %s47, 1
          %s167 = scalar_lea.sflag [#allocation4], %s166
          %s168 = sand.u32 %s47, 1
          %s169 = smul.addr %s168, 1536
          %s170 = scalar_lea.vmem [#allocation3], %s169
          %s172 = ssub.s32 24576, 24576
          %173 = vsyncadd %s167, %s172
          %s174 = smul.addr %s16, 384
          %s175 = smul.addr %s174, 64
          %s176 = scalar_lea.hbm %s1, %s175
          %s177 = sshll.u32 %s170, 4
          %s178 = int_to_ptr.vmem [resolvable:$true] %s177
          %183 = dma.hbm_to_vmem [thread:$0]  %s176, 24576, %s178, %s167, 512, 512, 32
        $region24: #{lstm_autoencoder_forward.2} parent=19 // pred_fallthru
          _
        // Predicated region
        $region25: #{lstm_autoencoder_forward.2} parent=19 // pred_check
          %p184 = pneg %p83
        $region26: #{lstm_autoencoder_forward.2} parent=19 // pred_check_branch
          %186 = sbr.rel (%p184) target = $region28
        $region27: #{lstm_autoencoder_forward.2} parent=19 // pred_region
          %s187 = sand.u32 %s16, 1
          %s188 = scalar_lea.sflag [#allocation6], %s187
          %s189 = sand.u32 %s73, 1
          %s190 = smul.addr %s189, 8
          %s191 = scalar_lea.vmem [#allocation5], %s190
          %s193 = ssub.s32 128, 128
          %194 = vsyncadd %s188, %s193
          %s195 = smul.addr %s16, 8
          %s196 = smul.addr %s195, 16
          %s197 = scalar_lea.hbm %s2, %s196
          %s199 = sshll.u32 %s191, 4
          %s200 = int_to_ptr.vmem [resolvable:$true] %s199
          %202 = dma.hbm_to_vmem [thread:$0]  %s197, 128, %s200, %s188
        $region28: #{lstm_autoencoder_forward.2} parent=19 // pred_fallthru
          _
        // Predicated region
        $region29: #{lstm_autoencoder_forward.2} parent=19 // pred_check
          %p203 = pneg %p109
        $region30: #{lstm_autoencoder_forward.2} parent=19 // pred_check_branch
          %205 = sbr.rel (%p203) target = $region32
        $region31: #{lstm_autoencoder_forward.2} parent=19 // pred_region
          %s206 = sand.u32 %s16, 1
          %s207 = scalar_lea.sflag [#allocation6], %s206
          %s208 = sand.u32 %s99, 1
          %s209 = smul.addr %s208, 1024
          %s210 = scalar_lea.vmem [#allocation7], %s209
          %s212 = ssub.s32 16384, 16384
          %213 = vsyncadd %s207, %s212
          %s214 = smul.addr %s16, 256
          %s215 = smul.addr %s214, 64
          %s216 = scalar_lea.hbm %s3, %s215
          %s217 = sshll.u32 %s210, 4
          %s218 = int_to_ptr.vmem [resolvable:$true] %s217
          %223 = dma.hbm_to_vmem [thread:$0]  %s216, 16384, %s218, %s207, 512, 512, 32
        $region32: #{lstm_autoencoder_forward.2} parent=19 // pred_fallthru
          _
      $region20: #{lstm_autoencoder_forward.2} parent=5 // pred_fallthru
        _
      %p224 = scmp.le.s32.totalorder 1, %s16
      %p225 = scmp.lt.s32.totalorder %s16, 3
      %p226 = pnand %p224, %p225
      %p227 = pneg %p226
      // Predicated region
      $region33: #{lstm_autoencoder_forward.2} parent=5 // pred_check
        _
      $region34: #{lstm_autoencoder_forward.2} parent=5 // pred_check_branch
        %229 = sbr.rel (%p226) target = $region36
      $region35: #{lstm_autoencoder_forward.2} parent=5 // pred_region
        %s230 = ssub.s32 %s16, 1
        %s231 = sand.u32 %s50, 1
        %s232 = scalar_lea.sflag [#allocation4], %s231
        %s233 = sand.u32 %s50, 1
        %s234 = smul.addr %s233, 1536
        %s235 = scalar_lea.vmem [#allocation3], %s234
        // Predicated region
        $region37: #{lstm_autoencoder_forward.2} parent=35 // pred_check
          %p236 = pneg %p63
        $region38: #{lstm_autoencoder_forward.2} parent=35 // pred_check_branch
          %238 = sbr.rel (%p236) target = $region40
        $region39: #{lstm_autoencoder_forward.2} parent=35 // pred_region
          %239 = dma.done %s232, 24576
        $region40: #{lstm_autoencoder_forward.2} parent=35 // pred_fallthru
          _
        %s240 = sand.u32 %s21, 1
        %s241 = scalar_lea.sflag [#allocation6], %s240
        %s242 = sand.u32 %s76, 1
        %s243 = smul.addr %s242, 8
        %s244 = scalar_lea.vmem [#allocation5], %s243
        // Predicated region
        $region41: #{lstm_autoencoder_forward.2} parent=35 // pred_check
          %p245 = pneg %p89
        $region42: #{lstm_autoencoder_forward.2} parent=35 // pred_check_branch
          %247 = sbr.rel (%p245) target = $region44
        $region43: #{lstm_autoencoder_forward.2} parent=35 // pred_region
          %248 = dma.done %s241, 128
        $region44: #{lstm_autoencoder_forward.2} parent=35 // pred_fallthru
          _
        %s249 = sand.u32 %s21, 1
        %s250 = scalar_lea.sflag [#allocation6], %s249
        %s251 = sand.u32 %s102, 1
        %s252 = smul.addr %s251, 1024
        %s253 = scalar_lea.vmem [#allocation7], %s252
        // Predicated region
        $region45: #{lstm_autoencoder_forward.2} parent=35 // pred_check
          %p254 = pneg %p115
        $region46: #{lstm_autoencoder_forward.2} parent=35 // pred_check_branch
          %256 = sbr.rel (%p254) target = $region48
        $region47: #{lstm_autoencoder_forward.2} parent=35 // pred_region
          %257 = dma.done %s250, 16384
        $region48: #{lstm_autoencoder_forward.2} parent=35 // pred_fallthru
          _
        %p258 = pneg %p37
        %p259 = pneg %p34
        %s260 = sand.u32 %s50, 1
        %s261 = scalar_lea.sflag [#allocation4], %s260
        %s262 = sand.u32 %s50, 1
        %s263 = smul.addr %s262, 1536
        %s264 = scalar_lea.vmem [#allocation3], %s263
        %p265 = pneg %p63
        %p266 = pneg %p60
        %s267 = sand.u32 %s21, 1
        %s268 = scalar_lea.sflag [#allocation6], %s267
        %s269 = sand.u32 %s76, 1
        %s270 = smul.addr %s269, 8
        %s271 = scalar_lea.vmem [#allocation5], %s270
        %p272 = pneg %p89
        %p273 = pneg %p86
        %s274 = sand.u32 %s21, 1
        %s275 = scalar_lea.sflag [#allocation6], %s274
        %s276 = sand.u32 %s102, 1
        %s277 = smul.addr %s276, 1024
        %s278 = scalar_lea.vmem [#allocation7], %s277
        %p279 = pneg %p115
        %p280 = pneg %p112
        %p281 = pneg %p141
        %p282 = pneg %p138
        %p283 = scmp.lt.s32.totalorder %s21, 1
        %s284 = scalar_select %p283, %s21, 1
        %s285 = smul.addr %s284, 4
        %s286 = smul.addr %s285, 8
        %s287 = scalar_lea.vmem %s4, %s286
        %p288 = scmp.lt.s32.totalorder %s21, 1
        %s289 = scalar_select %p288, %s21, 1
        %s290 = smul.addr %s289, 4
        %s291 = smul.addr %s290, 8
        %s292 = scalar_lea.vmem %s4, %s291
        %v294 = vld [vmem:[%s0] sm:$0xff]
        %v295 = vld [vmem:[%s0 + $0x8] sm:$0xff]
        %v296 = vld [vmem:[%s0 + $0x10] sm:$0xff]
        %v297 = vld [vmem:[%s0 + $0x18] sm:$0xff]
        %v298 = vld [vmem:[%s0 + $0x20] sm:$0xff]
        %v299 = vld [vmem:[%s0 + $0x28] sm:$0xff]
        %v300 = vld [vmem:[%s0 + $0x30] sm:$0xff]
        %v301 = vld [vmem:[%s0 + $0x38] sm:$0xff]
        %v302 = vld [vmem:[%s0 + $0x40] sm:$0xff]
        %v303 = vld [vmem:[%s0 + $0x48] sm:$0xff]
        %v304 = vld [vmem:[%s0 + $0x50] sm:$0xff]
        %v305 = vld [vmem:[%s0 + $0x58] sm:$0xff]
        %v306 = vld [vmem:[%s0 + $0x60] sm:$0xff]
        %v307 = vld [vmem:[%s0 + $0x68] sm:$0xff]
        %v308 = vld [vmem:[%s0 + $0x70] sm:$0xff]
        %v309 = vld [vmem:[%s0 + $0x78] sm:$0xff]
        %v310 = vld [vmem:[%s0 + $0x80] sm:$0xff]
        %v311 = vld [vmem:[%s0 + $0x88] sm:$0xff]
        %v312 = vld [vmem:[%s0 + $0x90] sm:$0xff]
        %v313 = vld [vmem:[%s0 + $0x98] sm:$0xff]
        %v314 = vld [vmem:[%s0 + $0xa0] sm:$0xff]
        %v315 = vld [vmem:[%s0 + $0xa8] sm:$0xff]
        %v316 = vld [vmem:[%s0 + $0xb0] sm:$0xff]
        %v317 = vld [vmem:[%s0 + $0xb8] sm:$0xff]
        %v318 = vpack.c.bf16 %v297, %v294
        %v319 = vpack.c.bf16 %v298, %v295
        %v320 = vpack.c.bf16 %v299, %v296
        %v321 = vpack.c.bf16 %v303, %v300
        %v322 = vpack.c.bf16 %v304, %v301
        %v323 = vpack.c.bf16 %v305, %v302
        %v324 = vpack.c.bf16 %v309, %v306
        %v325 = vpack.c.bf16 %v310, %v307
        %v326 = vpack.c.bf16 %v311, %v308
        %v327 = vpack.c.bf16 %v315, %v312
        %v328 = vpack.c.bf16 %v316, %v313
        %v329 = vpack.c.bf16 %v317, %v314
        %v330 = vld [vmem:[%s235] sm:$0xff]
        %v331 = vld [vmem:[%s235 + $0x8] sm:$0xff]
        %v332 = vld [vmem:[%s235 + $0x10] sm:$0xff]
        %v333 = vld [vmem:[%s235 + $0x18] sm:$0xff]
        %v334 = vld [vmem:[%s235 + $0x20] sm:$0xff]
        %v335 = vld [vmem:[%s235 + $0x28] sm:$0xff]
        %v336 = vld [vmem:[%s235 + $0x30] sm:$0xff]
        %v337 = vld [vmem:[%s235 + $0x38] sm:$0xff]
        %v338 = vld [vmem:[%s235 + $0x40] sm:$0xff]
        %v339 = vld [vmem:[%s235 + $0x48] sm:$0xff]
        %v340 = vld [vmem:[%s235 + $0x50] sm:$0xff]
        %v341 = vld [vmem:[%s235 + $0x58] sm:$0xff]
        %v342 = vld [vmem:[%s235 + $0x60] sm:$0xff]
        %v343 = vld [vmem:[%s235 + $0x68] sm:$0xff]
        %v344 = vld [vmem:[%s235 + $0x70] sm:$0xff]
        %v345 = vld [vmem:[%s235 + $0x78] sm:$0xff]
        %v346 = vld [vmem:[%s235 + $0x80] sm:$0xff]
        %v347 = vld [vmem:[%s235 + $0x88] sm:$0xff]
        %v348 = vld [vmem:[%s235 + $0x90] sm:$0xff]
        %v349 = vld [vmem:[%s235 + $0x98] sm:$0xff]
        %v350 = vld [vmem:[%s235 + $0xa0] sm:$0xff]
        %v351 = vld [vmem:[%s235 + $0xa8] sm:$0xff]
        %v352 = vld [vmem:[%s235 + $0xb0] sm:$0xff]
        %v353 = vld [vmem:[%s235 + $0xb8] sm:$0xff]
        %v354 = vld [vmem:[%s235 + $0xc0] sm:$0xff]
        %v355 = vld [vmem:[%s235 + $0xc8] sm:$0xff]
        %v356 = vld [vmem:[%s235 + $0xd0] sm:$0xff]
        %v357 = vld [vmem:[%s235 + $0xd8] sm:$0xff]
        %v358 = vld [vmem:[%s235 + $0xe0] sm:$0xff]
        %v359 = vld [vmem:[%s235 + $0xe8] sm:$0xff]
        %v360 = vld [vmem:[%s235 + $0xf0] sm:$0xff]
        %v361 = vld [vmem:[%s235 + $0xf8] sm:$0xff]
        %v362 = vld [vmem:[%s235 + $0x100] sm:$0xff]
        %v363 = vld [vmem:[%s235 + $0x108] sm:$0xff]
        %v364 = vld [vmem:[%s235 + $0x110] sm:$0xff]
        %v365 = vld [vmem:[%s235 + $0x118] sm:$0xff]
        %v366 = vld [vmem:[%s235 + $0x120] sm:$0xff]
        %v367 = vld [vmem:[%s235 + $0x128] sm:$0xff]
        %v368 = vld [vmem:[%s235 + $0x130] sm:$0xff]
        %v369 = vld [vmem:[%s235 + $0x138] sm:$0xff]
        %v370 = vld [vmem:[%s235 + $0x140] sm:$0xff]
        %v371 = vld [vmem:[%s235 + $0x148] sm:$0xff]
        %v372 = vld [vmem:[%s235 + $0x150] sm:$0xff]
        %v373 = vld [vmem:[%s235 + $0x158] sm:$0xff]
        %v374 = vld [vmem:[%s235 + $0x160] sm:$0xff]
        %v375 = vld [vmem:[%s235 + $0x168] sm:$0xff]
        %v376 = vld [vmem:[%s235 + $0x170] sm:$0xff]
        %v377 = vld [vmem:[%s235 + $0x178] sm:$0xff]
        %v378 = vld [vmem:[%s235 + $0x180] sm:$0xff]
        %v379 = vld [vmem:[%s235 + $0x188] sm:$0xff]
        %v380 = vld [vmem:[%s235 + $0x190] sm:$0xff]
        %v381 = vld [vmem:[%s235 + $0x198] sm:$0xff]
        %v382 = vld [vmem:[%s235 + $0x1a0] sm:$0xff]
        %v383 = vld [vmem:[%s235 + $0x1a8] sm:$0xff]
        %v384 = vld [vmem:[%s235 + $0x1b0] sm:$0xff]
        %v385 = vld [vmem:[%s235 + $0x1b8] sm:$0xff]
        %v386 = vld [vmem:[%s235 + $0x1c0] sm:$0xff]
        %v387 = vld [vmem:[%s235 + $0x1c8] sm:$0xff]
        %v388 = vld [vmem:[%s235 + $0x1d0] sm:$0xff]
        %v389 = vld [vmem:[%s235 + $0x1d8] sm:$0xff]
        %v390 = vld [vmem:[%s235 + $0x1e0] sm:$0xff]
        %v391 = vld [vmem:[%s235 + $0x1e8] sm:$0xff]
        %v392 = vld [vmem:[%s235 + $0x1f0] sm:$0xff]
        %v393 = vld [vmem:[%s235 + $0x1f8] sm:$0xff]
        %v394 = vld [vmem:[%s235 + $0x200] sm:$0xff]
        %v395 = vld [vmem:[%s235 + $0x208] sm:$0xff]
        %v396 = vld [vmem:[%s235 + $0x210] sm:$0xff]
        %v397 = vld [vmem:[%s235 + $0x218] sm:$0xff]
        %v398 = vld [vmem:[%s235 + $0x220] sm:$0xff]
        %v399 = vld [vmem:[%s235 + $0x228] sm:$0xff]
        %v400 = vld [vmem:[%s235 + $0x230] sm:$0xff]
        %v401 = vld [vmem:[%s235 + $0x238] sm:$0xff]
        %v402 = vld [vmem:[%s235 + $0x240] sm:$0xff]
        %v403 = vld [vmem:[%s235 + $0x248] sm:$0xff]
        %v404 = vld [vmem:[%s235 + $0x250] sm:$0xff]
        %v405 = vld [vmem:[%s235 + $0x258] sm:$0xff]
        %v406 = vld [vmem:[%s235 + $0x260] sm:$0xff]
        %v407 = vld [vmem:[%s235 + $0x268] sm:$0xff]
        %v408 = vld [vmem:[%s235 + $0x270] sm:$0xff]
        %v409 = vld [vmem:[%s235 + $0x278] sm:$0xff]
        %v410 = vld [vmem:[%s235 + $0x280] sm:$0xff]
        %v411 = vld [vmem:[%s235 + $0x288] sm:$0xff]
        %v412 = vld [vmem:[%s235 + $0x290] sm:$0xff]
        %v413 = vld [vmem:[%s235 + $0x298] sm:$0xff]
        %v414 = vld [vmem:[%s235 + $0x2a0] sm:$0xff]
        %v415 = vld [vmem:[%s235 + $0x2a8] sm:$0xff]
        %v416 = vld [vmem:[%s235 + $0x2b0] sm:$0xff]
        %v417 = vld [vmem:[%s235 + $0x2b8] sm:$0xff]
        %v418 = vld [vmem:[%s235 + $0x2c0] sm:$0xff]
        %v419 = vld [vmem:[%s235 + $0x2c8] sm:$0xff]
        %v420 = vld [vmem:[%s235 + $0x2d0] sm:$0xff]
        %v421 = vld [vmem:[%s235 + $0x2d8] sm:$0xff]
        %v422 = vld [vmem:[%s235 + $0x2e0] sm:$0xff]
        %v423 = vld [vmem:[%s235 + $0x2e8] sm:$0xff]
        %v424 = vld [vmem:[%s235 + $0x2f0] sm:$0xff]
        %v425 = vld [vmem:[%s235 + $0x2f8] sm:$0xff]
        %v426 = vld [vmem:[%s235 + $0x300] sm:$0xff]
        %v427 = vld [vmem:[%s235 + $0x308] sm:$0xff]
        %v428 = vld [vmem:[%s235 + $0x310] sm:$0xff]
        %v429 = vld [vmem:[%s235 + $0x318] sm:$0xff]
        %v430 = vld [vmem:[%s235 + $0x320] sm:$0xff]
        %v431 = vld [vmem:[%s235 + $0x328] sm:$0xff]
        %v432 = vld [vmem:[%s235 + $0x330] sm:$0xff]
        %v433 = vld [vmem:[%s235 + $0x338] sm:$0xff]
        %v434 = vld [vmem:[%s235 + $0x340] sm:$0xff]
        %v435 = vld [vmem:[%s235 + $0x348] sm:$0xff]
        %v436 = vld [vmem:[%s235 + $0x350] sm:$0xff]
        %v437 = vld [vmem:[%s235 + $0x358] sm:$0xff]
        %v438 = vld [vmem:[%s235 + $0x360] sm:$0xff]
        %v439 = vld [vmem:[%s235 + $0x368] sm:$0xff]
        %v440 = vld [vmem:[%s235 + $0x370] sm:$0xff]
        %v441 = vld [vmem:[%s235 + $0x378] sm:$0xff]
        %v442 = vld [vmem:[%s235 + $0x380] sm:$0xff]
        %v443 = vld [vmem:[%s235 + $0x388] sm:$0xff]
        %v444 = vld [vmem:[%s235 + $0x390] sm:$0xff]
        %v445 = vld [vmem:[%s235 + $0x398] sm:$0xff]
        %v446 = vld [vmem:[%s235 + $0x3a0] sm:$0xff]
        %v447 = vld [vmem:[%s235 + $0x3a8] sm:$0xff]
        %v448 = vld [vmem:[%s235 + $0x3b0] sm:$0xff]
        %v449 = vld [vmem:[%s235 + $0x3b8] sm:$0xff]
        %v450 = vld [vmem:[%s235 + $0x3c0] sm:$0xff]
        %v451 = vld [vmem:[%s235 + $0x3c8] sm:$0xff]
        %v452 = vld [vmem:[%s235 + $0x3d0] sm:$0xff]
        %v453 = vld [vmem:[%s235 + $0x3d8] sm:$0xff]
        %v454 = vld [vmem:[%s235 + $0x3e0] sm:$0xff]
        %v455 = vld [vmem:[%s235 + $0x3e8] sm:$0xff]
        %v456 = vld [vmem:[%s235 + $0x3f0] sm:$0xff]
        %v457 = vld [vmem:[%s235 + $0x3f8] sm:$0xff]
        %v458 = vld [vmem:[%s235 + $0x400] sm:$0xff]
        %v459 = vld [vmem:[%s235 + $0x408] sm:$0xff]
        %v460 = vld [vmem:[%s235 + $0x410] sm:$0xff]
        %v461 = vld [vmem:[%s235 + $0x418] sm:$0xff]
        %v462 = vld [vmem:[%s235 + $0x420] sm:$0xff]
        %v463 = vld [vmem:[%s235 + $0x428] sm:$0xff]
        %v464 = vld [vmem:[%s235 + $0x430] sm:$0xff]
        %v465 = vld [vmem:[%s235 + $0x438] sm:$0xff]
        %v466 = vld [vmem:[%s235 + $0x440] sm:$0xff]
        %v467 = vld [vmem:[%s235 + $0x448] sm:$0xff]
        %v468 = vld [vmem:[%s235 + $0x450] sm:$0xff]
        %v469 = vld [vmem:[%s235 + $0x458] sm:$0xff]
        %v470 = vld [vmem:[%s235 + $0x460] sm:$0xff]
        %v471 = vld [vmem:[%s235 + $0x468] sm:$0xff]
        %v472 = vld [vmem:[%s235 + $0x470] sm:$0xff]
        %v473 = vld [vmem:[%s235 + $0x478] sm:$0xff]
        %v474 = vld [vmem:[%s235 + $0x480] sm:$0xff]
        %v475 = vld [vmem:[%s235 + $0x488] sm:$0xff]
        %v476 = vld [vmem:[%s235 + $0x490] sm:$0xff]
        %v477 = vld [vmem:[%s235 + $0x498] sm:$0xff]
        %v478 = vld [vmem:[%s235 + $0x4a0] sm:$0xff]
        %v479 = vld [vmem:[%s235 + $0x4a8] sm:$0xff]
        %v480 = vld [vmem:[%s235 + $0x4b0] sm:$0xff]
        %v481 = vld [vmem:[%s235 + $0x4b8] sm:$0xff]
        %v482 = vld [vmem:[%s235 + $0x4c0] sm:$0xff]
        %v483 = vld [vmem:[%s235 + $0x4c8] sm:$0xff]
        %v484 = vld [vmem:[%s235 + $0x4d0] sm:$0xff]
        %v485 = vld [vmem:[%s235 + $0x4d8] sm:$0xff]
        %v486 = vld [vmem:[%s235 + $0x4e0] sm:$0xff]
        %v487 = vld [vmem:[%s235 + $0x4e8] sm:$0xff]
        %v488 = vld [vmem:[%s235 + $0x4f0] sm:$0xff]
        %v489 = vld [vmem:[%s235 + $0x4f8] sm:$0xff]
        %v490 = vld [vmem:[%s235 + $0x500] sm:$0xff]
        %v491 = vld [vmem:[%s235 + $0x508] sm:$0xff]
        %v492 = vld [vmem:[%s235 + $0x510] sm:$0xff]
        %v493 = vld [vmem:[%s235 + $0x518] sm:$0xff]
        %v494 = vld [vmem:[%s235 + $0x520] sm:$0xff]
        %v495 = vld [vmem:[%s235 + $0x528] sm:$0xff]
        %v496 = vld [vmem:[%s235 + $0x530] sm:$0xff]
        %v497 = vld [vmem:[%s235 + $0x538] sm:$0xff]
        %v498 = vld [vmem:[%s235 + $0x540] sm:$0xff]
        %v499 = vld [vmem:[%s235 + $0x548] sm:$0xff]
        %v500 = vld [vmem:[%s235 + $0x550] sm:$0xff]
        %v501 = vld [vmem:[%s235 + $0x558] sm:$0xff]
        %v502 = vld [vmem:[%s235 + $0x560] sm:$0xff]
        %v503 = vld [vmem:[%s235 + $0x568] sm:$0xff]
        %v504 = vld [vmem:[%s235 + $0x570] sm:$0xff]
        %v505 = vld [vmem:[%s235 + $0x578] sm:$0xff]
        %v506 = vld [vmem:[%s235 + $0x580] sm:$0xff]
        %v507 = vld [vmem:[%s235 + $0x588] sm:$0xff]
        %v508 = vld [vmem:[%s235 + $0x590] sm:$0xff]
        %v509 = vld [vmem:[%s235 + $0x598] sm:$0xff]
        %v510 = vld [vmem:[%s235 + $0x5a0] sm:$0xff]
        %v511 = vld [vmem:[%s235 + $0x5a8] sm:$0xff]
        %v512 = vld [vmem:[%s235 + $0x5b0] sm:$0xff]
        %v513 = vld [vmem:[%s235 + $0x5b8] sm:$0xff]
        %v514 = vld [vmem:[%s235 + $0x5c0] sm:$0xff]
        %v515 = vld [vmem:[%s235 + $0x5c8] sm:$0xff]
        %v516 = vld [vmem:[%s235 + $0x5d0] sm:$0xff]
        %v517 = vld [vmem:[%s235 + $0x5d8] sm:$0xff]
        %v518 = vld [vmem:[%s235 + $0x5e0] sm:$0xff]
        %v519 = vld [vmem:[%s235 + $0x5e8] sm:$0xff]
        %v520 = vld [vmem:[%s235 + $0x5f0] sm:$0xff]
        %v521 = vld [vmem:[%s235 + $0x5f8] sm:$0xff]
        %v522 = vld [vmem:[%s244] sm:$0xff]
        %v524 = vlaneseq
        %v525 = vshrl.u32 %v524, 7
        %v526 = vsub.s32 0, %v525
        %v527 = vrot.slane %v522, %v526
        %v528 = vlaneseq
        %v529 = vshrl.u32 %v528, 7
        %v530 = vsub.s32 1, %v529
        %v531 = vrot.slane %v522, %v530
        %v532 = vlaneseq
        %v533 = vshrl.u32 %v532, 7
        %v534 = vsub.s32 2, %v533
        %v535 = vrot.slane %v522, %v534
        %v536 = vlaneseq
        %v537 = vshrl.u32 %v536, 7
        %v538 = vsub.s32 3, %v537
        %v539 = vrot.slane %v522, %v538
        %v540 = vlaneseq
        %v541 = vshrl.u32 %v540, 7
        %v542 = vsub.s32 4, %v541
        %v543 = vrot.slane %v522, %v542
        %v544 = vlaneseq
        %v545 = vshrl.u32 %v544, 7
        %v546 = vsub.s32 5, %v545
        %v547 = vrot.slane %v522, %v546
        %v548 = vlaneseq
        %v549 = vshrl.u32 %v548, 7
        %v550 = vsub.s32 6, %v549
        %v551 = vrot.slane %v522, %v550
        %v552 = vlaneseq
        %v553 = vshrl.u32 %v552, 7
        %v554 = vsub.s32 7, %v553
        %v555 = vrot.slane %v522, %v554
        %v756 = vunpack.c.l.b16 %v330
        %v757 = vunpack.c.h.b16 %v330
        %v758 = vunpack.c.l.b16 %v331
        %v759 = vunpack.c.h.b16 %v331
        %v760 = vunpack.c.l.b16 %v332
        %v761 = vunpack.c.h.b16 %v332
        %v762 = vunpack.c.l.b16 %v333
        %v763 = vunpack.c.h.b16 %v333
        %v764 = vunpack.c.l.b16 %v334
        %v765 = vunpack.c.h.b16 %v334
        %v766 = vunpack.c.l.b16 %v335
        %v767 = vunpack.c.h.b16 %v335
        %v768 = vunpack.c.l.b16 %v336
        %v769 = vunpack.c.h.b16 %v336
        %v770 = vunpack.c.l.b16 %v337
        %v771 = vunpack.c.h.b16 %v337
        %v772 = vunpack.c.l.b16 %v338
        %v773 = vunpack.c.h.b16 %v338
        %v774 = vunpack.c.l.b16 %v339
        %v775 = vunpack.c.h.b16 %v339
        %v776 = vunpack.c.l.b16 %v340
        %v777 = vunpack.c.h.b16 %v340
        %v778 = vunpack.c.l.b16 %v341
        %v779 = vunpack.c.h.b16 %v341
        %v780 = vunpack.c.l.b16 %v342
        %v781 = vunpack.c.h.b16 %v342
        %v782 = vunpack.c.l.b16 %v343
        %v783 = vunpack.c.h.b16 %v343
        %v784 = vunpack.c.l.b16 %v344
        %v785 = vunpack.c.h.b16 %v344
        %v786 = vunpack.c.l.b16 %v345
        %v787 = vunpack.c.h.b16 %v345
        %v788 = vunpack.c.l.b16 %v346
        %v789 = vunpack.c.h.b16 %v346
        %v790 = vunpack.c.l.b16 %v347
        %v791 = vunpack.c.h.b16 %v347
        %v792 = vunpack.c.l.b16 %v348
        %v793 = vunpack.c.h.b16 %v348
        %v794 = vunpack.c.l.b16 %v349
        %v795 = vunpack.c.h.b16 %v349
        %v796 = vunpack.c.l.b16 %v350
        %v797 = vunpack.c.h.b16 %v350
        %v798 = vunpack.c.l.b16 %v351
        %v799 = vunpack.c.h.b16 %v351
        %v800 = vunpack.c.l.b16 %v352
        %v801 = vunpack.c.h.b16 %v352
        %v802 = vunpack.c.l.b16 %v353
        %v803 = vunpack.c.h.b16 %v353
        %v804 = vunpack.c.l.b16 %v354
        %v805 = vunpack.c.h.b16 %v354
        %v806 = vunpack.c.l.b16 %v355
        %v807 = vunpack.c.h.b16 %v355
        %v808 = vunpack.c.l.b16 %v356
        %v809 = vunpack.c.h.b16 %v356
        %v810 = vunpack.c.l.b16 %v357
        %v811 = vunpack.c.h.b16 %v357
        %v812 = vunpack.c.l.b16 %v358
        %v813 = vunpack.c.h.b16 %v358
        %v814 = vunpack.c.l.b16 %v359
        %v815 = vunpack.c.h.b16 %v359
        %v816 = vunpack.c.l.b16 %v360
        %v817 = vunpack.c.h.b16 %v360
        %v818 = vunpack.c.l.b16 %v361
        %v819 = vunpack.c.h.b16 %v361
        %v820 = vunpack.c.l.b16 %v362
        %v821 = vunpack.c.h.b16 %v362
        %v822 = vunpack.c.l.b16 %v363
        %v823 = vunpack.c.h.b16 %v363
        %v824 = vunpack.c.l.b16 %v364
        %v825 = vunpack.c.h.b16 %v364
        %v826 = vunpack.c.l.b16 %v365
        %v827 = vunpack.c.h.b16 %v365
        %v828 = vunpack.c.l.b16 %v366
        %v829 = vunpack.c.h.b16 %v366
        %v830 = vunpack.c.l.b16 %v367
        %v831 = vunpack.c.h.b16 %v367
        %v832 = vunpack.c.l.b16 %v368
        %v833 = vunpack.c.h.b16 %v368
        %v834 = vunpack.c.l.b16 %v369
        %v835 = vunpack.c.h.b16 %v369
        %v836 = vunpack.c.l.b16 %v370
        %v837 = vunpack.c.h.b16 %v370
        %v838 = vunpack.c.l.b16 %v371
        %v839 = vunpack.c.h.b16 %v371
        %v840 = vunpack.c.l.b16 %v372
        %v841 = vunpack.c.h.b16 %v372
        %v842 = vunpack.c.l.b16 %v373
        %v843 = vunpack.c.h.b16 %v373
        %v844 = vunpack.c.l.b16 %v374
        %v845 = vunpack.c.h.b16 %v374
        %v846 = vunpack.c.l.b16 %v375
        %v847 = vunpack.c.h.b16 %v375
        %v848 = vunpack.c.l.b16 %v376
        %v849 = vunpack.c.h.b16 %v376
        %v850 = vunpack.c.l.b16 %v377
        %v851 = vunpack.c.h.b16 %v377
        %v852 = vunpack.c.l.b16 %v378
        %v853 = vunpack.c.h.b16 %v378
        %v854 = vunpack.c.l.b16 %v379
        %v855 = vunpack.c.h.b16 %v379
        %v856 = vunpack.c.l.b16 %v380
        %v857 = vunpack.c.h.b16 %v380
        %v858 = vunpack.c.l.b16 %v381
        %v859 = vunpack.c.h.b16 %v381
        %v860 = vunpack.c.l.b16 %v382
        %v861 = vunpack.c.h.b16 %v382
        %v862 = vunpack.c.l.b16 %v383
        %v863 = vunpack.c.h.b16 %v383
        %v864 = vunpack.c.l.b16 %v384
        %v865 = vunpack.c.h.b16 %v384
        %v866 = vunpack.c.l.b16 %v385
        %v867 = vunpack.c.h.b16 %v385
        %v868 = vunpack.c.l.b16 %v386
        %v869 = vunpack.c.h.b16 %v386
        %v870 = vunpack.c.l.b16 %v387
        %v871 = vunpack.c.h.b16 %v387
        %v872 = vunpack.c.l.b16 %v388
        %v873 = vunpack.c.h.b16 %v388
        %v874 = vunpack.c.l.b16 %v389
        %v875 = vunpack.c.h.b16 %v389
        %v876 = vunpack.c.l.b16 %v390
        %v877 = vunpack.c.h.b16 %v390
        %v878 = vunpack.c.l.b16 %v391
        %v879 = vunpack.c.h.b16 %v391
        %v880 = vunpack.c.l.b16 %v392
        %v881 = vunpack.c.h.b16 %v392
        %v882 = vunpack.c.l.b16 %v393
        %v883 = vunpack.c.h.b16 %v393
        %v884 = vunpack.c.l.b16 %v394
        %v885 = vunpack.c.h.b16 %v394
        %v886 = vunpack.c.l.b16 %v395
        %v887 = vunpack.c.h.b16 %v395
        %v888 = vunpack.c.l.b16 %v396
        %v889 = vunpack.c.h.b16 %v396
        %v890 = vunpack.c.l.b16 %v397
        %v891 = vunpack.c.h.b16 %v397
        %v892 = vunpack.c.l.b16 %v398
        %v893 = vunpack.c.h.b16 %v398
        %v894 = vunpack.c.l.b16 %v399
        %v895 = vunpack.c.h.b16 %v399
        %v896 = vunpack.c.l.b16 %v400
        %v897 = vunpack.c.h.b16 %v400
        %v898 = vunpack.c.l.b16 %v401
        %v899 = vunpack.c.h.b16 %v401
        %v900 = vunpack.c.l.b16 %v402
        %v901 = vunpack.c.h.b16 %v402
        %v902 = vunpack.c.l.b16 %v403
        %v903 = vunpack.c.h.b16 %v403
        %v904 = vunpack.c.l.b16 %v404
        %v905 = vunpack.c.h.b16 %v404
        %v906 = vunpack.c.l.b16 %v405
        %v907 = vunpack.c.h.b16 %v405
        %v908 = vunpack.c.l.b16 %v406
        %v909 = vunpack.c.h.b16 %v406
        %v910 = vunpack.c.l.b16 %v407
        %v911 = vunpack.c.h.b16 %v407
        %v912 = vunpack.c.l.b16 %v408
        %v913 = vunpack.c.h.b16 %v408
        %v914 = vunpack.c.l.b16 %v409
        %v915 = vunpack.c.h.b16 %v409
        %v916 = vunpack.c.l.b16 %v410
        %v917 = vunpack.c.h.b16 %v410
        %v918 = vunpack.c.l.b16 %v411
        %v919 = vunpack.c.h.b16 %v411
        %v920 = vunpack.c.l.b16 %v412
        %v921 = vunpack.c.h.b16 %v412
        %v922 = vunpack.c.l.b16 %v413
        %v923 = vunpack.c.h.b16 %v413
        %v924 = vunpack.c.l.b16 %v414
        %v925 = vunpack.c.h.b16 %v414
        %v926 = vunpack.c.l.b16 %v415
        %v927 = vunpack.c.h.b16 %v415
        %v928 = vunpack.c.l.b16 %v416
        %v929 = vunpack.c.h.b16 %v416
        %v930 = vunpack.c.l.b16 %v417
        %v931 = vunpack.c.h.b16 %v417
        %v932 = vunpack.c.l.b16 %v418
        %v933 = vunpack.c.h.b16 %v418
        %v934 = vunpack.c.l.b16 %v419
        %v935 = vunpack.c.h.b16 %v419
        %v936 = vunpack.c.l.b16 %v420
        %v937 = vunpack.c.h.b16 %v420
        %v938 = vunpack.c.l.b16 %v421
        %v939 = vunpack.c.h.b16 %v421
        %v940 = vunpack.c.l.b16 %v422
        %v941 = vunpack.c.h.b16 %v422
        %v942 = vunpack.c.l.b16 %v423
        %v943 = vunpack.c.h.b16 %v423
        %v944 = vunpack.c.l.b16 %v424
        %v945 = vunpack.c.h.b16 %v424
        %v946 = vunpack.c.l.b16 %v425
        %v947 = vunpack.c.h.b16 %v425
        %v948 = vunpack.c.l.b16 %v426
        %v949 = vunpack.c.h.b16 %v426
        %v950 = vunpack.c.l.b16 %v427
        %v951 = vunpack.c.h.b16 %v427
        %v952 = vunpack.c.l.b16 %v428
        %v953 = vunpack.c.h.b16 %v428
        %v954 = vunpack.c.l.b16 %v429
        %v955 = vunpack.c.h.b16 %v429
        %v956 = vunpack.c.l.b16 %v430
        %v957 = vunpack.c.h.b16 %v430
        %v958 = vunpack.c.l.b16 %v431
        %v959 = vunpack.c.h.b16 %v431
        %v960 = vunpack.c.l.b16 %v432
        %v961 = vunpack.c.h.b16 %v432
        %v962 = vunpack.c.l.b16 %v433
        %v963 = vunpack.c.h.b16 %v433
        %v964 = vunpack.c.l.b16 %v434
        %v965 = vunpack.c.h.b16 %v434
        %v966 = vunpack.c.l.b16 %v435
        %v967 = vunpack.c.h.b16 %v435
        %v968 = vunpack.c.l.b16 %v436
        %v969 = vunpack.c.h.b16 %v436
        %v970 = vunpack.c.l.b16 %v437
        %v971 = vunpack.c.h.b16 %v437
        %v972 = vunpack.c.l.b16 %v438
        %v973 = vunpack.c.h.b16 %v438
        %v974 = vunpack.c.l.b16 %v439
        %v975 = vunpack.c.h.b16 %v439
        %v976 = vunpack.c.l.b16 %v440
        %v977 = vunpack.c.h.b16 %v440
        %v978 = vunpack.c.l.b16 %v441
        %v979 = vunpack.c.h.b16 %v441
        %v980 = vunpack.c.l.b16 %v442
        %v981 = vunpack.c.h.b16 %v442
        %v982 = vunpack.c.l.b16 %v443
        %v983 = vunpack.c.h.b16 %v443
        %v984 = vunpack.c.l.b16 %v444
        %v985 = vunpack.c.h.b16 %v444
        %v986 = vunpack.c.l.b16 %v445
        %v987 = vunpack.c.h.b16 %v445
        %v988 = vunpack.c.l.b16 %v446
        %v989 = vunpack.c.h.b16 %v446
        %v990 = vunpack.c.l.b16 %v447
        %v991 = vunpack.c.h.b16 %v447
        %v992 = vunpack.c.l.b16 %v448
        %v993 = vunpack.c.h.b16 %v448
        %v994 = vunpack.c.l.b16 %v449
        %v995 = vunpack.c.h.b16 %v449
        %v996 = vunpack.c.l.b16 %v450
        %v997 = vunpack.c.h.b16 %v450
        %v998 = vunpack.c.l.b16 %v451
        %v999 = vunpack.c.h.b16 %v451
        %v1000 = vunpack.c.l.b16 %v452
        %v1001 = vunpack.c.h.b16 %v452
        %v1002 = vunpack.c.l.b16 %v453
        %v1003 = vunpack.c.h.b16 %v453
        %v1004 = vunpack.c.l.b16 %v454
        %v1005 = vunpack.c.h.b16 %v454
        %v1006 = vunpack.c.l.b16 %v455
        %v1007 = vunpack.c.h.b16 %v455
        %v1008 = vunpack.c.l.b16 %v456
        %v1009 = vunpack.c.h.b16 %v456
        %v1010 = vunpack.c.l.b16 %v457
        %v1011 = vunpack.c.h.b16 %v457
        %v1012 = vunpack.c.l.b16 %v458
        %v1013 = vunpack.c.h.b16 %v458
        %v1014 = vunpack.c.l.b16 %v459
        %v1015 = vunpack.c.h.b16 %v459
        %v1016 = vunpack.c.l.b16 %v460
        %v1017 = vunpack.c.h.b16 %v460
        %v1018 = vunpack.c.l.b16 %v461
        %v1019 = vunpack.c.h.b16 %v461
        %v1020 = vunpack.c.l.b16 %v462
        %v1021 = vunpack.c.h.b16 %v462
        %v1022 = vunpack.c.l.b16 %v463
        %v1023 = vunpack.c.h.b16 %v463
        %v1024 = vunpack.c.l.b16 %v464
        %v1025 = vunpack.c.h.b16 %v464
        %v1026 = vunpack.c.l.b16 %v465
        %v1027 = vunpack.c.h.b16 %v465
        %v1028 = vunpack.c.l.b16 %v466
        %v1029 = vunpack.c.h.b16 %v466
        %v1030 = vunpack.c.l.b16 %v467
        %v1031 = vunpack.c.h.b16 %v467
        %v1032 = vunpack.c.l.b16 %v468
        %v1033 = vunpack.c.h.b16 %v468
        %v1034 = vunpack.c.l.b16 %v469
        %v1035 = vunpack.c.h.b16 %v469
        %v1036 = vunpack.c.l.b16 %v470
        %v1037 = vunpack.c.h.b16 %v470
        %v1038 = vunpack.c.l.b16 %v471
        %v1039 = vunpack.c.h.b16 %v471
        %v1040 = vunpack.c.l.b16 %v472
        %v1041 = vunpack.c.h.b16 %v472
        %v1042 = vunpack.c.l.b16 %v473
        %v1043 = vunpack.c.h.b16 %v473
        %v1044 = vunpack.c.l.b16 %v474
        %v1045 = vunpack.c.h.b16 %v474
        %v1046 = vunpack.c.l.b16 %v475
        %v1047 = vunpack.c.h.b16 %v475
        %v1048 = vunpack.c.l.b16 %v476
        %v1049 = vunpack.c.h.b16 %v476
        %v1050 = vunpack.c.l.b16 %v477
        %v1051 = vunpack.c.h.b16 %v477
        %v1052 = vunpack.c.l.b16 %v478
        %v1053 = vunpack.c.h.b16 %v478
        %v1054 = vunpack.c.l.b16 %v479
        %v1055 = vunpack.c.h.b16 %v479
        %v1056 = vunpack.c.l.b16 %v480
        %v1057 = vunpack.c.h.b16 %v480
        %v1058 = vunpack.c.l.b16 %v481
        %v1059 = vunpack.c.h.b16 %v481
        %v1060 = vunpack.c.l.b16 %v482
        %v1061 = vunpack.c.h.b16 %v482
        %v1062 = vunpack.c.l.b16 %v483
        %v1063 = vunpack.c.h.b16 %v483
        %v1064 = vunpack.c.l.b16 %v484
        %v1065 = vunpack.c.h.b16 %v484
        %v1066 = vunpack.c.l.b16 %v485
        %v1067 = vunpack.c.h.b16 %v485
        %v1068 = vunpack.c.l.b16 %v486
        %v1069 = vunpack.c.h.b16 %v486
        %v1070 = vunpack.c.l.b16 %v487
        %v1071 = vunpack.c.h.b16 %v487
        %v1072 = vunpack.c.l.b16 %v488
        %v1073 = vunpack.c.h.b16 %v488
        %v1074 = vunpack.c.l.b16 %v489
        %v1075 = vunpack.c.h.b16 %v489
        %v1076 = vunpack.c.l.b16 %v490
        %v1077 = vunpack.c.h.b16 %v490
        %v1078 = vunpack.c.l.b16 %v491
        %v1079 = vunpack.c.h.b16 %v491
        %v1080 = vunpack.c.l.b16 %v492
        %v1081 = vunpack.c.h.b16 %v492
        %v1082 = vunpack.c.l.b16 %v493
        %v1083 = vunpack.c.h.b16 %v493
        %v1084 = vunpack.c.l.b16 %v494
        %v1085 = vunpack.c.h.b16 %v494
        %v1086 = vunpack.c.l.b16 %v495
        %v1087 = vunpack.c.h.b16 %v495
        %v1088 = vunpack.c.l.b16 %v496
        %v1089 = vunpack.c.h.b16 %v496
        %v1090 = vunpack.c.l.b16 %v497
        %v1091 = vunpack.c.h.b16 %v497
        %v1092 = vunpack.c.l.b16 %v498
        %v1093 = vunpack.c.h.b16 %v498
        %v1094 = vunpack.c.l.b16 %v499
        %v1095 = vunpack.c.h.b16 %v499
        %v1096 = vunpack.c.l.b16 %v500
        %v1097 = vunpack.c.h.b16 %v500
        %v1098 = vunpack.c.l.b16 %v501
        %v1099 = vunpack.c.h.b16 %v501
        %v1100 = vunpack.c.l.b16 %v502
        %v1101 = vunpack.c.h.b16 %v502
        %v1102 = vunpack.c.l.b16 %v503
        %v1103 = vunpack.c.h.b16 %v503
        %v1104 = vunpack.c.l.b16 %v504
        %v1105 = vunpack.c.h.b16 %v504
        %v1106 = vunpack.c.l.b16 %v505
        %v1107 = vunpack.c.h.b16 %v505
        %v1108 = vunpack.c.l.b16 %v506
        %v1109 = vunpack.c.h.b16 %v506
        %v1110 = vunpack.c.l.b16 %v507
        %v1111 = vunpack.c.h.b16 %v507
        %v1112 = vunpack.c.l.b16 %v508
        %v1113 = vunpack.c.h.b16 %v508
        %v1114 = vunpack.c.l.b16 %v509
        %v1115 = vunpack.c.h.b16 %v509
        %v1116 = vunpack.c.l.b16 %v510
        %v1117 = vunpack.c.h.b16 %v510
        %v1118 = vunpack.c.l.b16 %v511
        %v1119 = vunpack.c.h.b16 %v511
        %v1120 = vunpack.c.l.b16 %v512
        %v1121 = vunpack.c.h.b16 %v512
        %v1122 = vunpack.c.l.b16 %v513
        %v1123 = vunpack.c.h.b16 %v513
        %v1124 = vunpack.c.l.b16 %v514
        %v1125 = vunpack.c.h.b16 %v514
        %v1126 = vunpack.c.l.b16 %v515
        %v1127 = vunpack.c.h.b16 %v515
        %v1128 = vunpack.c.l.b16 %v516
        %v1129 = vunpack.c.h.b16 %v516
        %v1130 = vunpack.c.l.b16 %v517
        %v1131 = vunpack.c.h.b16 %v517
        %v1132 = vunpack.c.l.b16 %v518
        %v1133 = vunpack.c.h.b16 %v518
        %v1134 = vunpack.c.l.b16 %v519
        %v1135 = vunpack.c.h.b16 %v519
        %v1136 = vunpack.c.l.b16 %v520
        %v1137 = vunpack.c.h.b16 %v520
        %v1138 = vunpack.c.l.b16 %v521
        %v1139 = vunpack.c.h.b16 %v521
        %v1140 = vpack.c.b16 %v764, %v756
        %v1141 = vpack.c.b16 %v765, %v757
        %v1142 = vpack.c.b16 %v766, %v758
        %v1143 = vpack.c.b16 %v767, %v759
        %v1144 = vpack.c.b16 %v768, %v760
        %v1145 = vpack.c.b16 %v769, %v761
        %v1146 = vpack.c.b16 %v770, %v762
        %v1147 = vpack.c.b16 %v771, %v763
        %v1148 = vpack.c.b16 %v780, %v772
        %v1149 = vpack.c.b16 %v781, %v773
        %v1150 = vpack.c.b16 %v782, %v774
        %v1151 = vpack.c.b16 %v783, %v775
        %v1152 = vpack.c.b16 %v784, %v776
        %v1153 = vpack.c.b16 %v785, %v777
        %v1154 = vpack.c.b16 %v786, %v778
        %v1155 = vpack.c.b16 %v787, %v779
        %v1156 = vpack.c.b16 %v796, %v788
        %v1157 = vpack.c.b16 %v797, %v789
        %v1158 = vpack.c.b16 %v798, %v790
        %v1159 = vpack.c.b16 %v799, %v791
        %v1160 = vpack.c.b16 %v800, %v792
        %v1161 = vpack.c.b16 %v801, %v793
        %v1162 = vpack.c.b16 %v802, %v794
        %v1163 = vpack.c.b16 %v803, %v795
        %v1164 = vpack.c.b16 %v812, %v804
        %v1165 = vpack.c.b16 %v813, %v805
        %v1166 = vpack.c.b16 %v814, %v806
        %v1167 = vpack.c.b16 %v815, %v807
        %v1168 = vpack.c.b16 %v816, %v808
        %v1169 = vpack.c.b16 %v817, %v809
        %v1170 = vpack.c.b16 %v818, %v810
        %v1171 = vpack.c.b16 %v819, %v811
        %v1172 = vpack.c.b16 %v828, %v820
        %v1173 = vpack.c.b16 %v829, %v821
        %v1174 = vpack.c.b16 %v830, %v822
        %v1175 = vpack.c.b16 %v831, %v823
        %v1176 = vpack.c.b16 %v832, %v824
        %v1177 = vpack.c.b16 %v833, %v825
        %v1178 = vpack.c.b16 %v834, %v826
        %v1179 = vpack.c.b16 %v835, %v827
        %v1180 = vpack.c.b16 %v844, %v836
        %v1181 = vpack.c.b16 %v845, %v837
        %v1182 = vpack.c.b16 %v846, %v838
        %v1183 = vpack.c.b16 %v847, %v839
        %v1184 = vpack.c.b16 %v848, %v840
        %v1185 = vpack.c.b16 %v849, %v841
        %v1186 = vpack.c.b16 %v850, %v842
        %v1187 = vpack.c.b16 %v851, %v843
        %v1188 = vpack.c.b16 %v860, %v852
        %v1189 = vpack.c.b16 %v861, %v853
        %v1190 = vpack.c.b16 %v862, %v854
        %v1191 = vpack.c.b16 %v863, %v855
        %v1192 = vpack.c.b16 %v864, %v856
        %v1193 = vpack.c.b16 %v865, %v857
        %v1194 = vpack.c.b16 %v866, %v858
        %v1195 = vpack.c.b16 %v867, %v859
        %v1196 = vpack.c.b16 %v876, %v868
        %v1197 = vpack.c.b16 %v877, %v869
        %v1198 = vpack.c.b16 %v878, %v870
        %v1199 = vpack.c.b16 %v879, %v871
        %v1200 = vpack.c.b16 %v880, %v872
        %v1201 = vpack.c.b16 %v881, %v873
        %v1202 = vpack.c.b16 %v882, %v874
        %v1203 = vpack.c.b16 %v883, %v875
        %v1204 = vpack.c.b16 %v892, %v884
        %v1205 = vpack.c.b16 %v893, %v885
        %v1206 = vpack.c.b16 %v894, %v886
        %v1207 = vpack.c.b16 %v895, %v887
        %v1208 = vpack.c.b16 %v896, %v888
        %v1209 = vpack.c.b16 %v897, %v889
        %v1210 = vpack.c.b16 %v898, %v890
        %v1211 = vpack.c.b16 %v899, %v891
        %v1212 = vpack.c.b16 %v908, %v900
        %v1213 = vpack.c.b16 %v909, %v901
        %v1214 = vpack.c.b16 %v910, %v902
        %v1215 = vpack.c.b16 %v911, %v903
        %v1216 = vpack.c.b16 %v912, %v904
        %v1217 = vpack.c.b16 %v913, %v905
        %v1218 = vpack.c.b16 %v914, %v906
        %v1219 = vpack.c.b16 %v915, %v907
        %v1220 = vpack.c.b16 %v924, %v916
        %v1221 = vpack.c.b16 %v925, %v917
        %v1222 = vpack.c.b16 %v926, %v918
        %v1223 = vpack.c.b16 %v927, %v919
        %v1224 = vpack.c.b16 %v928, %v920
        %v1225 = vpack.c.b16 %v929, %v921
        %v1226 = vpack.c.b16 %v930, %v922
        %v1227 = vpack.c.b16 %v931, %v923
        %v1228 = vpack.c.b16 %v940, %v932
        %v1229 = vpack.c.b16 %v941, %v933
        %v1230 = vpack.c.b16 %v942, %v934
        %v1231 = vpack.c.b16 %v943, %v935
        %v1232 = vpack.c.b16 %v944, %v936
        %v1233 = vpack.c.b16 %v945, %v937
        %v1234 = vpack.c.b16 %v946, %v938
        %v1235 = vpack.c.b16 %v947, %v939
        %v1236 = vpack.c.b16 %v956, %v948
        %v1237 = vpack.c.b16 %v957, %v949
        %v1238 = vpack.c.b16 %v958, %v950
        %v1239 = vpack.c.b16 %v959, %v951
        %v1240 = vpack.c.b16 %v960, %v952
        %v1241 = vpack.c.b16 %v961, %v953
        %v1242 = vpack.c.b16 %v962, %v954
        %v1243 = vpack.c.b16 %v963, %v955
        %v1244 = vpack.c.b16 %v972, %v964
        %v1245 = vpack.c.b16 %v973, %v965
        %v1246 = vpack.c.b16 %v974, %v966
        %v1247 = vpack.c.b16 %v975, %v967
        %v1248 = vpack.c.b16 %v976, %v968
        %v1249 = vpack.c.b16 %v977, %v969
        %v1250 = vpack.c.b16 %v978, %v970
        %v1251 = vpack.c.b16 %v979, %v971
        %v1252 = vpack.c.b16 %v988, %v980
        %v1253 = vpack.c.b16 %v989, %v981
        %v1254 = vpack.c.b16 %v990, %v982
        %v1255 = vpack.c.b16 %v991, %v983
        %v1256 = vpack.c.b16 %v992, %v984
        %v1257 = vpack.c.b16 %v993, %v985
        %v1258 = vpack.c.b16 %v994, %v986
        %v1259 = vpack.c.b16 %v995, %v987
        %v1260 = vpack.c.b16 %v1004, %v996
        %v1261 = vpack.c.b16 %v1005, %v997
        %v1262 = vpack.c.b16 %v1006, %v998
        %v1263 = vpack.c.b16 %v1007, %v999
        %v1264 = vpack.c.b16 %v1008, %v1000
        %v1265 = vpack.c.b16 %v1009, %v1001
        %v1266 = vpack.c.b16 %v1010, %v1002
        %v1267 = vpack.c.b16 %v1011, %v1003
        %v1268 = vpack.c.b16 %v1020, %v1012
        %v1269 = vpack.c.b16 %v1021, %v1013
        %v1270 = vpack.c.b16 %v1022, %v1014
        %v1271 = vpack.c.b16 %v1023, %v1015
        %v1272 = vpack.c.b16 %v1024, %v1016
        %v1273 = vpack.c.b16 %v1025, %v1017
        %v1274 = vpack.c.b16 %v1026, %v1018
        %v1275 = vpack.c.b16 %v1027, %v1019
        %v1276 = vpack.c.b16 %v1036, %v1028
        %v1277 = vpack.c.b16 %v1037, %v1029
        %v1278 = vpack.c.b16 %v1038, %v1030
        %v1279 = vpack.c.b16 %v1039, %v1031
        %v1280 = vpack.c.b16 %v1040, %v1032
        %v1281 = vpack.c.b16 %v1041, %v1033
        %v1282 = vpack.c.b16 %v1042, %v1034
        %v1283 = vpack.c.b16 %v1043, %v1035
        %v1284 = vpack.c.b16 %v1052, %v1044
        %v1285 = vpack.c.b16 %v1053, %v1045
        %v1286 = vpack.c.b16 %v1054, %v1046
        %v1287 = vpack.c.b16 %v1055, %v1047
        %v1288 = vpack.c.b16 %v1056, %v1048
        %v1289 = vpack.c.b16 %v1057, %v1049
        %v1290 = vpack.c.b16 %v1058, %v1050
        %v1291 = vpack.c.b16 %v1059, %v1051
        %v1292 = vpack.c.b16 %v1068, %v1060
        %v1293 = vpack.c.b16 %v1069, %v1061
        %v1294 = vpack.c.b16 %v1070, %v1062
        %v1295 = vpack.c.b16 %v1071, %v1063
        %v1296 = vpack.c.b16 %v1072, %v1064
        %v1297 = vpack.c.b16 %v1073, %v1065
        %v1298 = vpack.c.b16 %v1074, %v1066
        %v1299 = vpack.c.b16 %v1075, %v1067
        %v1300 = vpack.c.b16 %v1084, %v1076
        %v1301 = vpack.c.b16 %v1085, %v1077
        %v1302 = vpack.c.b16 %v1086, %v1078
        %v1303 = vpack.c.b16 %v1087, %v1079
        %v1304 = vpack.c.b16 %v1088, %v1080
        %v1305 = vpack.c.b16 %v1089, %v1081
        %v1306 = vpack.c.b16 %v1090, %v1082
        %v1307 = vpack.c.b16 %v1091, %v1083
        %v1308 = vpack.c.b16 %v1100, %v1092
        %v1309 = vpack.c.b16 %v1101, %v1093
        %v1310 = vpack.c.b16 %v1102, %v1094
        %v1311 = vpack.c.b16 %v1103, %v1095
        %v1312 = vpack.c.b16 %v1104, %v1096
        %v1313 = vpack.c.b16 %v1105, %v1097
        %v1314 = vpack.c.b16 %v1106, %v1098
        %v1315 = vpack.c.b16 %v1107, %v1099
        %v1316 = vpack.c.b16 %v1116, %v1108
        %v1317 = vpack.c.b16 %v1117, %v1109
        %v1318 = vpack.c.b16 %v1118, %v1110
        %v1319 = vpack.c.b16 %v1119, %v1111
        %v1320 = vpack.c.b16 %v1120, %v1112
        %v1321 = vpack.c.b16 %v1121, %v1113
        %v1322 = vpack.c.b16 %v1122, %v1114
        %v1323 = vpack.c.b16 %v1123, %v1115
        %v1324 = vpack.c.b16 %v1132, %v1124
        %v1325 = vpack.c.b16 %v1133, %v1125
        %v1326 = vpack.c.b16 %v1134, %v1126
        %v1327 = vpack.c.b16 %v1135, %v1127
        %v1328 = vpack.c.b16 %v1136, %v1128
        %v1329 = vpack.c.b16 %v1137, %v1129
        %v1330 = vpack.c.b16 %v1138, %v1130
        %v1331 = vpack.c.b16 %v1139, %v1131
        %1524 = vmatprep.subr.bf16.mxu0 %v1197
        %1525 = vmatpush1.bf16.msra.mxu0 %v1196
        %1526 = vmatprep.subr.bf16.mxu0 %v1189
        %1527 = vmatpush1.bf16.msra.mxu0 %v1188
        %1528 = vmatprep.subr.bf16.mxu0 %v1181
        %1529 = vmatpush1.bf16.msra.mxu0 %v1180
        %1530 = vmatprep.subr.bf16.mxu0 %v1173
        %1531 = vmatpush1.bf16.msra.mxu0 %v1172
        %1532 = vmatprep.subr.bf16.mxu0 %v1165
        %1533 = vmatpush1.bf16.msra.mxu0 %v1164
        %1534 = vmatprep.subr.bf16.mxu0 %v1157
        %1535 = vmatpush1.bf16.msra.mxu0 %v1156
        %1536 = vmatprep.subr.bf16.mxu0 %v1149
        %1537 = vmatpush1.bf16.msra.mxu0 %v1148
        %1538 = vmatprep.subr.bf16.mxu0 %v1141
        %1539 = vmatpush1.bf16.msra.mxu0 %v1140
        %1540 = vmatprep.subr.bf16.mxu0 %v1261
        %1541 = vmatpush2.bf16.msra.mxu0 %v1260
        %1542 = vmatprep.subr.bf16.mxu0 %v1253
        %1543 = vmatpush2.bf16.msra.mxu0 %v1252
        %1544 = vmatprep.subr.bf16.mxu0 %v1245
        %1545 = vmatpush2.bf16.msra.mxu0 %v1244
        %1546 = vmatprep.subr.bf16.mxu0 %v1237
        %1547 = vmatpush2.bf16.msra.mxu0 %v1236
        %1548 = vmatprep.subr.bf16.mxu0 %v1229
        %1549 = vmatpush2.bf16.msra.mxu0 %v1228
        %1550 = vmatprep.subr.bf16.mxu0 %v1221
        %1551 = vmatpush2.bf16.msra.mxu0 %v1220
        %1552 = vmatprep.subr.bf16.mxu0 %v1213
        %1553 = vmatpush2.bf16.msra.mxu0 %v1212
        %1554 = vmatprep.subr.bf16.mxu0 %v1205
        %1555 = vmatpush2.bf16.msra.mxu0 %v1204
        %1556 = vmatprep.mubr.bf16.mxu0 %v319
        %1557 = vmatmul.mubr.bf16.gmra.mxu0 %v318
        %v1558 = vpop.f32.mrf.mxu0
        %v1559 = vadd.f32 %v527, %v1558
        %v1560 = vpop.f32.mrf.mxu0
        %v1561 = vadd.f32 %v531, %v1560
        %v1562 = vpop.f32.mrf.mxu0
        %v1563 = vadd.f32 %v527, %v1562
        %v1564 = vpop.f32.mrf.mxu0
        %v1565 = vadd.f32 %v531, %v1564
        %1566 = vmatprep.mubr.bf16.mxu0 %v322
        %1567 = vmatmul.mubr.bf16.gmra.mxu0 %v321
        %v1568 = vpop.f32.mrf.mxu0
        %v1569 = vadd.f32 %v527, %v1568
        %v1570 = vpop.f32.mrf.mxu0
        %v1571 = vadd.f32 %v531, %v1570
        %v1572 = vpop.f32.mrf.mxu0
        %v1573 = vadd.f32 %v527, %v1572
        %v1574 = vpop.f32.mrf.mxu0
        %v1575 = vadd.f32 %v531, %v1574
        %1576 = vmatprep.mubr.bf16.mxu0 %v325
        %1577 = vmatmul.mubr.bf16.gmra.mxu0 %v324
        %v1578 = vpop.f32.mrf.mxu0
        %v1579 = vadd.f32 %v527, %v1578
        %v1580 = vpop.f32.mrf.mxu0
        %v1581 = vadd.f32 %v531, %v1580
        %v1582 = vpop.f32.mrf.mxu0
        %v1583 = vadd.f32 %v527, %v1582
        %v1584 = vpop.f32.mrf.mxu0
        %v1585 = vadd.f32 %v531, %v1584
        %1586 = vmatprep.mubr.bf16.mxu0 %v328
        %1587 = vmatmul.mubr.bf16.gmra.mxu0 %v327
        %v1588 = vpop.f32.mrf.mxu0
        %v1589 = vadd.f32 %v527, %v1588
        %v1590 = vpop.f32.mrf.mxu0
        %v1591 = vadd.f32 %v531, %v1590
        %v1592 = vpop.f32.mrf.mxu0
        %v1593 = vadd.f32 %v527, %v1592
        %v1594 = vpop.f32.mrf.mxu0
        %v1595 = vadd.f32 %v531, %v1594
        %1596 = vdwg.mxu0
        %1597 = vmatprep.subr.bf16.mxu0 %v1325
        %1598 = vmatpush1.bf16.msra.mxu0 %v1324
        %1599 = vmatprep.subr.bf16.mxu0 %v1317
        %1600 = vmatpush1.bf16.msra.mxu0 %v1316
        %1601 = vmatprep.subr.bf16.mxu0 %v1309
        %1602 = vmatpush1.bf16.msra.mxu0 %v1308
        %1603 = vmatprep.subr.bf16.mxu0 %v1301
        %1604 = vmatpush1.bf16.msra.mxu0 %v1300
        %1605 = vmatprep.subr.bf16.mxu0 %v1293
        %1606 = vmatpush1.bf16.msra.mxu0 %v1292
        %1607 = vmatprep.subr.bf16.mxu0 %v1285
        %1608 = vmatpush1.bf16.msra.mxu0 %v1284
        %1609 = vmatprep.subr.bf16.mxu0 %v1277
        %1610 = vmatpush1.bf16.msra.mxu0 %v1276
        %1611 = vmatprep.subr.bf16.mxu0 %v1269
        %1612 = vmatpush1.bf16.msra.mxu0 %v1268
        %1613 = vmatprep.subr.bf16.mxu0 0
        %1614 = vmatpush2.bf16.msra.mxu0 0
        %1615 = vmatprep.subr.bf16.mxu0 0
        %1616 = vmatpush2.bf16.msra.mxu0 0
        %1617 = vmatprep.subr.bf16.mxu0 0
        %1618 = vmatpush2.bf16.msra.mxu0 0
        %1619 = vmatprep.subr.bf16.mxu0 0
        %1620 = vmatpush2.bf16.msra.mxu0 0
        %1621 = vmatprep.subr.bf16.mxu0 0
        %1622 = vmatpush2.bf16.msra.mxu0 0
        %1623 = vmatprep.subr.bf16.mxu0 0
        %1624 = vmatpush2.bf16.msra.mxu0 0
        %1625 = vmatprep.subr.bf16.mxu0 0
        %1626 = vmatpush2.bf16.msra.mxu0 0
        %1627 = vmatprep.subr.bf16.mxu0 0
        %1628 = vmatpush2.bf16.msra.mxu0 0
        %1629 = vmatprep.mubr.bf16.mxu0 0
        %1630 = vmatmul.mubr.bf16.gmra.mxu0 %v320
        %v1631 = vpop.f32.mrf.mxu0
        %v1632 = vadd.f32 %v1559, %v1631
        %v1633 = vpop.f32.mrf.mxu0
        %v1634 = vadd.f32 %v1561, %v1633
        %v1635 = vpop.f32.mrf.mxu0
        %v1636 = vadd.f32 %v1563, %v1635
        %v1637 = vpop.f32.mrf.mxu0
        %v1638 = vadd.f32 %v1565, %v1637
        %1639 = vmatprep.mubr.bf16.mxu0 0
        %1640 = vmatmul.mubr.bf16.gmra.mxu0 %v323
        %v1641 = vpop.f32.mrf.mxu0
        %v1642 = vadd.f32 %v1569, %v1641
        %v1643 = vpop.f32.mrf.mxu0
        %v1644 = vadd.f32 %v1571, %v1643
        %v1645 = vpop.f32.mrf.mxu0
        %v1646 = vadd.f32 %v1573, %v1645
        %v1647 = vpop.f32.mrf.mxu0
        %v1648 = vadd.f32 %v1575, %v1647
        %1649 = vmatprep.mubr.bf16.mxu0 0
        %1650 = vmatmul.mubr.bf16.gmra.mxu0 %v326
        %v1651 = vpop.f32.mrf.mxu0
        %v1652 = vadd.f32 %v1579, %v1651
        %v1653 = vpop.f32.mrf.mxu0
        %v1654 = vadd.f32 %v1581, %v1653
        %v1655 = vpop.f32.mrf.mxu0
        %v1656 = vadd.f32 %v1583, %v1655
        %v1657 = vpop.f32.mrf.mxu0
        %v1658 = vadd.f32 %v1585, %v1657
        %1659 = vmatprep.mubr.bf16.mxu0 0
        %1660 = vmatmul.mubr.bf16.gmra.mxu0 %v329
        %v1661 = vpop.f32.mrf.mxu0
        %v1662 = vadd.f32 %v1589, %v1661
        %v1663 = vpop.f32.mrf.mxu0
        %v1664 = vadd.f32 %v1591, %v1663
        %v1665 = vpop.f32.mrf.mxu0
        %v1666 = vadd.f32 %v1593, %v1665
        %v1667 = vpop.f32.mrf.mxu0
        %v1668 = vadd.f32 %v1595, %v1667
        %1669 = vdwg.mxu0
        %1670 = vmatprep.subr.bf16.mxu0 %v1199
        %1671 = vmatpush1.bf16.msra.mxu0 %v1198
        %1672 = vmatprep.subr.bf16.mxu0 %v1191
        %1673 = vmatpush1.bf16.msra.mxu0 %v1190
        %1674 = vmatprep.subr.bf16.mxu0 %v1183
        %1675 = vmatpush1.bf16.msra.mxu0 %v1182
        %1676 = vmatprep.subr.bf16.mxu0 %v1175
        %1677 = vmatpush1.bf16.msra.mxu0 %v1174
        %1678 = vmatprep.subr.bf16.mxu0 %v1167
        %1679 = vmatpush1.bf16.msra.mxu0 %v1166
        %1680 = vmatprep.subr.bf16.mxu0 %v1159
        %1681 = vmatpush1.bf16.msra.mxu0 %v1158
        %1682 = vmatprep.subr.bf16.mxu0 %v1151
        %1683 = vmatpush1.bf16.msra.mxu0 %v1150
        %1684 = vmatprep.subr.bf16.mxu0 %v1143
        %1685 = vmatpush1.bf16.msra.mxu0 %v1142
        %1686 = vmatprep.subr.bf16.mxu0 %v1263
        %1687 = vmatpush2.bf16.msra.mxu0 %v1262
        %1688 = vmatprep.subr.bf16.mxu0 %v1255
        %1689 = vmatpush2.bf16.msra.mxu0 %v1254
        %1690 = vmatprep.subr.bf16.mxu0 %v1247
        %1691 = vmatpush2.bf16.msra.mxu0 %v1246
        %1692 = vmatprep.subr.bf16.mxu0 %v1239
        %1693 = vmatpush2.bf16.msra.mxu0 %v1238
        %1694 = vmatprep.subr.bf16.mxu0 %v1231
        %1695 = vmatpush2.bf16.msra.mxu0 %v1230
        %1696 = vmatprep.subr.bf16.mxu0 %v1223
        %1697 = vmatpush2.bf16.msra.mxu0 %v1222
        %1698 = vmatprep.subr.bf16.mxu0 %v1215
        %1699 = vmatpush2.bf16.msra.mxu0 %v1214
        %1700 = vmatprep.subr.bf16.mxu0 %v1207
        %1701 = vmatpush2.bf16.msra.mxu0 %v1206
        %1702 = vmatprep.mubr.bf16.mxu0 %v319
        %1703 = vmatmul.mubr.bf16.gmra.mxu0 %v318
        %v1704 = vpop.f32.mrf.mxu0
        %v1705 = vadd.f32 %v535, %v1704
        %v1706 = vpop.f32.mrf.mxu0
        %v1707 = vadd.f32 %v539, %v1706
        %v1708 = vpop.f32.mrf.mxu0
        %v1709 = vadd.f32 %v535, %v1708
        %v1710 = vpop.f32.mrf.mxu0
        %v1711 = vadd.f32 %v539, %v1710
        %1712 = vmatprep.mubr.bf16.mxu0 %v322
        %1713 = vmatmul.mubr.bf16.gmra.mxu0 %v321
        %v1714 = vpop.f32.mrf.mxu0
        %v1715 = vadd.f32 %v535, %v1714
        %v1716 = vpop.f32.mrf.mxu0
        %v1717 = vadd.f32 %v539, %v1716
        %v1718 = vpop.f32.mrf.mxu0
        %v1719 = vadd.f32 %v535, %v1718
        %v1720 = vpop.f32.mrf.mxu0
        %v1721 = vadd.f32 %v539, %v1720
        %1722 = vmatprep.mubr.bf16.mxu0 %v325
        %1723 = vmatmul.mubr.bf16.gmra.mxu0 %v324
        %v1724 = vpop.f32.mrf.mxu0
        %v1725 = vadd.f32 %v535, %v1724
        %v1726 = vpop.f32.mrf.mxu0
        %v1727 = vadd.f32 %v539, %v1726
        %v1728 = vpop.f32.mrf.mxu0
        %v1729 = vadd.f32 %v535, %v1728
        %v1730 = vpop.f32.mrf.mxu0
        %v1731 = vadd.f32 %v539, %v1730
        %1732 = vmatprep.mubr.bf16.mxu0 %v328
        %1733 = vmatmul.mubr.bf16.gmra.mxu0 %v327
        %v1734 = vpop.f32.mrf.mxu0
        %v1735 = vadd.f32 %v535, %v1734
        %v1736 = vpop.f32.mrf.mxu0
        %v1737 = vadd.f32 %v539, %v1736
        %v1738 = vpop.f32.mrf.mxu0
        %v1739 = vadd.f32 %v535, %v1738
        %v1740 = vpop.f32.mrf.mxu0
        %v1741 = vadd.f32 %v539, %v1740
        %1742 = vdwg.mxu0
        %1743 = vmatprep.subr.bf16.mxu0 %v1327
        %1744 = vmatpush1.bf16.msra.mxu0 %v1326
        %1745 = vmatprep.subr.bf16.mxu0 %v1319
        %1746 = vmatpush1.bf16.msra.mxu0 %v1318
        %1747 = vmatprep.subr.bf16.mxu0 %v1311
        %1748 = vmatpush1.bf16.msra.mxu0 %v1310
        %1749 = vmatprep.subr.bf16.mxu0 %v1303
        %1750 = vmatpush1.bf16.msra.mxu0 %v1302
        %1751 = vmatprep.subr.bf16.mxu0 %v1295
        %1752 = vmatpush1.bf16.msra.mxu0 %v1294
        %1753 = vmatprep.subr.bf16.mxu0 %v1287
        %1754 = vmatpush1.bf16.msra.mxu0 %v1286
        %1755 = vmatprep.subr.bf16.mxu0 %v1279
        %1756 = vmatpush1.bf16.msra.mxu0 %v1278
        %1757 = vmatprep.subr.bf16.mxu0 %v1271
        %1758 = vmatpush1.bf16.msra.mxu0 %v1270
        %1759 = vmatprep.subr.bf16.mxu0 0
        %1760 = vmatpush2.bf16.msra.mxu0 0
        %1761 = vmatprep.subr.bf16.mxu0 0
        %1762 = vmatpush2.bf16.msra.mxu0 0
        %1763 = vmatprep.subr.bf16.mxu0 0
        %1764 = vmatpush2.bf16.msra.mxu0 0
        %1765 = vmatprep.subr.bf16.mxu0 0
        %1766 = vmatpush2.bf16.msra.mxu0 0
        %1767 = vmatprep.subr.bf16.mxu0 0
        %1768 = vmatpush2.bf16.msra.mxu0 0
        %1769 = vmatprep.subr.bf16.mxu0 0
        %1770 = vmatpush2.bf16.msra.mxu0 0
        %1771 = vmatprep.subr.bf16.mxu0 0
        %1772 = vmatpush2.bf16.msra.mxu0 0
        %1773 = vmatprep.subr.bf16.mxu0 0
        %1774 = vmatpush2.bf16.msra.mxu0 0
        %1775 = vmatprep.mubr.bf16.mxu0 0
        %1776 = vmatmul.mubr.bf16.gmra.mxu0 %v320
        %v1777 = vpop.f32.mrf.mxu0
        %v1778 = vadd.f32 %v1705, %v1777
        %v1779 = vpop.f32.mrf.mxu0
        %v1780 = vadd.f32 %v1707, %v1779
        %v1781 = vpop.f32.mrf.mxu0
        %v1782 = vadd.f32 %v1709, %v1781
        %v1783 = vpop.f32.mrf.mxu0
        %v1784 = vadd.f32 %v1711, %v1783
        %1785 = vmatprep.mubr.bf16.mxu0 0
        %1786 = vmatmul.mubr.bf16.gmra.mxu0 %v323
        %v1787 = vpop.f32.mrf.mxu0
        %v1788 = vadd.f32 %v1715, %v1787
        %v1789 = vpop.f32.mrf.mxu0
        %v1790 = vadd.f32 %v1717, %v1789
        %v1791 = vpop.f32.mrf.mxu0
        %v1792 = vadd.f32 %v1719, %v1791
        %v1793 = vpop.f32.mrf.mxu0
        %v1794 = vadd.f32 %v1721, %v1793
        %1795 = vmatprep.mubr.bf16.mxu0 0
        %1796 = vmatmul.mubr.bf16.gmra.mxu0 %v326
        %v1797 = vpop.f32.mrf.mxu0
        %v1798 = vadd.f32 %v1725, %v1797
        %v1799 = vpop.f32.mrf.mxu0
        %v1800 = vadd.f32 %v1727, %v1799
        %v1801 = vpop.f32.mrf.mxu0
        %v1802 = vadd.f32 %v1729, %v1801
        %v1803 = vpop.f32.mrf.mxu0
        %v1804 = vadd.f32 %v1731, %v1803
        %1805 = vmatprep.mubr.bf16.mxu0 0
        %1806 = vmatmul.mubr.bf16.gmra.mxu0 %v329
        %v1807 = vpop.f32.mrf.mxu0
        %v1808 = vadd.f32 %v1735, %v1807
        %v1809 = vpop.f32.mrf.mxu0
        %v1810 = vadd.f32 %v1737, %v1809
        %v1811 = vpop.f32.mrf.mxu0
        %v1812 = vadd.f32 %v1739, %v1811
        %v1813 = vpop.f32.mrf.mxu0
        %v1814 = vadd.f32 %v1741, %v1813
        %1815 = vdwg.mxu0
        %1816 = vmatprep.subr.bf16.mxu0 %v1201
        %1817 = vmatpush1.bf16.msra.mxu0 %v1200
        %1818 = vmatprep.subr.bf16.mxu0 %v1193
        %1819 = vmatpush1.bf16.msra.mxu0 %v1192
        %1820 = vmatprep.subr.bf16.mxu0 %v1185
        %1821 = vmatpush1.bf16.msra.mxu0 %v1184
        %1822 = vmatprep.subr.bf16.mxu0 %v1177
        %1823 = vmatpush1.bf16.msra.mxu0 %v1176
        %1824 = vmatprep.subr.bf16.mxu0 %v1169
        %1825 = vmatpush1.bf16.msra.mxu0 %v1168
        %1826 = vmatprep.subr.bf16.mxu0 %v1161
        %1827 = vmatpush1.bf16.msra.mxu0 %v1160
        %1828 = vmatprep.subr.bf16.mxu0 %v1153
        %1829 = vmatpush1.bf16.msra.mxu0 %v1152
        %1830 = vmatprep.subr.bf16.mxu0 %v1145
        %1831 = vmatpush1.bf16.msra.mxu0 %v1144
        %1832 = vmatprep.subr.bf16.mxu0 %v1265
        %1833 = vmatpush2.bf16.msra.mxu0 %v1264
        %1834 = vmatprep.subr.bf16.mxu0 %v1257
        %1835 = vmatpush2.bf16.msra.mxu0 %v1256
        %1836 = vmatprep.subr.bf16.mxu0 %v1249
        %1837 = vmatpush2.bf16.msra.mxu0 %v1248
        %1838 = vmatprep.subr.bf16.mxu0 %v1241
        %1839 = vmatpush2.bf16.msra.mxu0 %v1240
        %1840 = vmatprep.subr.bf16.mxu0 %v1233
        %1841 = vmatpush2.bf16.msra.mxu0 %v1232
        %1842 = vmatprep.subr.bf16.mxu0 %v1225
        %1843 = vmatpush2.bf16.msra.mxu0 %v1224
        %1844 = vmatprep.subr.bf16.mxu0 %v1217
        %1845 = vmatpush2.bf16.msra.mxu0 %v1216
        %1846 = vmatprep.subr.bf16.mxu0 %v1209
        %1847 = vmatpush2.bf16.msra.mxu0 %v1208
        %1848 = vmatprep.mubr.bf16.mxu0 %v319
        %1849 = vmatmul.mubr.bf16.gmra.mxu0 %v318
        %v1850 = vpop.f32.mrf.mxu0
        %v1851 = vadd.f32 %v543, %v1850
        %v1852 = vpop.f32.mrf.mxu0
        %v1853 = vadd.f32 %v547, %v1852
        %v1854 = vpop.f32.mrf.mxu0
        %v1855 = vadd.f32 %v543, %v1854
        %v1856 = vpop.f32.mrf.mxu0
        %v1857 = vadd.f32 %v547, %v1856
        %1858 = vmatprep.mubr.bf16.mxu0 %v322
        %1859 = vmatmul.mubr.bf16.gmra.mxu0 %v321
        %v1860 = vpop.f32.mrf.mxu0
        %v1861 = vadd.f32 %v543, %v1860
        %v1862 = vpop.f32.mrf.mxu0
        %v1863 = vadd.f32 %v547, %v1862
        %v1864 = vpop.f32.mrf.mxu0
        %v1865 = vadd.f32 %v543, %v1864
        %v1866 = vpop.f32.mrf.mxu0
        %v1867 = vadd.f32 %v547, %v1866
        %1868 = vmatprep.mubr.bf16.mxu0 %v325
        %1869 = vmatmul.mubr.bf16.gmra.mxu0 %v324
        %v1870 = vpop.f32.mrf.mxu0
        %v1871 = vadd.f32 %v543, %v1870
        %v1872 = vpop.f32.mrf.mxu0
        %v1873 = vadd.f32 %v547, %v1872
        %v1874 = vpop.f32.mrf.mxu0
        %v1875 = vadd.f32 %v543, %v1874
        %v1876 = vpop.f32.mrf.mxu0
        %v1877 = vadd.f32 %v547, %v1876
        %1878 = vmatprep.mubr.bf16.mxu0 %v328
        %1879 = vmatmul.mubr.bf16.gmra.mxu0 %v327
        %v1880 = vpop.f32.mrf.mxu0
        %v1881 = vadd.f32 %v543, %v1880
        %v1882 = vpop.f32.mrf.mxu0
        %v1883 = vadd.f32 %v547, %v1882
        %v1884 = vpop.f32.mrf.mxu0
        %v1885 = vadd.f32 %v543, %v1884
        %v1886 = vpop.f32.mrf.mxu0
        %v1887 = vadd.f32 %v547, %v1886
        %1888 = vdwg.mxu0
        %1889 = vmatprep.subr.bf16.mxu0 %v1329
        %1890 = vmatpush1.bf16.msra.mxu0 %v1328
        %1891 = vmatprep.subr.bf16.mxu0 %v1321
        %1892 = vmatpush1.bf16.msra.mxu0 %v1320
        %1893 = vmatprep.subr.bf16.mxu0 %v1313
        %1894 = vmatpush1.bf16.msra.mxu0 %v1312
        %1895 = vmatprep.subr.bf16.mxu0 %v1305
        %1896 = vmatpush1.bf16.msra.mxu0 %v1304
        %1897 = vmatprep.subr.bf16.mxu0 %v1297
        %1898 = vmatpush1.bf16.msra.mxu0 %v1296
        %1899 = vmatprep.subr.bf16.mxu0 %v1289
        %1900 = vmatpush1.bf16.msra.mxu0 %v1288
        %1901 = vmatprep.subr.bf16.mxu0 %v1281
        %1902 = vmatpush1.bf16.msra.mxu0 %v1280
        %1903 = vmatprep.subr.bf16.mxu0 %v1273
        %1904 = vmatpush1.bf16.msra.mxu0 %v1272
        %1905 = vmatprep.subr.bf16.mxu0 0
        %1906 = vmatpush2.bf16.msra.mxu0 0
        %1907 = vmatprep.subr.bf16.mxu0 0
        %1908 = vmatpush2.bf16.msra.mxu0 0
        %1909 = vmatprep.subr.bf16.mxu0 0
        %1910 = vmatpush2.bf16.msra.mxu0 0
        %1911 = vmatprep.subr.bf16.mxu0 0
        %1912 = vmatpush2.bf16.msra.mxu0 0
        %1913 = vmatprep.subr.bf16.mxu0 0
        %1914 = vmatpush2.bf16.msra.mxu0 0
        %1915 = vmatprep.subr.bf16.mxu0 0
        %1916 = vmatpush2.bf16.msra.mxu0 0
        %1917 = vmatprep.subr.bf16.mxu0 0
        %1918 = vmatpush2.bf16.msra.mxu0 0
        %1919 = vmatprep.subr.bf16.mxu0 0
        %1920 = vmatpush2.bf16.msra.mxu0 0
        %1921 = vmatprep.mubr.bf16.mxu0 0
        %1922 = vmatmul.mubr.bf16.gmra.mxu0 %v320
        %v1923 = vpop.f32.mrf.mxu0
        %v1924 = vadd.f32 %v1851, %v1923
        %v1925 = vpop.f32.mrf.mxu0
        %v1926 = vadd.f32 %v1853, %v1925
        %v1927 = vpop.f32.mrf.mxu0
        %v1928 = vadd.f32 %v1855, %v1927
        %v1929 = vpop.f32.mrf.mxu0
        %v1930 = vadd.f32 %v1857, %v1929
        %1931 = vmatprep.mubr.bf16.mxu0 0
        %1932 = vmatmul.mubr.bf16.gmra.mxu0 %v323
        %v1933 = vpop.f32.mrf.mxu0
        %v1934 = vadd.f32 %v1861, %v1933
        %v1935 = vpop.f32.mrf.mxu0
        %v1936 = vadd.f32 %v1863, %v1935
        %v1937 = vpop.f32.mrf.mxu0
        %v1938 = vadd.f32 %v1865, %v1937
        %v1939 = vpop.f32.mrf.mxu0
        %v1940 = vadd.f32 %v1867, %v1939
        %1941 = vmatprep.mubr.bf16.mxu0 0
        %1942 = vmatmul.mubr.bf16.gmra.mxu0 %v326
        %v1943 = vpop.f32.mrf.mxu0
        %v1944 = vadd.f32 %v1871, %v1943
        %v1945 = vpop.f32.mrf.mxu0
        %v1946 = vadd.f32 %v1873, %v1945
        %v1947 = vpop.f32.mrf.mxu0
        %v1948 = vadd.f32 %v1875, %v1947
        %v1949 = vpop.f32.mrf.mxu0
        %v1950 = vadd.f32 %v1877, %v1949
        %1951 = vmatprep.mubr.bf16.mxu0 0
        %1952 = vmatmul.mubr.bf16.gmra.mxu0 %v329
        %v1953 = vpop.f32.mrf.mxu0
        %v1954 = vadd.f32 %v1881, %v1953
        %v1955 = vpop.f32.mrf.mxu0
        %v1956 = vadd.f32 %v1883, %v1955
        %v1957 = vpop.f32.mrf.mxu0
        %v1958 = vadd.f32 %v1885, %v1957
        %v1959 = vpop.f32.mrf.mxu0
        %v1960 = vadd.f32 %v1887, %v1959
        %1961 = vdwg.mxu0
        %1962 = vmatprep.subr.bf16.mxu0 %v1203
        %1963 = vmatpush1.bf16.msra.mxu0 %v1202
        %1964 = vmatprep.subr.bf16.mxu0 %v1195
        %1965 = vmatpush1.bf16.msra.mxu0 %v1194
        %1966 = vmatprep.subr.bf16.mxu0 %v1187
        %1967 = vmatpush1.bf16.msra.mxu0 %v1186
        %1968 = vmatprep.subr.bf16.mxu0 %v1179
        %1969 = vmatpush1.bf16.msra.mxu0 %v1178
        %1970 = vmatprep.subr.bf16.mxu0 %v1171
        %1971 = vmatpush1.bf16.msra.mxu0 %v1170
        %1972 = vmatprep.subr.bf16.mxu0 %v1163
        %1973 = vmatpush1.bf16.msra.mxu0 %v1162
        %1974 = vmatprep.subr.bf16.mxu0 %v1155
        %1975 = vmatpush1.bf16.msra.mxu0 %v1154
        %1976 = vmatprep.subr.bf16.mxu0 %v1147
        %1977 = vmatpush1.bf16.msra.mxu0 %v1146
        %1978 = vmatprep.subr.bf16.mxu0 %v1267
        %1979 = vmatpush2.bf16.msra.mxu0 %v1266
        %1980 = vmatprep.subr.bf16.mxu0 %v1259
        %1981 = vmatpush2.bf16.msra.mxu0 %v1258
        %1982 = vmatprep.subr.bf16.mxu0 %v1251
        %1983 = vmatpush2.bf16.msra.mxu0 %v1250
        %1984 = vmatprep.subr.bf16.mxu0 %v1243
        %1985 = vmatpush2.bf16.msra.mxu0 %v1242
        %1986 = vmatprep.subr.bf16.mxu0 %v1235
        %1987 = vmatpush2.bf16.msra.mxu0 %v1234
        %1988 = vmatprep.subr.bf16.mxu0 %v1227
        %1989 = vmatpush2.bf16.msra.mxu0 %v1226
        %1990 = vmatprep.subr.bf16.mxu0 %v1219
        %1991 = vmatpush2.bf16.msra.mxu0 %v1218
        %1992 = vmatprep.subr.bf16.mxu0 %v1211
        %1993 = vmatpush2.bf16.msra.mxu0 %v1210
        %1994 = vmatprep.mubr.bf16.mxu0 %v319
        %1995 = vmatmul.mubr.bf16.gmra.mxu0 %v318
        %v1996 = vpop.f32.mrf.mxu0
        %v1997 = vadd.f32 %v551, %v1996
        %v1998 = vpop.f32.mrf.mxu0
        %v1999 = vadd.f32 %v555, %v1998
        %v2000 = vpop.f32.mrf.mxu0
        %v2001 = vadd.f32 %v551, %v2000
        %v2002 = vpop.f32.mrf.mxu0
        %v2003 = vadd.f32 %v555, %v2002
        %2004 = vmatprep.mubr.bf16.mxu0 %v322
        %2005 = vmatmul.mubr.bf16.gmra.mxu0 %v321
        %v2006 = vpop.f32.mrf.mxu0
        %v2007 = vadd.f32 %v551, %v2006
        %v2008 = vpop.f32.mrf.mxu0
        %v2009 = vadd.f32 %v555, %v2008
        %v2010 = vpop.f32.mrf.mxu0
        %v2011 = vadd.f32 %v551, %v2010
        %v2012 = vpop.f32.mrf.mxu0
        %v2013 = vadd.f32 %v555, %v2012
        %2014 = vmatprep.mubr.bf16.mxu0 %v325
        %2015 = vmatmul.mubr.bf16.gmra.mxu0 %v324
        %v2016 = vpop.f32.mrf.mxu0
        %v2017 = vadd.f32 %v551, %v2016
        %v2018 = vpop.f32.mrf.mxu0
        %v2019 = vadd.f32 %v555, %v2018
        %v2020 = vpop.f32.mrf.mxu0
        %v2021 = vadd.f32 %v551, %v2020
        %v2022 = vpop.f32.mrf.mxu0
        %v2023 = vadd.f32 %v555, %v2022
        %2024 = vmatprep.mubr.bf16.mxu0 %v328
        %2025 = vmatmul.mubr.bf16.gmra.mxu0 %v327
        %v2026 = vpop.f32.mrf.mxu0
        %v2027 = vadd.f32 %v551, %v2026
        %v2028 = vpop.f32.mrf.mxu0
        %v2029 = vadd.f32 %v555, %v2028
        %v2030 = vpop.f32.mrf.mxu0
        %v2031 = vadd.f32 %v551, %v2030
        %v2032 = vpop.f32.mrf.mxu0
        %v2033 = vadd.f32 %v555, %v2032
        %2034 = vdwg.mxu0
        %2035 = vmatprep.subr.bf16.mxu0 %v1331
        %2036 = vmatpush1.bf16.msra.mxu0 %v1330
        %2037 = vmatprep.subr.bf16.mxu0 %v1323
        %2038 = vmatpush1.bf16.msra.mxu0 %v1322
        %2039 = vmatprep.subr.bf16.mxu0 %v1315
        %2040 = vmatpush1.bf16.msra.mxu0 %v1314
        %2041 = vmatprep.subr.bf16.mxu0 %v1307
        %2042 = vmatpush1.bf16.msra.mxu0 %v1306
        %2043 = vmatprep.subr.bf16.mxu0 %v1299
        %2044 = vmatpush1.bf16.msra.mxu0 %v1298
        %2045 = vmatprep.subr.bf16.mxu0 %v1291
        %2046 = vmatpush1.bf16.msra.mxu0 %v1290
        %2047 = vmatprep.subr.bf16.mxu0 %v1283
        %2048 = vmatpush1.bf16.msra.mxu0 %v1282
        %2049 = vmatprep.subr.bf16.mxu0 %v1275
        %2050 = vmatpush1.bf16.msra.mxu0 %v1274
        %2051 = vmatprep.subr.bf16.mxu0 0
        %2052 = vmatpush2.bf16.msra.mxu0 0
        %2053 = vmatprep.subr.bf16.mxu0 0
        %2054 = vmatpush2.bf16.msra.mxu0 0
        %2055 = vmatprep.subr.bf16.mxu0 0
        %2056 = vmatpush2.bf16.msra.mxu0 0
        %2057 = vmatprep.subr.bf16.mxu0 0
        %2058 = vmatpush2.bf16.msra.mxu0 0
        %2059 = vmatprep.subr.bf16.mxu0 0
        %2060 = vmatpush2.bf16.msra.mxu0 0
        %2061 = vmatprep.subr.bf16.mxu0 0
        %2062 = vmatpush2.bf16.msra.mxu0 0
        %2063 = vmatprep.subr.bf16.mxu0 0
        %2064 = vmatpush2.bf16.msra.mxu0 0
        %2065 = vmatprep.subr.bf16.mxu0 0
        %2066 = vmatpush2.bf16.msra.mxu0 0
        %2067 = vmatprep.mubr.bf16.mxu0 0
        %2068 = vmatmul.mubr.bf16.gmra.mxu0 %v320
        %v2069 = vpop.f32.mrf.mxu0
        %v2070 = vadd.f32 %v1997, %v2069
        %v2071 = vpop.f32.mrf.mxu0
        %v2072 = vadd.f32 %v1999, %v2071
        %v2073 = vpop.f32.mrf.mxu0
        %v2074 = vadd.f32 %v2001, %v2073
        %v2075 = vpop.f32.mrf.mxu0
        %v2076 = vadd.f32 %v2003, %v2075
        %2077 = vmatprep.mubr.bf16.mxu0 0
        %2078 = vmatmul.mubr.bf16.gmra.mxu0 %v323
        %v2079 = vpop.f32.mrf.mxu0
        %v2080 = vadd.f32 %v2007, %v2079
        %v2081 = vpop.f32.mrf.mxu0
        %v2082 = vadd.f32 %v2009, %v2081
        %v2083 = vpop.f32.mrf.mxu0
        %v2084 = vadd.f32 %v2011, %v2083
        %v2085 = vpop.f32.mrf.mxu0
        %v2086 = vadd.f32 %v2013, %v2085
        %2087 = vmatprep.mubr.bf16.mxu0 0
        %2088 = vmatmul.mubr.bf16.gmra.mxu0 %v326
        %v2089 = vpop.f32.mrf.mxu0
        %v2090 = vadd.f32 %v2017, %v2089
        %v2091 = vpop.f32.mrf.mxu0
        %v2092 = vadd.f32 %v2019, %v2091
        %v2093 = vpop.f32.mrf.mxu0
        %v2094 = vadd.f32 %v2021, %v2093
        %v2095 = vpop.f32.mrf.mxu0
        %v2096 = vadd.f32 %v2023, %v2095
        %2097 = vmatprep.mubr.bf16.mxu0 0
        %2098 = vmatmul.mubr.bf16.gmra.mxu0 %v329
        %v2099 = vpop.f32.mrf.mxu0
        %v2100 = vadd.f32 %v2027, %v2099
        %v2101 = vpop.f32.mrf.mxu0
        %v2102 = vadd.f32 %v2029, %v2101
        %v2103 = vpop.f32.mrf.mxu0
        %v2104 = vadd.f32 %v2031, %v2103
        %v2105 = vpop.f32.mrf.mxu0
        %v2106 = vadd.f32 %v2033, %v2105
        %2107 = vdwg.mxu0
        %2108 = vst [vmem:[#allocation2] sm:$0xff] %v1632
        %2109 = vst [vmem:[#allocation2 + $0x8] sm:$0xff] %v1634
        %2110 = vst [vmem:[#allocation2 + $0x10] sm:$0xff] %v1778
        %2111 = vst [vmem:[#allocation2 + $0x18] sm:$0xff] %v1780
        %2112 = vst [vmem:[#allocation2 + $0x20] sm:$0xff] %v1924
        %2113 = vst [vmem:[#allocation2 + $0x28] sm:$0xff] %v1926
        %2114 = vst [vmem:[#allocation2 + $0x30] sm:$0xff] %v2070
        %2115 = vst [vmem:[#allocation2 + $0x38] sm:$0xff] %v2072
        %2116 = vst [vmem:[#allocation2 + $0x40] sm:$0xff] %v1636
        %2117 = vst [vmem:[#allocation2 + $0x48] sm:$0xff] %v1638
        %2118 = vst [vmem:[#allocation2 + $0x50] sm:$0xff] %v1782
        %2119 = vst [vmem:[#allocation2 + $0x58] sm:$0xff] %v1784
        %2120 = vst [vmem:[#allocation2 + $0x60] sm:$0xff] %v1928
        %2121 = vst [vmem:[#allocation2 + $0x68] sm:$0xff] %v1930
        %2122 = vst [vmem:[#allocation2 + $0x70] sm:$0xff] %v2074
        %2123 = vst [vmem:[#allocation2 + $0x78] sm:$0xff] %v2076
        %2124 = vst [vmem:[#allocation2 + $0x80] sm:$0xff] %v1642
        %2125 = vst [vmem:[#allocation2 + $0x88] sm:$0xff] %v1644
        %2126 = vst [vmem:[#allocation2 + $0x90] sm:$0xff] %v1788
        %2127 = vst [vmem:[#allocation2 + $0x98] sm:$0xff] %v1790
        %2128 = vst [vmem:[#allocation2 + $0xa0] sm:$0xff] %v1934
        %2129 = vst [vmem:[#allocation2 + $0xa8] sm:$0xff] %v1936
        %2130 = vst [vmem:[#allocation2 + $0xb0] sm:$0xff] %v2080
        %2131 = vst [vmem:[#allocation2 + $0xb8] sm:$0xff] %v2082
        %2132 = vst [vmem:[#allocation2 + $0xc0] sm:$0xff] %v1646
        %2133 = vst [vmem:[#allocation2 + $0xc8] sm:$0xff] %v1648
        %2134 = vst [vmem:[#allocation2 + $0xd0] sm:$0xff] %v1792
        %2135 = vst [vmem:[#allocation2 + $0xd8] sm:$0xff] %v1794
        %2136 = vst [vmem:[#allocation2 + $0xe0] sm:$0xff] %v1938
        %2137 = vst [vmem:[#allocation2 + $0xe8] sm:$0xff] %v1940
        %2138 = vst [vmem:[#allocation2 + $0xf0] sm:$0xff] %v2084
        %2139 = vst [vmem:[#allocation2 + $0xf8] sm:$0xff] %v2086
        %2140 = vst [vmem:[#allocation2 + $0x100] sm:$0xff] %v1652
        %2141 = vst [vmem:[#allocation2 + $0x108] sm:$0xff] %v1654
        %2142 = vst [vmem:[#allocation2 + $0x110] sm:$0xff] %v1798
        %2143 = vst [vmem:[#allocation2 + $0x118] sm:$0xff] %v1800
        %2144 = vst [vmem:[#allocation2 + $0x120] sm:$0xff] %v1944
        %2145 = vst [vmem:[#allocation2 + $0x128] sm:$0xff] %v1946
        %2146 = vst [vmem:[#allocation2 + $0x130] sm:$0xff] %v2090
        %2147 = vst [vmem:[#allocation2 + $0x138] sm:$0xff] %v2092
        %2148 = vst [vmem:[#allocation2 + $0x140] sm:$0xff] %v1656
        %2149 = vst [vmem:[#allocation2 + $0x148] sm:$0xff] %v1658
        %2150 = vst [vmem:[#allocation2 + $0x150] sm:$0xff] %v1802
        %2151 = vst [vmem:[#allocation2 + $0x158] sm:$0xff] %v1804
        %2152 = vst [vmem:[#allocation2 + $0x160] sm:$0xff] %v1948
        %2153 = vst [vmem:[#allocation2 + $0x168] sm:$0xff] %v1950
        %2154 = vst [vmem:[#allocation2 + $0x170] sm:$0xff] %v2094
        %2155 = vst [vmem:[#allocation2 + $0x178] sm:$0xff] %v2096
        %2156 = vst [vmem:[#allocation2 + $0x180] sm:$0xff] %v1662
        %2157 = vst [vmem:[#allocation2 + $0x188] sm:$0xff] %v1664
        %2158 = vst [vmem:[#allocation2 + $0x190] sm:$0xff] %v1808
        %2159 = vst [vmem:[#allocation2 + $0x198] sm:$0xff] %v1810
        %2160 = vst [vmem:[#allocation2 + $0x1a0] sm:$0xff] %v1954
        %2161 = vst [vmem:[#allocation2 + $0x1a8] sm:$0xff] %v1956
        %2162 = vst [vmem:[#allocation2 + $0x1b0] sm:$0xff] %v2100
        %2163 = vst [vmem:[#allocation2 + $0x1b8] sm:$0xff] %v2102
        %2164 = vst [vmem:[#allocation2 + $0x1c0] sm:$0xff] %v1666
        %2165 = vst [vmem:[#allocation2 + $0x1c8] sm:$0xff] %v1668
        %2166 = vst [vmem:[#allocation2 + $0x1d0] sm:$0xff] %v1812
        %2167 = vst [vmem:[#allocation2 + $0x1d8] sm:$0xff] %v1814
        %2168 = vst [vmem:[#allocation2 + $0x1e0] sm:$0xff] %v1958
        %2169 = vst [vmem:[#allocation2 + $0x1e8] sm:$0xff] %v1960
        %2170 = vst [vmem:[#allocation2 + $0x1f0] sm:$0xff] %v2104
        %2171 = vst [vmem:[#allocation2 + $0x1f8] sm:$0xff] %v2106
        %s2172 = smul.u32 %s21, 7
        %v2173 = vld [vmem:[%s253] sm:$0xff]
        %v2174 = vld [vmem:[%s253 + $0x8] sm:$0xff]
        %v2175 = vld [vmem:[%s253 + $0x10] sm:$0xff]
        %v2176 = vld [vmem:[%s253 + $0x18] sm:$0xff]
        %v2177 = vld [vmem:[%s253 + $0x20] sm:$0xff]
        %v2178 = vld [vmem:[%s253 + $0x28] sm:$0xff]
        %v2179 = vld [vmem:[%s253 + $0x30] sm:$0xff]
        %v2180 = vld [vmem:[%s253 + $0x38] sm:$0xff]
        %v2181 = vld [vmem:[%s253 + $0x40] sm:$0xff]
        %v2182 = vld [vmem:[%s253 + $0x48] sm:$0xff]
        %v2183 = vld [vmem:[%s253 + $0x50] sm:$0xff]
        %v2184 = vld [vmem:[%s253 + $0x58] sm:$0xff]
        %v2185 = vld [vmem:[%s253 + $0x60] sm:$0xff]
        %v2186 = vld [vmem:[%s253 + $0x68] sm:$0xff]
        %v2187 = vld [vmem:[%s253 + $0x70] sm:$0xff]
        %v2188 = vld [vmem:[%s253 + $0x78] sm:$0xff]
        %v2189 = vld [vmem:[%s253 + $0x80] sm:$0xff]
        %v2190 = vld [vmem:[%s253 + $0x88] sm:$0xff]
        %v2191 = vld [vmem:[%s253 + $0x90] sm:$0xff]
        %v2192 = vld [vmem:[%s253 + $0x98] sm:$0xff]
        %v2193 = vld [vmem:[%s253 + $0xa0] sm:$0xff]
        %v2194 = vld [vmem:[%s253 + $0xa8] sm:$0xff]
        %v2195 = vld [vmem:[%s253 + $0xb0] sm:$0xff]
        %v2196 = vld [vmem:[%s253 + $0xb8] sm:$0xff]
        %v2197 = vld [vmem:[%s253 + $0xc0] sm:$0xff]
        %v2198 = vld [vmem:[%s253 + $0xc8] sm:$0xff]
        %v2199 = vld [vmem:[%s253 + $0xd0] sm:$0xff]
        %v2200 = vld [vmem:[%s253 + $0xd8] sm:$0xff]
        %v2201 = vld [vmem:[%s253 + $0xe0] sm:$0xff]
        %v2202 = vld [vmem:[%s253 + $0xe8] sm:$0xff]
        %v2203 = vld [vmem:[%s253 + $0xf0] sm:$0xff]
        %v2204 = vld [vmem:[%s253 + $0xf8] sm:$0xff]
        %v2205 = vld [vmem:[%s253 + $0x100] sm:$0xff]
        %v2206 = vld [vmem:[%s253 + $0x108] sm:$0xff]
        %v2207 = vld [vmem:[%s253 + $0x110] sm:$0xff]
        %v2208 = vld [vmem:[%s253 + $0x118] sm:$0xff]
        %v2209 = vld [vmem:[%s253 + $0x120] sm:$0xff]
        %v2210 = vld [vmem:[%s253 + $0x128] sm:$0xff]
        %v2211 = vld [vmem:[%s253 + $0x130] sm:$0xff]
        %v2212 = vld [vmem:[%s253 + $0x138] sm:$0xff]
        %v2213 = vld [vmem:[%s253 + $0x140] sm:$0xff]
        %v2214 = vld [vmem:[%s253 + $0x148] sm:$0xff]
        %v2215 = vld [vmem:[%s253 + $0x150] sm:$0xff]
        %v2216 = vld [vmem:[%s253 + $0x158] sm:$0xff]
        %v2217 = vld [vmem:[%s253 + $0x160] sm:$0xff]
        %v2218 = vld [vmem:[%s253 + $0x168] sm:$0xff]
        %v2219 = vld [vmem:[%s253 + $0x170] sm:$0xff]
        %v2220 = vld [vmem:[%s253 + $0x178] sm:$0xff]
        %v2221 = vld [vmem:[%s253 + $0x180] sm:$0xff]
        %v2222 = vld [vmem:[%s253 + $0x188] sm:$0xff]
        %v2223 = vld [vmem:[%s253 + $0x190] sm:$0xff]
        %v2224 = vld [vmem:[%s253 + $0x198] sm:$0xff]
        %v2225 = vld [vmem:[%s253 + $0x1a0] sm:$0xff]
        %v2226 = vld [vmem:[%s253 + $0x1a8] sm:$0xff]
        %v2227 = vld [vmem:[%s253 + $0x1b0] sm:$0xff]
        %v2228 = vld [vmem:[%s253 + $0x1b8] sm:$0xff]
        %v2229 = vld [vmem:[%s253 + $0x1c0] sm:$0xff]
        %v2230 = vld [vmem:[%s253 + $0x1c8] sm:$0xff]
        %v2231 = vld [vmem:[%s253 + $0x1d0] sm:$0xff]
        %v2232 = vld [vmem:[%s253 + $0x1d8] sm:$0xff]
        %v2233 = vld [vmem:[%s253 + $0x1e0] sm:$0xff]
        %v2234 = vld [vmem:[%s253 + $0x1e8] sm:$0xff]
        %v2235 = vld [vmem:[%s253 + $0x1f0] sm:$0xff]
        %v2236 = vld [vmem:[%s253 + $0x1f8] sm:$0xff]
        %v2237 = vld [vmem:[%s253 + $0x200] sm:$0xff]
        %v2238 = vld [vmem:[%s253 + $0x208] sm:$0xff]
        %v2239 = vld [vmem:[%s253 + $0x210] sm:$0xff]
        %v2240 = vld [vmem:[%s253 + $0x218] sm:$0xff]
        %v2241 = vld [vmem:[%s253 + $0x220] sm:$0xff]
        %v2242 = vld [vmem:[%s253 + $0x228] sm:$0xff]
        %v2243 = vld [vmem:[%s253 + $0x230] sm:$0xff]
        %v2244 = vld [vmem:[%s253 + $0x238] sm:$0xff]
        %v2245 = vld [vmem:[%s253 + $0x240] sm:$0xff]
        %v2246 = vld [vmem:[%s253 + $0x248] sm:$0xff]
        %v2247 = vld [vmem:[%s253 + $0x250] sm:$0xff]
        %v2248 = vld [vmem:[%s253 + $0x258] sm:$0xff]
        %v2249 = vld [vmem:[%s253 + $0x260] sm:$0xff]
        %v2250 = vld [vmem:[%s253 + $0x268] sm:$0xff]
        %v2251 = vld [vmem:[%s253 + $0x270] sm:$0xff]
        %v2252 = vld [vmem:[%s253 + $0x278] sm:$0xff]
        %v2253 = vld [vmem:[%s253 + $0x280] sm:$0xff]
        %v2254 = vld [vmem:[%s253 + $0x288] sm:$0xff]
        %v2255 = vld [vmem:[%s253 + $0x290] sm:$0xff]
        %v2256 = vld [vmem:[%s253 + $0x298] sm:$0xff]
        %v2257 = vld [vmem:[%s253 + $0x2a0] sm:$0xff]
        %v2258 = vld [vmem:[%s253 + $0x2a8] sm:$0xff]
        %v2259 = vld [vmem:[%s253 + $0x2b0] sm:$0xff]
        %v2260 = vld [vmem:[%s253 + $0x2b8] sm:$0xff]
        %v2261 = vld [vmem:[%s253 + $0x2c0] sm:$0xff]
        %v2262 = vld [vmem:[%s253 + $0x2c8] sm:$0xff]
        %v2263 = vld [vmem:[%s253 + $0x2d0] sm:$0xff]
        %v2264 = vld [vmem:[%s253 + $0x2d8] sm:$0xff]
        %v2265 = vld [vmem:[%s253 + $0x2e0] sm:$0xff]
        %v2266 = vld [vmem:[%s253 + $0x2e8] sm:$0xff]
        %v2267 = vld [vmem:[%s253 + $0x2f0] sm:$0xff]
        %v2268 = vld [vmem:[%s253 + $0x2f8] sm:$0xff]
        %v2269 = vld [vmem:[%s253 + $0x300] sm:$0xff]
        %v2270 = vld [vmem:[%s253 + $0x308] sm:$0xff]
        %v2271 = vld [vmem:[%s253 + $0x310] sm:$0xff]
        %v2272 = vld [vmem:[%s253 + $0x318] sm:$0xff]
        %v2273 = vld [vmem:[%s253 + $0x320] sm:$0xff]
        %v2274 = vld [vmem:[%s253 + $0x328] sm:$0xff]
        %v2275 = vld [vmem:[%s253 + $0x330] sm:$0xff]
        %v2276 = vld [vmem:[%s253 + $0x338] sm:$0xff]
        %v2277 = vld [vmem:[%s253 + $0x340] sm:$0xff]
        %v2278 = vld [vmem:[%s253 + $0x348] sm:$0xff]
        %v2279 = vld [vmem:[%s253 + $0x350] sm:$0xff]
        %v2280 = vld [vmem:[%s253 + $0x358] sm:$0xff]
        %v2281 = vld [vmem:[%s253 + $0x360] sm:$0xff]
        %v2282 = vld [vmem:[%s253 + $0x368] sm:$0xff]
        %v2283 = vld [vmem:[%s253 + $0x370] sm:$0xff]
        %v2284 = vld [vmem:[%s253 + $0x378] sm:$0xff]
        %v2285 = vld [vmem:[%s253 + $0x380] sm:$0xff]
        %v2286 = vld [vmem:[%s253 + $0x388] sm:$0xff]
        %v2287 = vld [vmem:[%s253 + $0x390] sm:$0xff]
        %v2288 = vld [vmem:[%s253 + $0x398] sm:$0xff]
        %v2289 = vld [vmem:[%s253 + $0x3a0] sm:$0xff]
        %v2290 = vld [vmem:[%s253 + $0x3a8] sm:$0xff]
        %v2291 = vld [vmem:[%s253 + $0x3b0] sm:$0xff]
        %v2292 = vld [vmem:[%s253 + $0x3b8] sm:$0xff]
        %v2293 = vld [vmem:[%s253 + $0x3c0] sm:$0xff]
        %v2294 = vld [vmem:[%s253 + $0x3c8] sm:$0xff]
        %v2295 = vld [vmem:[%s253 + $0x3d0] sm:$0xff]
        %v2296 = vld [vmem:[%s253 + $0x3d8] sm:$0xff]
        %v2297 = vld [vmem:[%s253 + $0x3e0] sm:$0xff]
        %v2298 = vld [vmem:[%s253 + $0x3e8] sm:$0xff]
        %v2299 = vld [vmem:[%s253 + $0x3f0] sm:$0xff]
        %v2300 = vld [vmem:[%s253 + $0x3f8] sm:$0xff]
        %v2429 = vunpack.c.l.b16 %v2173
        %v2430 = vunpack.c.h.b16 %v2173
        %v2431 = vunpack.c.l.b16 %v2174
        %v2432 = vunpack.c.h.b16 %v2174
        %v2433 = vunpack.c.l.b16 %v2175
        %v2434 = vunpack.c.h.b16 %v2175
        %v2435 = vunpack.c.l.b16 %v2176
        %v2436 = vunpack.c.h.b16 %v2176
        %v2437 = vunpack.c.l.b16 %v2177
        %v2438 = vunpack.c.h.b16 %v2177
        %v2439 = vunpack.c.l.b16 %v2178
        %v2440 = vunpack.c.h.b16 %v2178
        %v2441 = vunpack.c.l.b16 %v2179
        %v2442 = vunpack.c.h.b16 %v2179
        %v2443 = vunpack.c.l.b16 %v2180
        %v2444 = vunpack.c.h.b16 %v2180
        %v2445 = vunpack.c.l.b16 %v2181
        %v2446 = vunpack.c.h.b16 %v2181
        %v2447 = vunpack.c.l.b16 %v2182
        %v2448 = vunpack.c.h.b16 %v2182
        %v2449 = vunpack.c.l.b16 %v2183
        %v2450 = vunpack.c.h.b16 %v2183
        %v2451 = vunpack.c.l.b16 %v2184
        %v2452 = vunpack.c.h.b16 %v2184
        %v2453 = vunpack.c.l.b16 %v2185
        %v2454 = vunpack.c.h.b16 %v2185
        %v2455 = vunpack.c.l.b16 %v2186
        %v2456 = vunpack.c.h.b16 %v2186
        %v2457 = vunpack.c.l.b16 %v2187
        %v2458 = vunpack.c.h.b16 %v2187
        %v2459 = vunpack.c.l.b16 %v2188
        %v2460 = vunpack.c.h.b16 %v2188
        %v2461 = vunpack.c.l.b16 %v2189
        %v2462 = vunpack.c.h.b16 %v2189
        %v2463 = vunpack.c.l.b16 %v2190
        %v2464 = vunpack.c.h.b16 %v2190
        %v2465 = vunpack.c.l.b16 %v2191
        %v2466 = vunpack.c.h.b16 %v2191
        %v2467 = vunpack.c.l.b16 %v2192
        %v2468 = vunpack.c.h.b16 %v2192
        %v2469 = vunpack.c.l.b16 %v2193
        %v2470 = vunpack.c.h.b16 %v2193
        %v2471 = vunpack.c.l.b16 %v2194
        %v2472 = vunpack.c.h.b16 %v2194
        %v2473 = vunpack.c.l.b16 %v2195
        %v2474 = vunpack.c.h.b16 %v2195
        %v2475 = vunpack.c.l.b16 %v2196
        %v2476 = vunpack.c.h.b16 %v2196
        %v2477 = vunpack.c.l.b16 %v2197
        %v2478 = vunpack.c.h.b16 %v2197
        %v2479 = vunpack.c.l.b16 %v2198
        %v2480 = vunpack.c.h.b16 %v2198
        %v2481 = vunpack.c.l.b16 %v2199
        %v2482 = vunpack.c.h.b16 %v2199
        %v2483 = vunpack.c.l.b16 %v2200
        %v2484 = vunpack.c.h.b16 %v2200
        %v2485 = vunpack.c.l.b16 %v2201
        %v2486 = vunpack.c.h.b16 %v2201
        %v2487 = vunpack.c.l.b16 %v2202
        %v2488 = vunpack.c.h.b16 %v2202
        %v2489 = vunpack.c.l.b16 %v2203
        %v2490 = vunpack.c.h.b16 %v2203
        %v2491 = vunpack.c.l.b16 %v2204
        %v2492 = vunpack.c.h.b16 %v2204
        %v2493 = vunpack.c.l.b16 %v2205
        %v2494 = vunpack.c.h.b16 %v2205
        %v2495 = vunpack.c.l.b16 %v2206
        %v2496 = vunpack.c.h.b16 %v2206
        %v2497 = vunpack.c.l.b16 %v2207
        %v2498 = vunpack.c.h.b16 %v2207
        %v2499 = vunpack.c.l.b16 %v2208
        %v2500 = vunpack.c.h.b16 %v2208
        %v2501 = vunpack.c.l.b16 %v2209
        %v2502 = vunpack.c.h.b16 %v2209
        %v2503 = vunpack.c.l.b16 %v2210
        %v2504 = vunpack.c.h.b16 %v2210
        %v2505 = vunpack.c.l.b16 %v2211
        %v2506 = vunpack.c.h.b16 %v2211
        %v2507 = vunpack.c.l.b16 %v2212
        %v2508 = vunpack.c.h.b16 %v2212
        %v2509 = vunpack.c.l.b16 %v2213
        %v2510 = vunpack.c.h.b16 %v2213
        %v2511 = vunpack.c.l.b16 %v2214
        %v2512 = vunpack.c.h.b16 %v2214
        %v2513 = vunpack.c.l.b16 %v2215
        %v2514 = vunpack.c.h.b16 %v2215
        %v2515 = vunpack.c.l.b16 %v2216
        %v2516 = vunpack.c.h.b16 %v2216
        %v2517 = vunpack.c.l.b16 %v2217
        %v2518 = vunpack.c.h.b16 %v2217
        %v2519 = vunpack.c.l.b16 %v2218
        %v2520 = vunpack.c.h.b16 %v2218
        %v2521 = vunpack.c.l.b16 %v2219
        %v2522 = vunpack.c.h.b16 %v2219
        %v2523 = vunpack.c.l.b16 %v2220
        %v2524 = vunpack.c.h.b16 %v2220
        %v2525 = vunpack.c.l.b16 %v2221
        %v2526 = vunpack.c.h.b16 %v2221
        %v2527 = vunpack.c.l.b16 %v2222
        %v2528 = vunpack.c.h.b16 %v2222
        %v2529 = vunpack.c.l.b16 %v2223
        %v2530 = vunpack.c.h.b16 %v2223
        %v2531 = vunpack.c.l.b16 %v2224
        %v2532 = vunpack.c.h.b16 %v2224
        %v2533 = vunpack.c.l.b16 %v2225
        %v2534 = vunpack.c.h.b16 %v2225
        %v2535 = vunpack.c.l.b16 %v2226
        %v2536 = vunpack.c.h.b16 %v2226
        %v2537 = vunpack.c.l.b16 %v2227
        %v2538 = vunpack.c.h.b16 %v2227
        %v2539 = vunpack.c.l.b16 %v2228
        %v2540 = vunpack.c.h.b16 %v2228
        %v2541 = vunpack.c.l.b16 %v2229
        %v2542 = vunpack.c.h.b16 %v2229
        %v2543 = vunpack.c.l.b16 %v2230
        %v2544 = vunpack.c.h.b16 %v2230
        %v2545 = vunpack.c.l.b16 %v2231
        %v2546 = vunpack.c.h.b16 %v2231
        %v2547 = vunpack.c.l.b16 %v2232
        %v2548 = vunpack.c.h.b16 %v2232
        %v2549 = vunpack.c.l.b16 %v2233
        %v2550 = vunpack.c.h.b16 %v2233
        %v2551 = vunpack.c.l.b16 %v2234
        %v2552 = vunpack.c.h.b16 %v2234
        %v2553 = vunpack.c.l.b16 %v2235
        %v2554 = vunpack.c.h.b16 %v2235
        %v2555 = vunpack.c.l.b16 %v2236
        %v2556 = vunpack.c.h.b16 %v2236
        %v2557 = vunpack.c.l.b16 %v2237
        %v2558 = vunpack.c.h.b16 %v2237
        %v2559 = vunpack.c.l.b16 %v2238
        %v2560 = vunpack.c.h.b16 %v2238
        %v2561 = vunpack.c.l.b16 %v2239
        %v2562 = vunpack.c.h.b16 %v2239
        %v2563 = vunpack.c.l.b16 %v2240
        %v2564 = vunpack.c.h.b16 %v2240
        %v2565 = vunpack.c.l.b16 %v2241
        %v2566 = vunpack.c.h.b16 %v2241
        %v2567 = vunpack.c.l.b16 %v2242
        %v2568 = vunpack.c.h.b16 %v2242
        %v2569 = vunpack.c.l.b16 %v2243
        %v2570 = vunpack.c.h.b16 %v2243
        %v2571 = vunpack.c.l.b16 %v2244
        %v2572 = vunpack.c.h.b16 %v2244
        %v2573 = vunpack.c.l.b16 %v2245
        %v2574 = vunpack.c.h.b16 %v2245
        %v2575 = vunpack.c.l.b16 %v2246
        %v2576 = vunpack.c.h.b16 %v2246
        %v2577 = vunpack.c.l.b16 %v2247
        %v2578 = vunpack.c.h.b16 %v2247
        %v2579 = vunpack.c.l.b16 %v2248
        %v2580 = vunpack.c.h.b16 %v2248
        %v2581 = vunpack.c.l.b16 %v2249
        %v2582 = vunpack.c.h.b16 %v2249
        %v2583 = vunpack.c.l.b16 %v2250
        %v2584 = vunpack.c.h.b16 %v2250
        %v2585 = vunpack.c.l.b16 %v2251
        %v2586 = vunpack.c.h.b16 %v2251
        %v2587 = vunpack.c.l.b16 %v2252
        %v2588 = vunpack.c.h.b16 %v2252
        %v2589 = vunpack.c.l.b16 %v2253
        %v2590 = vunpack.c.h.b16 %v2253
        %v2591 = vunpack.c.l.b16 %v2254
        %v2592 = vunpack.c.h.b16 %v2254
        %v2593 = vunpack.c.l.b16 %v2255
        %v2594 = vunpack.c.h.b16 %v2255
        %v2595 = vunpack.c.l.b16 %v2256
        %v2596 = vunpack.c.h.b16 %v2256
        %v2597 = vunpack.c.l.b16 %v2257
        %v2598 = vunpack.c.h.b16 %v2257
        %v2599 = vunpack.c.l.b16 %v2258
        %v2600 = vunpack.c.h.b16 %v2258
        %v2601 = vunpack.c.l.b16 %v2259
        %v2602 = vunpack.c.h.b16 %v2259
        %v2603 = vunpack.c.l.b16 %v2260
        %v2604 = vunpack.c.h.b16 %v2260
        %v2605 = vunpack.c.l.b16 %v2261
        %v2606 = vunpack.c.h.b16 %v2261
        %v2607 = vunpack.c.l.b16 %v2262
        %v2608 = vunpack.c.h.b16 %v2262
        %v2609 = vunpack.c.l.b16 %v2263
        %v2610 = vunpack.c.h.b16 %v2263
        %v2611 = vunpack.c.l.b16 %v2264
        %v2612 = vunpack.c.h.b16 %v2264
        %v2613 = vunpack.c.l.b16 %v2265
        %v2614 = vunpack.c.h.b16 %v2265
        %v2615 = vunpack.c.l.b16 %v2266
        %v2616 = vunpack.c.h.b16 %v2266
        %v2617 = vunpack.c.l.b16 %v2267
        %v2618 = vunpack.c.h.b16 %v2267
        %v2619 = vunpack.c.l.b16 %v2268
        %v2620 = vunpack.c.h.b16 %v2268
        %v2621 = vunpack.c.l.b16 %v2269
        %v2622 = vunpack.c.h.b16 %v2269
        %v2623 = vunpack.c.l.b16 %v2270
        %v2624 = vunpack.c.h.b16 %v2270
        %v2625 = vunpack.c.l.b16 %v2271
        %v2626 = vunpack.c.h.b16 %v2271
        %v2627 = vunpack.c.l.b16 %v2272
        %v2628 = vunpack.c.h.b16 %v2272
        %v2629 = vunpack.c.l.b16 %v2273
        %v2630 = vunpack.c.h.b16 %v2273
        %v2631 = vunpack.c.l.b16 %v2274
        %v2632 = vunpack.c.h.b16 %v2274
        %v2633 = vunpack.c.l.b16 %v2275
        %v2634 = vunpack.c.h.b16 %v2275
        %v2635 = vunpack.c.l.b16 %v2276
        %v2636 = vunpack.c.h.b16 %v2276
        %v2637 = vunpack.c.l.b16 %v2277
        %v2638 = vunpack.c.h.b16 %v2277
        %v2639 = vunpack.c.l.b16 %v2278
        %v2640 = vunpack.c.h.b16 %v2278
        %v2641 = vunpack.c.l.b16 %v2279
        %v2642 = vunpack.c.h.b16 %v2279
        %v2643 = vunpack.c.l.b16 %v2280
        %v2644 = vunpack.c.h.b16 %v2280
        %v2645 = vunpack.c.l.b16 %v2281
        %v2646 = vunpack.c.h.b16 %v2281
        %v2647 = vunpack.c.l.b16 %v2282
        %v2648 = vunpack.c.h.b16 %v2282
        %v2649 = vunpack.c.l.b16 %v2283
        %v2650 = vunpack.c.h.b16 %v2283
        %v2651 = vunpack.c.l.b16 %v2284
        %v2652 = vunpack.c.h.b16 %v2284
        %v2653 = vunpack.c.l.b16 %v2285
        %v2654 = vunpack.c.h.b16 %v2285
        %v2655 = vunpack.c.l.b16 %v2286
        %v2656 = vunpack.c.h.b16 %v2286
        %v2657 = vunpack.c.l.b16 %v2287
        %v2658 = vunpack.c.h.b16 %v2287
        %v2659 = vunpack.c.l.b16 %v2288
        %v2660 = vunpack.c.h.b16 %v2288
        %v2661 = vunpack.c.l.b16 %v2289
        %v2662 = vunpack.c.h.b16 %v2289
        %v2663 = vunpack.c.l.b16 %v2290
        %v2664 = vunpack.c.h.b16 %v2290
        %v2665 = vunpack.c.l.b16 %v2291
        %v2666 = vunpack.c.h.b16 %v2291
        %v2667 = vunpack.c.l.b16 %v2292
        %v2668 = vunpack.c.h.b16 %v2292
        %v2669 = vunpack.c.l.b16 %v2293
        %v2670 = vunpack.c.h.b16 %v2293
        %v2671 = vunpack.c.l.b16 %v2294
        %v2672 = vunpack.c.h.b16 %v2294
        %v2673 = vunpack.c.l.b16 %v2295
        %v2674 = vunpack.c.h.b16 %v2295
        %v2675 = vunpack.c.l.b16 %v2296
        %v2676 = vunpack.c.h.b16 %v2296
        %v2677 = vunpack.c.l.b16 %v2297
        %v2678 = vunpack.c.h.b16 %v2297
        %v2679 = vunpack.c.l.b16 %v2298
        %v2680 = vunpack.c.h.b16 %v2298
        %v2681 = vunpack.c.l.b16 %v2299
        %v2682 = vunpack.c.h.b16 %v2299
        %v2683 = vunpack.c.l.b16 %v2300
        %v2684 = vunpack.c.h.b16 %v2300
        %v2685 = vpack.c.b16 %v2437, %v2429
        %v2686 = vpack.c.b16 %v2438, %v2430
        %v2687 = vpack.c.b16 %v2439, %v2431
        %v2688 = vpack.c.b16 %v2440, %v2432
        %v2689 = vpack.c.b16 %v2441, %v2433
        %v2690 = vpack.c.b16 %v2442, %v2434
        %v2691 = vpack.c.b16 %v2443, %v2435
        %v2692 = vpack.c.b16 %v2444, %v2436
        %v2693 = vpack.c.b16 %v2453, %v2445
        %v2694 = vpack.c.b16 %v2454, %v2446
        %v2695 = vpack.c.b16 %v2455, %v2447
        %v2696 = vpack.c.b16 %v2456, %v2448
        %v2697 = vpack.c.b16 %v2457, %v2449
        %v2698 = vpack.c.b16 %v2458, %v2450
        %v2699 = vpack.c.b16 %v2459, %v2451
        %v2700 = vpack.c.b16 %v2460, %v2452
        %v2701 = vpack.c.b16 %v2469, %v2461
        %v2702 = vpack.c.b16 %v2470, %v2462
        %v2703 = vpack.c.b16 %v2471, %v2463
        %v2704 = vpack.c.b16 %v2472, %v2464
        %v2705 = vpack.c.b16 %v2473, %v2465
        %v2706 = vpack.c.b16 %v2474, %v2466
        %v2707 = vpack.c.b16 %v2475, %v2467
        %v2708 = vpack.c.b16 %v2476, %v2468
        %v2709 = vpack.c.b16 %v2485, %v2477
        %v2710 = vpack.c.b16 %v2486, %v2478
        %v2711 = vpack.c.b16 %v2487, %v2479
        %v2712 = vpack.c.b16 %v2488, %v2480
        %v2713 = vpack.c.b16 %v2489, %v2481
        %v2714 = vpack.c.b16 %v2490, %v2482
        %v2715 = vpack.c.b16 %v2491, %v2483
        %v2716 = vpack.c.b16 %v2492, %v2484
        %v2717 = vpack.c.b16 %v2501, %v2493
        %v2718 = vpack.c.b16 %v2502, %v2494
        %v2719 = vpack.c.b16 %v2503, %v2495
        %v2720 = vpack.c.b16 %v2504, %v2496
        %v2721 = vpack.c.b16 %v2505, %v2497
        %v2722 = vpack.c.b16 %v2506, %v2498
        %v2723 = vpack.c.b16 %v2507, %v2499
        %v2724 = vpack.c.b16 %v2508, %v2500
        %v2725 = vpack.c.b16 %v2517, %v2509
        %v2726 = vpack.c.b16 %v2518, %v2510
        %v2727 = vpack.c.b16 %v2519, %v2511
        %v2728 = vpack.c.b16 %v2520, %v2512
        %v2729 = vpack.c.b16 %v2521, %v2513
        %v2730 = vpack.c.b16 %v2522, %v2514
        %v2731 = vpack.c.b16 %v2523, %v2515
        %v2732 = vpack.c.b16 %v2524, %v2516
        %v2733 = vpack.c.b16 %v2533, %v2525
        %v2734 = vpack.c.b16 %v2534, %v2526
        %v2735 = vpack.c.b16 %v2535, %v2527
        %v2736 = vpack.c.b16 %v2536, %v2528
        %v2737 = vpack.c.b16 %v2537, %v2529
        %v2738 = vpack.c.b16 %v2538, %v2530
        %v2739 = vpack.c.b16 %v2539, %v2531
        %v2740 = vpack.c.b16 %v2540, %v2532
        %v2741 = vpack.c.b16 %v2549, %v2541
        %v2742 = vpack.c.b16 %v2550, %v2542
        %v2743 = vpack.c.b16 %v2551, %v2543
        %v2744 = vpack.c.b16 %v2552, %v2544
        %v2745 = vpack.c.b16 %v2553, %v2545
        %v2746 = vpack.c.b16 %v2554, %v2546
        %v2747 = vpack.c.b16 %v2555, %v2547
        %v2748 = vpack.c.b16 %v2556, %v2548
        %v2749 = vpack.c.b16 %v2565, %v2557
        %v2750 = vpack.c.b16 %v2566, %v2558
        %v2751 = vpack.c.b16 %v2567, %v2559
        %v2752 = vpack.c.b16 %v2568, %v2560
        %v2753 = vpack.c.b16 %v2569, %v2561
        %v2754 = vpack.c.b16 %v2570, %v2562
        %v2755 = vpack.c.b16 %v2571, %v2563
        %v2756 = vpack.c.b16 %v2572, %v2564
        %v2757 = vpack.c.b16 %v2581, %v2573
        %v2758 = vpack.c.b16 %v2582, %v2574
        %v2759 = vpack.c.b16 %v2583, %v2575
        %v2760 = vpack.c.b16 %v2584, %v2576
        %v2761 = vpack.c.b16 %v2585, %v2577
        %v2762 = vpack.c.b16 %v2586, %v2578
        %v2763 = vpack.c.b16 %v2587, %v2579
        %v2764 = vpack.c.b16 %v2588, %v2580
        %v2765 = vpack.c.b16 %v2597, %v2589
        %v2766 = vpack.c.b16 %v2598, %v2590
        %v2767 = vpack.c.b16 %v2599, %v2591
        %v2768 = vpack.c.b16 %v2600, %v2592
        %v2769 = vpack.c.b16 %v2601, %v2593
        %v2770 = vpack.c.b16 %v2602, %v2594
        %v2771 = vpack.c.b16 %v2603, %v2595
        %v2772 = vpack.c.b16 %v2604, %v2596
        %v2773 = vpack.c.b16 %v2613, %v2605
        %v2774 = vpack.c.b16 %v2614, %v2606
        %v2775 = vpack.c.b16 %v2615, %v2607
        %v2776 = vpack.c.b16 %v2616, %v2608
        %v2777 = vpack.c.b16 %v2617, %v2609
        %v2778 = vpack.c.b16 %v2618, %v2610
        %v2779 = vpack.c.b16 %v2619, %v2611
        %v2780 = vpack.c.b16 %v2620, %v2612
        %v2781 = vpack.c.b16 %v2629, %v2621
        %v2782 = vpack.c.b16 %v2630, %v2622
        %v2783 = vpack.c.b16 %v2631, %v2623
        %v2784 = vpack.c.b16 %v2632, %v2624
        %v2785 = vpack.c.b16 %v2633, %v2625
        %v2786 = vpack.c.b16 %v2634, %v2626
        %v2787 = vpack.c.b16 %v2635, %v2627
        %v2788 = vpack.c.b16 %v2636, %v2628
        %v2789 = vpack.c.b16 %v2645, %v2637
        %v2790 = vpack.c.b16 %v2646, %v2638
        %v2791 = vpack.c.b16 %v2647, %v2639
        %v2792 = vpack.c.b16 %v2648, %v2640
        %v2793 = vpack.c.b16 %v2649, %v2641
        %v2794 = vpack.c.b16 %v2650, %v2642
        %v2795 = vpack.c.b16 %v2651, %v2643
        %v2796 = vpack.c.b16 %v2652, %v2644
        %v2797 = vpack.c.b16 %v2661, %v2653
        %v2798 = vpack.c.b16 %v2662, %v2654
        %v2799 = vpack.c.b16 %v2663, %v2655
        %v2800 = vpack.c.b16 %v2664, %v2656
        %v2801 = vpack.c.b16 %v2665, %v2657
        %v2802 = vpack.c.b16 %v2666, %v2658
        %v2803 = vpack.c.b16 %v2667, %v2659
        %v2804 = vpack.c.b16 %v2668, %v2660
        %v2805 = vpack.c.b16 %v2677, %v2669
        %v2806 = vpack.c.b16 %v2678, %v2670
        %v2807 = vpack.c.b16 %v2679, %v2671
        %v2808 = vpack.c.b16 %v2680, %v2672
        %v2809 = vpack.c.b16 %v2681, %v2673
        %v2810 = vpack.c.b16 %v2682, %v2674
        %v2811 = vpack.c.b16 %v2683, %v2675
        %v2812 = vpack.c.b16 %v2684, %v2676
        %2941 = vmatprep.subr.bf16.mxu0 %v2742
        %2942 = vmatpush1.bf16.msra.mxu0 %v2741
        %2943 = vmatprep.subr.bf16.mxu0 %v2734
        %2944 = vmatpush1.bf16.msra.mxu0 %v2733
        %2945 = vmatprep.subr.bf16.mxu0 %v2726
        %2946 = vmatpush1.bf16.msra.mxu0 %v2725
        %2947 = vmatprep.subr.bf16.mxu0 %v2718
        %2948 = vmatpush1.bf16.msra.mxu0 %v2717
        %2949 = vmatprep.subr.bf16.mxu0 %v2710
        %2950 = vmatpush1.bf16.msra.mxu0 %v2709
        %2951 = vmatprep.subr.bf16.mxu0 %v2702
        %2952 = vmatpush1.bf16.msra.mxu0 %v2701
        %2953 = vmatprep.subr.bf16.mxu0 %v2694
        %2954 = vmatpush1.bf16.msra.mxu0 %v2693
        %2955 = vmatprep.subr.bf16.mxu0 %v2686
        %2956 = vmatpush1.bf16.msra.mxu0 %v2685
        %2957 = vmatprep.subr.bf16.mxu0 %v2806
        %2958 = vmatpush2.bf16.msra.mxu0 %v2805
        %2959 = vmatprep.subr.bf16.mxu0 %v2798
        %2960 = vmatpush2.bf16.msra.mxu0 %v2797
        %2961 = vmatprep.subr.bf16.mxu0 %v2790
        %2962 = vmatpush2.bf16.msra.mxu0 %v2789
        %2963 = vmatprep.subr.bf16.mxu0 %v2782
        %2964 = vmatpush2.bf16.msra.mxu0 %v2781
        %2965 = vmatprep.subr.bf16.mxu0 %v2774
        %2966 = vmatpush2.bf16.msra.mxu0 %v2773
        %2967 = vmatprep.subr.bf16.mxu0 %v2766
        %2968 = vmatpush2.bf16.msra.mxu0 %v2765
        %2969 = vmatprep.subr.bf16.mxu0 %v2758
        %2970 = vmatpush2.bf16.msra.mxu0 %v2757
        %2971 = vmatprep.subr.bf16.mxu0 %v2750
        %2972 = vmatpush2.bf16.msra.mxu0 %v2749
        %2973 = vmatprep.mubr.bf16.mxu0 0
        %2974 = vmatmul.mubr.bf16.gmra.mxu0 0
        %v2975 = vpop.f32.mrf.mxu0
        %v2976 = vadd.f32 0.0, %v2975
        %v2977 = vpop.f32.mrf.mxu0
        %v2978 = vadd.f32 0.0, %v2977
        %v2979 = vpop.f32.mrf.mxu0
        %v2980 = vpop.f32.mrf.mxu0
        %2981 = vdwg.mxu0
        %2982 = vmatprep.subr.bf16.mxu0 %v2744
        %2983 = vmatpush1.bf16.msra.mxu0 %v2743
        %2984 = vmatprep.subr.bf16.mxu0 %v2736
        %2985 = vmatpush1.bf16.msra.mxu0 %v2735
        %2986 = vmatprep.subr.bf16.mxu0 %v2728
        %2987 = vmatpush1.bf16.msra.mxu0 %v2727
        %2988 = vmatprep.subr.bf16.mxu0 %v2720
        %2989 = vmatpush1.bf16.msra.mxu0 %v2719
        %2990 = vmatprep.subr.bf16.mxu0 %v2712
        %2991 = vmatpush1.bf16.msra.mxu0 %v2711
        %2992 = vmatprep.subr.bf16.mxu0 %v2704
        %2993 = vmatpush1.bf16.msra.mxu0 %v2703
        %2994 = vmatprep.subr.bf16.mxu0 %v2696
        %2995 = vmatpush1.bf16.msra.mxu0 %v2695
        %2996 = vmatprep.subr.bf16.mxu0 %v2688
        %2997 = vmatpush1.bf16.msra.mxu0 %v2687
        %2998 = vmatprep.subr.bf16.mxu0 %v2808
        %2999 = vmatpush2.bf16.msra.mxu0 %v2807
        %3000 = vmatprep.subr.bf16.mxu0 %v2800
        %3001 = vmatpush2.bf16.msra.mxu0 %v2799
        %3002 = vmatprep.subr.bf16.mxu0 %v2792
        %3003 = vmatpush2.bf16.msra.mxu0 %v2791
        %3004 = vmatprep.subr.bf16.mxu0 %v2784
        %3005 = vmatpush2.bf16.msra.mxu0 %v2783
        %3006 = vmatprep.subr.bf16.mxu0 %v2776
        %3007 = vmatpush2.bf16.msra.mxu0 %v2775
        %3008 = vmatprep.subr.bf16.mxu0 %v2768
        %3009 = vmatpush2.bf16.msra.mxu0 %v2767
        %3010 = vmatprep.subr.bf16.mxu0 %v2760
        %3011 = vmatpush2.bf16.msra.mxu0 %v2759
        %3012 = vmatprep.subr.bf16.mxu0 %v2752
        %3013 = vmatpush2.bf16.msra.mxu0 %v2751
        %3014 = vmatprep.mubr.bf16.mxu0 0
        %3015 = vmatmul.mubr.bf16.gmra.mxu0 0
        %v3016 = vpop.f32.mrf.mxu0
        %v3017 = vadd.f32 0.0, %v3016
        %v3018 = vpop.f32.mrf.mxu0
        %v3019 = vadd.f32 0.0, %v3018
        %v3020 = vpop.f32.mrf.mxu0
        %v3021 = vpop.f32.mrf.mxu0
        %3022 = vdwg.mxu0
        %3023 = vmatprep.subr.bf16.mxu0 %v2746
        %3024 = vmatpush1.bf16.msra.mxu0 %v2745
        %3025 = vmatprep.subr.bf16.mxu0 %v2738
        %3026 = vmatpush1.bf16.msra.mxu0 %v2737
        %3027 = vmatprep.subr.bf16.mxu0 %v2730
        %3028 = vmatpush1.bf16.msra.mxu0 %v2729
        %3029 = vmatprep.subr.bf16.mxu0 %v2722
        %3030 = vmatpush1.bf16.msra.mxu0 %v2721
        %3031 = vmatprep.subr.bf16.mxu0 %v2714
        %3032 = vmatpush1.bf16.msra.mxu0 %v2713
        %3033 = vmatprep.subr.bf16.mxu0 %v2706
        %3034 = vmatpush1.bf16.msra.mxu0 %v2705
        %3035 = vmatprep.subr.bf16.mxu0 %v2698
        %3036 = vmatpush1.bf16.msra.mxu0 %v2697
        %3037 = vmatprep.subr.bf16.mxu0 %v2690
        %3038 = vmatpush1.bf16.msra.mxu0 %v2689
        %3039 = vmatprep.subr.bf16.mxu0 %v2810
        %3040 = vmatpush2.bf16.msra.mxu0 %v2809
        %3041 = vmatprep.subr.bf16.mxu0 %v2802
        %3042 = vmatpush2.bf16.msra.mxu0 %v2801
        %3043 = vmatprep.subr.bf16.mxu0 %v2794
        %3044 = vmatpush2.bf16.msra.mxu0 %v2793
        %3045 = vmatprep.subr.bf16.mxu0 %v2786
        %3046 = vmatpush2.bf16.msra.mxu0 %v2785
        %3047 = vmatprep.subr.bf16.mxu0 %v2778
        %3048 = vmatpush2.bf16.msra.mxu0 %v2777
        %3049 = vmatprep.subr.bf16.mxu0 %v2770
        %3050 = vmatpush2.bf16.msra.mxu0 %v2769
        %3051 = vmatprep.subr.bf16.mxu0 %v2762
        %3052 = vmatpush2.bf16.msra.mxu0 %v2761
        %3053 = vmatprep.subr.bf16.mxu0 %v2754
        %3054 = vmatpush2.bf16.msra.mxu0 %v2753
        %3055 = vmatprep.mubr.bf16.mxu0 0
        %3056 = vmatmul.mubr.bf16.gmra.mxu0 0
        %v3057 = vpop.f32.mrf.mxu0
        %v3058 = vadd.f32 0.0, %v3057
        %v3059 = vpop.f32.mrf.mxu0
        %v3060 = vadd.f32 0.0, %v3059
        %v3061 = vpop.f32.mrf.mxu0
        %v3062 = vpop.f32.mrf.mxu0
        %3063 = vdwg.mxu0
        %3064 = vmatprep.subr.bf16.mxu0 %v2748
        %3065 = vmatpush1.bf16.msra.mxu0 %v2747
        %3066 = vmatprep.subr.bf16.mxu0 %v2740
        %3067 = vmatpush1.bf16.msra.mxu0 %v2739
        %3068 = vmatprep.subr.bf16.mxu0 %v2732
        %3069 = vmatpush1.bf16.msra.mxu0 %v2731
        %3070 = vmatprep.subr.bf16.mxu0 %v2724
        %3071 = vmatpush1.bf16.msra.mxu0 %v2723
        %3072 = vmatprep.subr.bf16.mxu0 %v2716
        %3073 = vmatpush1.bf16.msra.mxu0 %v2715
        %3074 = vmatprep.subr.bf16.mxu0 %v2708
        %3075 = vmatpush1.bf16.msra.mxu0 %v2707
        %3076 = vmatprep.subr.bf16.mxu0 %v2700
        %3077 = vmatpush1.bf16.msra.mxu0 %v2699
        %3078 = vmatprep.subr.bf16.mxu0 %v2692
        %3079 = vmatpush1.bf16.msra.mxu0 %v2691
        %3080 = vmatprep.subr.bf16.mxu0 %v2812
        %3081 = vmatpush2.bf16.msra.mxu0 %v2811
        %3082 = vmatprep.subr.bf16.mxu0 %v2804
        %3083 = vmatpush2.bf16.msra.mxu0 %v2803
        %3084 = vmatprep.subr.bf16.mxu0 %v2796
        %3085 = vmatpush2.bf16.msra.mxu0 %v2795
        %3086 = vmatprep.subr.bf16.mxu0 %v2788
        %3087 = vmatpush2.bf16.msra.mxu0 %v2787
        %3088 = vmatprep.subr.bf16.mxu0 %v2780
        %3089 = vmatpush2.bf16.msra.mxu0 %v2779
        %3090 = vmatprep.subr.bf16.mxu0 %v2772
        %3091 = vmatpush2.bf16.msra.mxu0 %v2771
        %3092 = vmatprep.subr.bf16.mxu0 %v2764
        %3093 = vmatpush2.bf16.msra.mxu0 %v2763
        %3094 = vmatprep.subr.bf16.mxu0 %v2756
        %3095 = vmatpush2.bf16.msra.mxu0 %v2755
        %3096 = vmatprep.mubr.bf16.mxu0 0
        %3097 = vmatmul.mubr.bf16.gmra.mxu0 0
        %v3098 = vpop.f32.mrf.mxu0
        %v3099 = vadd.f32 0.0, %v3098
        %v3100 = vpop.f32.mrf.mxu0
        %v3101 = vadd.f32 0.0, %v3100
        %v3102 = vpop.f32.mrf.mxu0
        %v3103 = vpop.f32.mrf.mxu0
        %3104 = vdwg.mxu0
        %s3105 = smul.u32 %s2172, 8
        %s3106 = smul.addr %s3105, 8
        %s3107 = scalar_lea.vmem [#allocation2], %s3106
        %v3108 = vld [vmem:[%s3107] sm:$0xff]
        %v3109 = vld [vmem:[%s3107 + $0x8] sm:$0xff]
        %v3110 = vld [vmem:[%s3107 + $0x10] sm:$0xff]
        %v3111 = vld [vmem:[%s3107 + $0x18] sm:$0xff]
        %v3112 = vld [vmem:[%s3107 + $0x20] sm:$0xff]
        %v3113 = vld [vmem:[%s3107 + $0x28] sm:$0xff]
        %v3114 = vld [vmem:[%s3107 + $0x30] sm:$0xff]
        %v3115 = vld [vmem:[%s3107 + $0x38] sm:$0xff]
        %v3116 = vadd.f32 %v3108, %v2976
        %v3117 = vadd.f32 %v3109, %v2978
        %v3118 = vadd.f32 %v3110, %v3017
        %v3119 = vadd.f32 %v3111, %v3019
        %v3120 = vadd.f32 %v3112, %v3058
        %v3121 = vadd.f32 %v3113, %v3060
        %v3122 = vadd.f32 %v3114, %v3099
        %v3123 = vadd.f32 %v3115, %v3101
        %v3124 = vxor.u32 %v3116, 2147483648
        %v3125 = vxor.u32 %v3117, 2147483648
        %v3126 = vmul.f32 %v3124, 1.442695
        %v3127 = vpow.pop %v3126
        %v3128 = vmul.f32 %v3125, 1.442695
        %v3129 = vpow.pop %v3128
        %v3130 = vadd.f32 %v3127, 1.0
        %v3131 = vadd.f32 %v3129, 1.0
        %v3132 = vrcp.pop %v3130
        %v3133 = vmul.f32 1.0, %v3132
        %v3134 = vrcp.pop %v3131
        %v3135 = vmul.f32 1.0, %v3134
        %v3136 = vxor.u32 %v3118, 2147483648
        %v3137 = vxor.u32 %v3119, 2147483648
        %v3138 = vmul.f32 %v3136, 1.442695
        %v3139 = vpow.pop %v3138
        %v3140 = vmul.f32 %v3137, 1.442695
        %v3141 = vpow.pop %v3140
        %v3142 = vadd.f32 %v3139, 1.0
        %v3143 = vadd.f32 %v3141, 1.0
        %v3144 = vrcp.pop %v3142
        %v3145 = vmul.f32 1.0, %v3144
        %v3146 = vrcp.pop %v3143
        %v3147 = vmul.f32 1.0, %v3146
        %v3148 = vtanh.pop %v3120
        %v3149 = vtanh.pop %v3121
        %v3150 = vxor.u32 %v3122, 2147483648
        %v3151 = vxor.u32 %v3123, 2147483648
        %v3152 = vmul.f32 %v3150, 1.442695
        %v3153 = vpow.pop %v3152
        %v3154 = vmul.f32 %v3151, 1.442695
        %v3155 = vpow.pop %v3154
        %v3156 = vadd.f32 %v3153, 1.0
        %v3157 = vadd.f32 %v3155, 1.0
        %v3158 = vrcp.pop %v3156
        %v3159 = vmul.f32 1.0, %v3158
        %v3160 = vrcp.pop %v3157
        %v3161 = vmul.f32 1.0, %v3160
        %v3162 = vmul.f32 %v3145, 0.0
        %v3163 = vmul.f32 %v3147, 0.0
        %v3164 = vmul.f32 %v3133, %v3148
        %v3165 = vmul.f32 %v3135, %v3149
        %v3166 = vadd.f32 %v3162, %v3164
        %v3167 = vadd.f32 %v3163, %v3165
        %v3168 = vtanh.pop %v3166
        %v3169 = vtanh.pop %v3167
        %v3170 = vmul.f32 %v3159, %v3168
        %v3171 = vmul.f32 %v3161, %v3169
        %s3172 = smul.u32 %s21, 5
        %s3173 = sadd.s32 %s3172, 1
        %v3174 = vpack.c.bf16 %v3170, %v3170
        %v3175 = vpack.c.bf16 %v3171, %v3171
        %3176 = vmatprep.subr.bf16.mxu0 %v2742
        %3177 = vmatpush1.bf16.msra.mxu0 %v2741
        %3178 = vmatprep.subr.bf16.mxu0 %v2734
        %3179 = vmatpush1.bf16.msra.mxu0 %v2733
        %3180 = vmatprep.subr.bf16.mxu0 %v2726
        %3181 = vmatpush1.bf16.msra.mxu0 %v2725
        %3182 = vmatprep.subr.bf16.mxu0 %v2718
        %3183 = vmatpush1.bf16.msra.mxu0 %v2717
        %3184 = vmatprep.subr.bf16.mxu0 %v2710
        %3185 = vmatpush1.bf16.msra.mxu0 %v2709
        %3186 = vmatprep.subr.bf16.mxu0 %v2702
        %3187 = vmatpush1.bf16.msra.mxu0 %v2701
        %3188 = vmatprep.subr.bf16.mxu0 %v2694
        %3189 = vmatpush1.bf16.msra.mxu0 %v2693
        %3190 = vmatprep.subr.bf16.mxu0 %v2686
        %3191 = vmatpush1.bf16.msra.mxu0 %v2685
        %3192 = vmatprep.subr.bf16.mxu0 %v2806
        %3193 = vmatpush2.bf16.msra.mxu0 %v2805
        %3194 = vmatprep.subr.bf16.mxu0 %v2798
        %3195 = vmatpush2.bf16.msra.mxu0 %v2797
        %3196 = vmatprep.subr.bf16.mxu0 %v2790
        %3197 = vmatpush2.bf16.msra.mxu0 %v2789
        %3198 = vmatprep.subr.bf16.mxu0 %v2782
        %3199 = vmatpush2.bf16.msra.mxu0 %v2781
        %3200 = vmatprep.subr.bf16.mxu0 %v2774
        %3201 = vmatpush2.bf16.msra.mxu0 %v2773
        %3202 = vmatprep.subr.bf16.mxu0 %v2766
        %3203 = vmatpush2.bf16.msra.mxu0 %v2765
        %3204 = vmatprep.subr.bf16.mxu0 %v2758
        %3205 = vmatpush2.bf16.msra.mxu0 %v2757
        %3206 = vmatprep.subr.bf16.mxu0 %v2750
        %3207 = vmatpush2.bf16.msra.mxu0 %v2749
        %3208 = vmatprep.mubr.bf16.mxu0 %v3175
        %3209 = vmatmul.mubr.bf16.gmra.mxu0 %v3174
        %v3210 = vpop.f32.mrf.mxu0
        %v3211 = vadd.f32 0.0, %v3210
        %v3212 = vpop.f32.mrf.mxu0
        %v3213 = vadd.f32 0.0, %v3212
        %v3214 = vpop.f32.mrf.mxu0
        %v3215 = vpop.f32.mrf.mxu0
        %3216 = vdwg.mxu0
        %3217 = vmatprep.subr.bf16.mxu0 %v2744
        %3218 = vmatpush1.bf16.msra.mxu0 %v2743
        %3219 = vmatprep.subr.bf16.mxu0 %v2736
        %3220 = vmatpush1.bf16.msra.mxu0 %v2735
        %3221 = vmatprep.subr.bf16.mxu0 %v2728
        %3222 = vmatpush1.bf16.msra.mxu0 %v2727
        %3223 = vmatprep.subr.bf16.mxu0 %v2720
        %3224 = vmatpush1.bf16.msra.mxu0 %v2719
        %3225 = vmatprep.subr.bf16.mxu0 %v2712
        %3226 = vmatpush1.bf16.msra.mxu0 %v2711
        %3227 = vmatprep.subr.bf16.mxu0 %v2704
        %3228 = vmatpush1.bf16.msra.mxu0 %v2703
        %3229 = vmatprep.subr.bf16.mxu0 %v2696
        %3230 = vmatpush1.bf16.msra.mxu0 %v2695
        %3231 = vmatprep.subr.bf16.mxu0 %v2688
        %3232 = vmatpush1.bf16.msra.mxu0 %v2687
        %3233 = vmatprep.subr.bf16.mxu0 %v2808
        %3234 = vmatpush2.bf16.msra.mxu0 %v2807
        %3235 = vmatprep.subr.bf16.mxu0 %v2800
        %3236 = vmatpush2.bf16.msra.mxu0 %v2799
        %3237 = vmatprep.subr.bf16.mxu0 %v2792
        %3238 = vmatpush2.bf16.msra.mxu0 %v2791
        %3239 = vmatprep.subr.bf16.mxu0 %v2784
        %3240 = vmatpush2.bf16.msra.mxu0 %v2783
        %3241 = vmatprep.subr.bf16.mxu0 %v2776
        %3242 = vmatpush2.bf16.msra.mxu0 %v2775
        %3243 = vmatprep.subr.bf16.mxu0 %v2768
        %3244 = vmatpush2.bf16.msra.mxu0 %v2767
        %3245 = vmatprep.subr.bf16.mxu0 %v2760
        %3246 = vmatpush2.bf16.msra.mxu0 %v2759
        %3247 = vmatprep.subr.bf16.mxu0 %v2752
        %3248 = vmatpush2.bf16.msra.mxu0 %v2751
        %3249 = vmatprep.mubr.bf16.mxu0 %v3175
        %3250 = vmatmul.mubr.bf16.gmra.mxu0 %v3174
        %v3251 = vpop.f32.mrf.mxu0
        %v3252 = vadd.f32 0.0, %v3251
        %v3253 = vpop.f32.mrf.mxu0
        %v3254 = vadd.f32 0.0, %v3253
        %v3255 = vpop.f32.mrf.mxu0
        %v3256 = vpop.f32.mrf.mxu0
        %3257 = vdwg.mxu0
        %3258 = vmatprep.subr.bf16.mxu0 %v2746
        %3259 = vmatpush1.bf16.msra.mxu0 %v2745
        %3260 = vmatprep.subr.bf16.mxu0 %v2738
        %3261 = vmatpush1.bf16.msra.mxu0 %v2737
        %3262 = vmatprep.subr.bf16.mxu0 %v2730
        %3263 = vmatpush1.bf16.msra.mxu0 %v2729
        %3264 = vmatprep.subr.bf16.mxu0 %v2722
        %3265 = vmatpush1.bf16.msra.mxu0 %v2721
        %3266 = vmatprep.subr.bf16.mxu0 %v2714
        %3267 = vmatpush1.bf16.msra.mxu0 %v2713
        %3268 = vmatprep.subr.bf16.mxu0 %v2706
        %3269 = vmatpush1.bf16.msra.mxu0 %v2705
        %3270 = vmatprep.subr.bf16.mxu0 %v2698
        %3271 = vmatpush1.bf16.msra.mxu0 %v2697
        %3272 = vmatprep.subr.bf16.mxu0 %v2690
        %3273 = vmatpush1.bf16.msra.mxu0 %v2689
        %3274 = vmatprep.subr.bf16.mxu0 %v2810
        %3275 = vmatpush2.bf16.msra.mxu0 %v2809
        %3276 = vmatprep.subr.bf16.mxu0 %v2802
        %3277 = vmatpush2.bf16.msra.mxu0 %v2801
        %3278 = vmatprep.subr.bf16.mxu0 %v2794
        %3279 = vmatpush2.bf16.msra.mxu0 %v2793
        %3280 = vmatprep.subr.bf16.mxu0 %v2786
        %3281 = vmatpush2.bf16.msra.mxu0 %v2785
        %3282 = vmatprep.subr.bf16.mxu0 %v2778
        %3283 = vmatpush2.bf16.msra.mxu0 %v2777
        %3284 = vmatprep.subr.bf16.mxu0 %v2770
        %3285 = vmatpush2.bf16.msra.mxu0 %v2769
        %3286 = vmatprep.subr.bf16.mxu0 %v2762
        %3287 = vmatpush2.bf16.msra.mxu0 %v2761
        %3288 = vmatprep.subr.bf16.mxu0 %v2754
        %3289 = vmatpush2.bf16.msra.mxu0 %v2753
        %3290 = vmatprep.mubr.bf16.mxu0 %v3175
        %3291 = vmatmul.mubr.bf16.gmra.mxu0 %v3174
        %v3292 = vpop.f32.mrf.mxu0
        %v3293 = vadd.f32 0.0, %v3292
        %v3294 = vpop.f32.mrf.mxu0
        %v3295 = vadd.f32 0.0, %v3294
        %v3296 = vpop.f32.mrf.mxu0
        %v3297 = vpop.f32.mrf.mxu0
        %3298 = vdwg.mxu0
        %3299 = vmatprep.subr.bf16.mxu0 %v2748
        %3300 = vmatpush1.bf16.msra.mxu0 %v2747
        %3301 = vmatprep.subr.bf16.mxu0 %v2740
        %3302 = vmatpush1.bf16.msra.mxu0 %v2739
        %3303 = vmatprep.subr.bf16.mxu0 %v2732
        %3304 = vmatpush1.bf16.msra.mxu0 %v2731
        %3305 = vmatprep.subr.bf16.mxu0 %v2724
        %3306 = vmatpush1.bf16.msra.mxu0 %v2723
        %3307 = vmatprep.subr.bf16.mxu0 %v2716
        %3308 = vmatpush1.bf16.msra.mxu0 %v2715
        %3309 = vmatprep.subr.bf16.mxu0 %v2708
        %3310 = vmatpush1.bf16.msra.mxu0 %v2707
        %3311 = vmatprep.subr.bf16.mxu0 %v2700
        %3312 = vmatpush1.bf16.msra.mxu0 %v2699
        %3313 = vmatprep.subr.bf16.mxu0 %v2692
        %3314 = vmatpush1.bf16.msra.mxu0 %v2691
        %3315 = vmatprep.subr.bf16.mxu0 %v2812
        %3316 = vmatpush2.bf16.msra.mxu0 %v2811
        %3317 = vmatprep.subr.bf16.mxu0 %v2804
        %3318 = vmatpush2.bf16.msra.mxu0 %v2803
        %3319 = vmatprep.subr.bf16.mxu0 %v2796
        %3320 = vmatpush2.bf16.msra.mxu0 %v2795
        %3321 = vmatprep.subr.bf16.mxu0 %v2788
        %3322 = vmatpush2.bf16.msra.mxu0 %v2787
        %3323 = vmatprep.subr.bf16.mxu0 %v2780
        %3324 = vmatpush2.bf16.msra.mxu0 %v2779
        %3325 = vmatprep.subr.bf16.mxu0 %v2772
        %3326 = vmatpush2.bf16.msra.mxu0 %v2771
        %3327 = vmatprep.subr.bf16.mxu0 %v2764
        %3328 = vmatpush2.bf16.msra.mxu0 %v2763
        %3329 = vmatprep.subr.bf16.mxu0 %v2756
        %3330 = vmatpush2.bf16.msra.mxu0 %v2755
        %3331 = vmatprep.mubr.bf16.mxu0 %v3175
        %3332 = vmatmul.mubr.bf16.gmra.mxu0 %v3174
        %v3333 = vpop.f32.mrf.mxu0
        %v3334 = vadd.f32 0.0, %v3333
        %v3335 = vpop.f32.mrf.mxu0
        %v3336 = vadd.f32 0.0, %v3335
        %v3337 = vpop.f32.mrf.mxu0
        %v3338 = vpop.f32.mrf.mxu0
        %3339 = vdwg.mxu0
        %s3340 = smul.u32 %s3173, 8
        %s3341 = smul.addr %s3340, 8
        %s3342 = scalar_lea.vmem [#allocation2], %s3341
        %v3343 = vld [vmem:[%s3342] sm:$0xff]
        %v3344 = vld [vmem:[%s3342 + $0x8] sm:$0xff]
        %v3345 = vld [vmem:[%s3342 + $0x10] sm:$0xff]
        %v3346 = vld [vmem:[%s3342 + $0x18] sm:$0xff]
        %v3347 = vld [vmem:[%s3342 + $0x20] sm:$0xff]
        %v3348 = vld [vmem:[%s3342 + $0x28] sm:$0xff]
        %v3349 = vld [vmem:[%s3342 + $0x30] sm:$0xff]
        %v3350 = vld [vmem:[%s3342 + $0x38] sm:$0xff]
        %v3351 = vadd.f32 %v3343, %v3211
        %v3352 = vadd.f32 %v3344, %v3213
        %v3353 = vadd.f32 %v3345, %v3252
        %v3354 = vadd.f32 %v3346, %v3254
        %v3355 = vadd.f32 %v3347, %v3293
        %v3356 = vadd.f32 %v3348, %v3295
        %v3357 = vadd.f32 %v3349, %v3334
        %v3358 = vadd.f32 %v3350, %v3336
        %v3359 = vxor.u32 %v3351, 2147483648
        %v3360 = vxor.u32 %v3352, 2147483648
        %v3361 = vmul.f32 %v3359, 1.442695
        %v3362 = vpow.pop %v3361
        %v3363 = vmul.f32 %v3360, 1.442695
        %v3364 = vpow.pop %v3363
        %v3365 = vadd.f32 %v3362, 1.0
        %v3366 = vadd.f32 %v3364, 1.0
        %v3367 = vrcp.pop %v3365
        %v3368 = vmul.f32 1.0, %v3367
        %v3369 = vrcp.pop %v3366
        %v3370 = vmul.f32 1.0, %v3369
        %v3371 = vxor.u32 %v3353, 2147483648
        %v3372 = vxor.u32 %v3354, 2147483648
        %v3373 = vmul.f32 %v3371, 1.442695
        %v3374 = vpow.pop %v3373
        %v3375 = vmul.f32 %v3372, 1.442695
        %v3376 = vpow.pop %v3375
        %v3377 = vadd.f32 %v3374, 1.0
        %v3378 = vadd.f32 %v3376, 1.0
        %v3379 = vrcp.pop %v3377
        %v3380 = vmul.f32 1.0, %v3379
        %v3381 = vrcp.pop %v3378
        %v3382 = vmul.f32 1.0, %v3381
        %v3383 = vtanh.pop %v3355
        %v3384 = vtanh.pop %v3356
        %v3385 = vxor.u32 %v3357, 2147483648
        %v3386 = vxor.u32 %v3358, 2147483648
        %v3387 = vmul.f32 %v3385, 1.442695
        %v3388 = vpow.pop %v3387
        %v3389 = vmul.f32 %v3386, 1.442695
        %v3390 = vpow.pop %v3389
        %v3391 = vadd.f32 %v3388, 1.0
        %v3392 = vadd.f32 %v3390, 1.0
        %v3393 = vrcp.pop %v3391
        %v3394 = vmul.f32 1.0, %v3393
        %v3395 = vrcp.pop %v3392
        %v3396 = vmul.f32 1.0, %v3395
        %v3397 = vmul.f32 %v3380, %v3166
        %v3398 = vmul.f32 %v3382, %v3167
        %v3399 = vmul.f32 %v3368, %v3383
        %v3400 = vmul.f32 %v3370, %v3384
        %v3401 = vadd.f32 %v3397, %v3399
        %v3402 = vadd.f32 %v3398, %v3400
        %v3403 = vtanh.pop %v3401
        %v3404 = vtanh.pop %v3402
        %v3405 = vmul.f32 %v3394, %v3403
        %v3406 = vmul.f32 %v3396, %v3404
        %s3407 = smul.u32 %s21, 3
        %s3408 = sadd.s32 %s3407, 2
        %v3409 = vpack.c.bf16 %v3405, %v3405
        %v3410 = vpack.c.bf16 %v3406, %v3406
        %3411 = vmatprep.subr.bf16.mxu0 %v2742
        %3412 = vmatpush1.bf16.msra.mxu0 %v2741
        %3413 = vmatprep.subr.bf16.mxu0 %v2734
        %3414 = vmatpush1.bf16.msra.mxu0 %v2733
        %3415 = vmatprep.subr.bf16.mxu0 %v2726
        %3416 = vmatpush1.bf16.msra.mxu0 %v2725
        %3417 = vmatprep.subr.bf16.mxu0 %v2718
        %3418 = vmatpush1.bf16.msra.mxu0 %v2717
        %3419 = vmatprep.subr.bf16.mxu0 %v2710
        %3420 = vmatpush1.bf16.msra.mxu0 %v2709
        %3421 = vmatprep.subr.bf16.mxu0 %v2702
        %3422 = vmatpush1.bf16.msra.mxu0 %v2701
        %3423 = vmatprep.subr.bf16.mxu0 %v2694
        %3424 = vmatpush1.bf16.msra.mxu0 %v2693
        %3425 = vmatprep.subr.bf16.mxu0 %v2686
        %3426 = vmatpush1.bf16.msra.mxu0 %v2685
        %3427 = vmatprep.subr.bf16.mxu0 %v2806
        %3428 = vmatpush2.bf16.msra.mxu0 %v2805
        %3429 = vmatprep.subr.bf16.mxu0 %v2798
        %3430 = vmatpush2.bf16.msra.mxu0 %v2797
        %3431 = vmatprep.subr.bf16.mxu0 %v2790
        %3432 = vmatpush2.bf16.msra.mxu0 %v2789
        %3433 = vmatprep.subr.bf16.mxu0 %v2782
        %3434 = vmatpush2.bf16.msra.mxu0 %v2781
        %3435 = vmatprep.subr.bf16.mxu0 %v2774
        %3436 = vmatpush2.bf16.msra.mxu0 %v2773
        %3437 = vmatprep.subr.bf16.mxu0 %v2766
        %3438 = vmatpush2.bf16.msra.mxu0 %v2765
        %3439 = vmatprep.subr.bf16.mxu0 %v2758
        %3440 = vmatpush2.bf16.msra.mxu0 %v2757
        %3441 = vmatprep.subr.bf16.mxu0 %v2750
        %3442 = vmatpush2.bf16.msra.mxu0 %v2749
        %3443 = vmatprep.mubr.bf16.mxu0 %v3410
        %3444 = vmatmul.mubr.bf16.gmra.mxu0 %v3409
        %v3445 = vpop.f32.mrf.mxu0
        %v3446 = vadd.f32 0.0, %v3445
        %v3447 = vpop.f32.mrf.mxu0
        %v3448 = vadd.f32 0.0, %v3447
        %v3449 = vpop.f32.mrf.mxu0
        %v3450 = vpop.f32.mrf.mxu0
        %3451 = vdwg.mxu0
        %3452 = vmatprep.subr.bf16.mxu0 %v2744
        %3453 = vmatpush1.bf16.msra.mxu0 %v2743
        %3454 = vmatprep.subr.bf16.mxu0 %v2736
        %3455 = vmatpush1.bf16.msra.mxu0 %v2735
        %3456 = vmatprep.subr.bf16.mxu0 %v2728
        %3457 = vmatpush1.bf16.msra.mxu0 %v2727
        %3458 = vmatprep.subr.bf16.mxu0 %v2720
        %3459 = vmatpush1.bf16.msra.mxu0 %v2719
        %3460 = vmatprep.subr.bf16.mxu0 %v2712
        %3461 = vmatpush1.bf16.msra.mxu0 %v2711
        %3462 = vmatprep.subr.bf16.mxu0 %v2704
        %3463 = vmatpush1.bf16.msra.mxu0 %v2703
        %3464 = vmatprep.subr.bf16.mxu0 %v2696
        %3465 = vmatpush1.bf16.msra.mxu0 %v2695
        %3466 = vmatprep.subr.bf16.mxu0 %v2688
        %3467 = vmatpush1.bf16.msra.mxu0 %v2687
        %3468 = vmatprep.subr.bf16.mxu0 %v2808
        %3469 = vmatpush2.bf16.msra.mxu0 %v2807
        %3470 = vmatprep.subr.bf16.mxu0 %v2800
        %3471 = vmatpush2.bf16.msra.mxu0 %v2799
        %3472 = vmatprep.subr.bf16.mxu0 %v2792
        %3473 = vmatpush2.bf16.msra.mxu0 %v2791
        %3474 = vmatprep.subr.bf16.mxu0 %v2784
        %3475 = vmatpush2.bf16.msra.mxu0 %v2783
        %3476 = vmatprep.subr.bf16.mxu0 %v2776
        %3477 = vmatpush2.bf16.msra.mxu0 %v2775
        %3478 = vmatprep.subr.bf16.mxu0 %v2768
        %3479 = vmatpush2.bf16.msra.mxu0 %v2767
        %3480 = vmatprep.subr.bf16.mxu0 %v2760
        %3481 = vmatpush2.bf16.msra.mxu0 %v2759
        %3482 = vmatprep.subr.bf16.mxu0 %v2752
        %3483 = vmatpush2.bf16.msra.mxu0 %v2751
        %3484 = vmatprep.mubr.bf16.mxu0 %v3410
        %3485 = vmatmul.mubr.bf16.gmra.mxu0 %v3409
        %v3486 = vpop.f32.mrf.mxu0
        %v3487 = vadd.f32 0.0, %v3486
        %v3488 = vpop.f32.mrf.mxu0
        %v3489 = vadd.f32 0.0, %v3488
        %v3490 = vpop.f32.mrf.mxu0
        %v3491 = vpop.f32.mrf.mxu0
        %3492 = vdwg.mxu0
        %3493 = vmatprep.subr.bf16.mxu0 %v2746
        %3494 = vmatpush1.bf16.msra.mxu0 %v2745
        %3495 = vmatprep.subr.bf16.mxu0 %v2738
        %3496 = vmatpush1.bf16.msra.mxu0 %v2737
        %3497 = vmatprep.subr.bf16.mxu0 %v2730
        %3498 = vmatpush1.bf16.msra.mxu0 %v2729
        %3499 = vmatprep.subr.bf16.mxu0 %v2722
        %3500 = vmatpush1.bf16.msra.mxu0 %v2721
        %3501 = vmatprep.subr.bf16.mxu0 %v2714
        %3502 = vmatpush1.bf16.msra.mxu0 %v2713
        %3503 = vmatprep.subr.bf16.mxu0 %v2706
        %3504 = vmatpush1.bf16.msra.mxu0 %v2705
        %3505 = vmatprep.subr.bf16.mxu0 %v2698
        %3506 = vmatpush1.bf16.msra.mxu0 %v2697
        %3507 = vmatprep.subr.bf16.mxu0 %v2690
        %3508 = vmatpush1.bf16.msra.mxu0 %v2689
        %3509 = vmatprep.subr.bf16.mxu0 %v2810
        %3510 = vmatpush2.bf16.msra.mxu0 %v2809
        %3511 = vmatprep.subr.bf16.mxu0 %v2802
        %3512 = vmatpush2.bf16.msra.mxu0 %v2801
        %3513 = vmatprep.subr.bf16.mxu0 %v2794
        %3514 = vmatpush2.bf16.msra.mxu0 %v2793
        %3515 = vmatprep.subr.bf16.mxu0 %v2786
        %3516 = vmatpush2.bf16.msra.mxu0 %v2785
        %3517 = vmatprep.subr.bf16.mxu0 %v2778
        %3518 = vmatpush2.bf16.msra.mxu0 %v2777
        %3519 = vmatprep.subr.bf16.mxu0 %v2770
        %3520 = vmatpush2.bf16.msra.mxu0 %v2769
        %3521 = vmatprep.subr.bf16.mxu0 %v2762
        %3522 = vmatpush2.bf16.msra.mxu0 %v2761
        %3523 = vmatprep.subr.bf16.mxu0 %v2754
        %3524 = vmatpush2.bf16.msra.mxu0 %v2753
        %3525 = vmatprep.mubr.bf16.mxu0 %v3410
        %3526 = vmatmul.mubr.bf16.gmra.mxu0 %v3409
        %v3527 = vpop.f32.mrf.mxu0
        %v3528 = vadd.f32 0.0, %v3527
        %v3529 = vpop.f32.mrf.mxu0
        %v3530 = vadd.f32 0.0, %v3529
        %v3531 = vpop.f32.mrf.mxu0
        %v3532 = vpop.f32.mrf.mxu0
        %3533 = vdwg.mxu0
        %3534 = vmatprep.subr.bf16.mxu0 %v2748
        %3535 = vmatpush1.bf16.msra.mxu0 %v2747
        %3536 = vmatprep.subr.bf16.mxu0 %v2740
        %3537 = vmatpush1.bf16.msra.mxu0 %v2739
        %3538 = vmatprep.subr.bf16.mxu0 %v2732
        %3539 = vmatpush1.bf16.msra.mxu0 %v2731
        %3540 = vmatprep.subr.bf16.mxu0 %v2724
        %3541 = vmatpush1.bf16.msra.mxu0 %v2723
        %3542 = vmatprep.subr.bf16.mxu0 %v2716
        %3543 = vmatpush1.bf16.msra.mxu0 %v2715
        %3544 = vmatprep.subr.bf16.mxu0 %v2708
        %3545 = vmatpush1.bf16.msra.mxu0 %v2707
        %3546 = vmatprep.subr.bf16.mxu0 %v2700
        %3547 = vmatpush1.bf16.msra.mxu0 %v2699
        %3548 = vmatprep.subr.bf16.mxu0 %v2692
        %3549 = vmatpush1.bf16.msra.mxu0 %v2691
        %3550 = vmatprep.subr.bf16.mxu0 %v2812
        %3551 = vmatpush2.bf16.msra.mxu0 %v2811
        %3552 = vmatprep.subr.bf16.mxu0 %v2804
        %3553 = vmatpush2.bf16.msra.mxu0 %v2803
        %3554 = vmatprep.subr.bf16.mxu0 %v2796
        %3555 = vmatpush2.bf16.msra.mxu0 %v2795
        %3556 = vmatprep.subr.bf16.mxu0 %v2788
        %3557 = vmatpush2.bf16.msra.mxu0 %v2787
        %3558 = vmatprep.subr.bf16.mxu0 %v2780
        %3559 = vmatpush2.bf16.msra.mxu0 %v2779
        %3560 = vmatprep.subr.bf16.mxu0 %v2772
        %3561 = vmatpush2.bf16.msra.mxu0 %v2771
        %3562 = vmatprep.subr.bf16.mxu0 %v2764
        %3563 = vmatpush2.bf16.msra.mxu0 %v2763
        %3564 = vmatprep.subr.bf16.mxu0 %v2756
        %3565 = vmatpush2.bf16.msra.mxu0 %v2755
        %3566 = vmatprep.mubr.bf16.mxu0 %v3410
        %3567 = vmatmul.mubr.bf16.gmra.mxu0 %v3409
        %v3568 = vpop.f32.mrf.mxu0
        %v3569 = vadd.f32 0.0, %v3568
        %v3570 = vpop.f32.mrf.mxu0
        %v3571 = vadd.f32 0.0, %v3570
        %v3572 = vpop.f32.mrf.mxu0
        %v3573 = vpop.f32.mrf.mxu0
        %3574 = vdwg.mxu0
        %s3575 = smul.u32 %s3408, 8
        %s3576 = smul.addr %s3575, 8
        %s3577 = scalar_lea.vmem [#allocation2], %s3576
        %v3578 = vld [vmem:[%s3577] sm:$0xff]
        %v3579 = vld [vmem:[%s3577 + $0x8] sm:$0xff]
        %v3580 = vld [vmem:[%s3577 + $0x10] sm:$0xff]
        %v3581 = vld [vmem:[%s3577 + $0x18] sm:$0xff]
        %v3582 = vld [vmem:[%s3577 + $0x20] sm:$0xff]
        %v3583 = vld [vmem:[%s3577 + $0x28] sm:$0xff]
        %v3584 = vld [vmem:[%s3577 + $0x30] sm:$0xff]
        %v3585 = vld [vmem:[%s3577 + $0x38] sm:$0xff]
        %v3586 = vadd.f32 %v3578, %v3446
        %v3587 = vadd.f32 %v3579, %v3448
        %v3588 = vadd.f32 %v3580, %v3487
        %v3589 = vadd.f32 %v3581, %v3489
        %v3590 = vadd.f32 %v3582, %v3528
        %v3591 = vadd.f32 %v3583, %v3530
        %v3592 = vadd.f32 %v3584, %v3569
        %v3593 = vadd.f32 %v3585, %v3571
        %v3594 = vxor.u32 %v3586, 2147483648
        %v3595 = vxor.u32 %v3587, 2147483648
        %v3596 = vmul.f32 %v3594, 1.442695
        %v3597 = vpow.pop %v3596
        %v3598 = vmul.f32 %v3595, 1.442695
        %v3599 = vpow.pop %v3598
        %v3600 = vadd.f32 %v3597, 1.0
        %v3601 = vadd.f32 %v3599, 1.0
        %v3602 = vrcp.pop %v3600
        %v3603 = vmul.f32 1.0, %v3602
        %v3604 = vrcp.pop %v3601
        %v3605 = vmul.f32 1.0, %v3604
        %v3606 = vxor.u32 %v3588, 2147483648
        %v3607 = vxor.u32 %v3589, 2147483648
        %v3608 = vmul.f32 %v3606, 1.442695
        %v3609 = vpow.pop %v3608
        %v3610 = vmul.f32 %v3607, 1.442695
        %v3611 = vpow.pop %v3610
        %v3612 = vadd.f32 %v3609, 1.0
        %v3613 = vadd.f32 %v3611, 1.0
        %v3614 = vrcp.pop %v3612
        %v3615 = vmul.f32 1.0, %v3614
        %v3616 = vrcp.pop %v3613
        %v3617 = vmul.f32 1.0, %v3616
        %v3618 = vtanh.pop %v3590
        %v3619 = vtanh.pop %v3591
        %v3620 = vxor.u32 %v3592, 2147483648
        %v3621 = vxor.u32 %v3593, 2147483648
        %v3622 = vmul.f32 %v3620, 1.442695
        %v3623 = vpow.pop %v3622
        %v3624 = vmul.f32 %v3621, 1.442695
        %v3625 = vpow.pop %v3624
        %v3626 = vadd.f32 %v3623, 1.0
        %v3627 = vadd.f32 %v3625, 1.0
        %v3628 = vrcp.pop %v3626
        %v3629 = vmul.f32 1.0, %v3628
        %v3630 = vrcp.pop %v3627
        %v3631 = vmul.f32 1.0, %v3630
        %v3632 = vmul.f32 %v3615, %v3401
        %v3633 = vmul.f32 %v3617, %v3402
        %v3634 = vmul.f32 %v3603, %v3618
        %v3635 = vmul.f32 %v3605, %v3619
        %v3636 = vadd.f32 %v3632, %v3634
        %v3637 = vadd.f32 %v3633, %v3635
        %v3638 = vtanh.pop %v3636
        %v3639 = vtanh.pop %v3637
        %v3640 = vmul.f32 %v3629, %v3638
        %v3641 = vmul.f32 %v3631, %v3639
        %s3642 = sadd.s32 %s21, 3
        %v3643 = vpack.c.bf16 %v3640, %v3640
        %v3644 = vpack.c.bf16 %v3641, %v3641
        %3645 = vmatprep.subr.bf16.mxu0 %v2742
        %3646 = vmatpush1.bf16.msra.mxu0 %v2741
        %3647 = vmatprep.subr.bf16.mxu0 %v2734
        %3648 = vmatpush1.bf16.msra.mxu0 %v2733
        %3649 = vmatprep.subr.bf16.mxu0 %v2726
        %3650 = vmatpush1.bf16.msra.mxu0 %v2725
        %3651 = vmatprep.subr.bf16.mxu0 %v2718
        %3652 = vmatpush1.bf16.msra.mxu0 %v2717
        %3653 = vmatprep.subr.bf16.mxu0 %v2710
        %3654 = vmatpush1.bf16.msra.mxu0 %v2709
        %3655 = vmatprep.subr.bf16.mxu0 %v2702
        %3656 = vmatpush1.bf16.msra.mxu0 %v2701
        %3657 = vmatprep.subr.bf16.mxu0 %v2694
        %3658 = vmatpush1.bf16.msra.mxu0 %v2693
        %3659 = vmatprep.subr.bf16.mxu0 %v2686
        %3660 = vmatpush1.bf16.msra.mxu0 %v2685
        %3661 = vmatprep.subr.bf16.mxu0 %v2806
        %3662 = vmatpush2.bf16.msra.mxu0 %v2805
        %3663 = vmatprep.subr.bf16.mxu0 %v2798
        %3664 = vmatpush2.bf16.msra.mxu0 %v2797
        %3665 = vmatprep.subr.bf16.mxu0 %v2790
        %3666 = vmatpush2.bf16.msra.mxu0 %v2789
        %3667 = vmatprep.subr.bf16.mxu0 %v2782
        %3668 = vmatpush2.bf16.msra.mxu0 %v2781
        %3669 = vmatprep.subr.bf16.mxu0 %v2774
        %3670 = vmatpush2.bf16.msra.mxu0 %v2773
        %3671 = vmatprep.subr.bf16.mxu0 %v2766
        %3672 = vmatpush2.bf16.msra.mxu0 %v2765
        %3673 = vmatprep.subr.bf16.mxu0 %v2758
        %3674 = vmatpush2.bf16.msra.mxu0 %v2757
        %3675 = vmatprep.subr.bf16.mxu0 %v2750
        %3676 = vmatpush2.bf16.msra.mxu0 %v2749
        %3677 = vmatprep.mubr.bf16.mxu0 %v3644
        %3678 = vmatmul.mubr.bf16.gmra.mxu0 %v3643
        %v3679 = vpop.f32.mrf.mxu0
        %v3680 = vadd.f32 0.0, %v3679
        %v3681 = vpop.f32.mrf.mxu0
        %v3682 = vadd.f32 0.0, %v3681
        %v3683 = vpop.f32.mrf.mxu0
        %v3684 = vpop.f32.mrf.mxu0
        %3685 = vdwg.mxu0
        %3686 = vmatprep.subr.bf16.mxu0 %v2744
        %3687 = vmatpush1.bf16.msra.mxu0 %v2743
        %3688 = vmatprep.subr.bf16.mxu0 %v2736
        %3689 = vmatpush1.bf16.msra.mxu0 %v2735
        %3690 = vmatprep.subr.bf16.mxu0 %v2728
        %3691 = vmatpush1.bf16.msra.mxu0 %v2727
        %3692 = vmatprep.subr.bf16.mxu0 %v2720
        %3693 = vmatpush1.bf16.msra.mxu0 %v2719
        %3694 = vmatprep.subr.bf16.mxu0 %v2712
        %3695 = vmatpush1.bf16.msra.mxu0 %v2711
        %3696 = vmatprep.subr.bf16.mxu0 %v2704
        %3697 = vmatpush1.bf16.msra.mxu0 %v2703
        %3698 = vmatprep.subr.bf16.mxu0 %v2696
        %3699 = vmatpush1.bf16.msra.mxu0 %v2695
        %3700 = vmatprep.subr.bf16.mxu0 %v2688
        %3701 = vmatpush1.bf16.msra.mxu0 %v2687
        %3702 = vmatprep.subr.bf16.mxu0 %v2808
        %3703 = vmatpush2.bf16.msra.mxu0 %v2807
        %3704 = vmatprep.subr.bf16.mxu0 %v2800
        %3705 = vmatpush2.bf16.msra.mxu0 %v2799
        %3706 = vmatprep.subr.bf16.mxu0 %v2792
        %3707 = vmatpush2.bf16.msra.mxu0 %v2791
        %3708 = vmatprep.subr.bf16.mxu0 %v2784
        %3709 = vmatpush2.bf16.msra.mxu0 %v2783
        %3710 = vmatprep.subr.bf16.mxu0 %v2776
        %3711 = vmatpush2.bf16.msra.mxu0 %v2775
        %3712 = vmatprep.subr.bf16.mxu0 %v2768
        %3713 = vmatpush2.bf16.msra.mxu0 %v2767
        %3714 = vmatprep.subr.bf16.mxu0 %v2760
        %3715 = vmatpush2.bf16.msra.mxu0 %v2759
        %3716 = vmatprep.subr.bf16.mxu0 %v2752
        %3717 = vmatpush2.bf16.msra.mxu0 %v2751
        %3718 = vmatprep.mubr.bf16.mxu0 %v3644
        %3719 = vmatmul.mubr.bf16.gmra.mxu0 %v3643
        %v3720 = vpop.f32.mrf.mxu0
        %v3721 = vadd.f32 0.0, %v3720
        %v3722 = vpop.f32.mrf.mxu0
        %v3723 = vadd.f32 0.0, %v3722
        %v3724 = vpop.f32.mrf.mxu0
        %v3725 = vpop.f32.mrf.mxu0
        %3726 = vdwg.mxu0
        %3727 = vmatprep.subr.bf16.mxu0 %v2746
        %3728 = vmatpush1.bf16.msra.mxu0 %v2745
        %3729 = vmatprep.subr.bf16.mxu0 %v2738
        %3730 = vmatpush1.bf16.msra.mxu0 %v2737
        %3731 = vmatprep.subr.bf16.mxu0 %v2730
        %3732 = vmatpush1.bf16.msra.mxu0 %v2729
        %3733 = vmatprep.subr.bf16.mxu0 %v2722
        %3734 = vmatpush1.bf16.msra.mxu0 %v2721
        %3735 = vmatprep.subr.bf16.mxu0 %v2714
        %3736 = vmatpush1.bf16.msra.mxu0 %v2713
        %3737 = vmatprep.subr.bf16.mxu0 %v2706
        %3738 = vmatpush1.bf16.msra.mxu0 %v2705
        %3739 = vmatprep.subr.bf16.mxu0 %v2698
        %3740 = vmatpush1.bf16.msra.mxu0 %v2697
        %3741 = vmatprep.subr.bf16.mxu0 %v2690
        %3742 = vmatpush1.bf16.msra.mxu0 %v2689
        %3743 = vmatprep.subr.bf16.mxu0 %v2810
        %3744 = vmatpush2.bf16.msra.mxu0 %v2809
        %3745 = vmatprep.subr.bf16.mxu0 %v2802
        %3746 = vmatpush2.bf16.msra.mxu0 %v2801
        %3747 = vmatprep.subr.bf16.mxu0 %v2794
        %3748 = vmatpush2.bf16.msra.mxu0 %v2793
        %3749 = vmatprep.subr.bf16.mxu0 %v2786
        %3750 = vmatpush2.bf16.msra.mxu0 %v2785
        %3751 = vmatprep.subr.bf16.mxu0 %v2778
        %3752 = vmatpush2.bf16.msra.mxu0 %v2777
        %3753 = vmatprep.subr.bf16.mxu0 %v2770
        %3754 = vmatpush2.bf16.msra.mxu0 %v2769
        %3755 = vmatprep.subr.bf16.mxu0 %v2762
        %3756 = vmatpush2.bf16.msra.mxu0 %v2761
        %3757 = vmatprep.subr.bf16.mxu0 %v2754
        %3758 = vmatpush2.bf16.msra.mxu0 %v2753
        %3759 = vmatprep.mubr.bf16.mxu0 %v3644
        %3760 = vmatmul.mubr.bf16.gmra.mxu0 %v3643
        %v3761 = vpop.f32.mrf.mxu0
        %v3762 = vadd.f32 0.0, %v3761
        %v3763 = vpop.f32.mrf.mxu0
        %v3764 = vadd.f32 0.0, %v3763
        %v3765 = vpop.f32.mrf.mxu0
        %v3766 = vpop.f32.mrf.mxu0
        %3767 = vdwg.mxu0
        %3768 = vmatprep.subr.bf16.mxu0 %v2748
        %3769 = vmatpush1.bf16.msra.mxu0 %v2747
        %3770 = vmatprep.subr.bf16.mxu0 %v2740
        %3771 = vmatpush1.bf16.msra.mxu0 %v2739
        %3772 = vmatprep.subr.bf16.mxu0 %v2732
        %3773 = vmatpush1.bf16.msra.mxu0 %v2731
        %3774 = vmatprep.subr.bf16.mxu0 %v2724
        %3775 = vmatpush1.bf16.msra.mxu0 %v2723
        %3776 = vmatprep.subr.bf16.mxu0 %v2716
        %3777 = vmatpush1.bf16.msra.mxu0 %v2715
        %3778 = vmatprep.subr.bf16.mxu0 %v2708
        %3779 = vmatpush1.bf16.msra.mxu0 %v2707
        %3780 = vmatprep.subr.bf16.mxu0 %v2700
        %3781 = vmatpush1.bf16.msra.mxu0 %v2699
        %3782 = vmatprep.subr.bf16.mxu0 %v2692
        %3783 = vmatpush1.bf16.msra.mxu0 %v2691
        %3784 = vmatprep.subr.bf16.mxu0 %v2812
        %3785 = vmatpush2.bf16.msra.mxu0 %v2811
        %3786 = vmatprep.subr.bf16.mxu0 %v2804
        %3787 = vmatpush2.bf16.msra.mxu0 %v2803
        %3788 = vmatprep.subr.bf16.mxu0 %v2796
        %3789 = vmatpush2.bf16.msra.mxu0 %v2795
        %3790 = vmatprep.subr.bf16.mxu0 %v2788
        %3791 = vmatpush2.bf16.msra.mxu0 %v2787
        %3792 = vmatprep.subr.bf16.mxu0 %v2780
        %3793 = vmatpush2.bf16.msra.mxu0 %v2779
        %3794 = vmatprep.subr.bf16.mxu0 %v2772
        %3795 = vmatpush2.bf16.msra.mxu0 %v2771
        %3796 = vmatprep.subr.bf16.mxu0 %v2764
        %3797 = vmatpush2.bf16.msra.mxu0 %v2763
        %3798 = vmatprep.subr.bf16.mxu0 %v2756
        %3799 = vmatpush2.bf16.msra.mxu0 %v2755
        %3800 = vmatprep.mubr.bf16.mxu0 %v3644
        %3801 = vmatmul.mubr.bf16.gmra.mxu0 %v3643
        %v3802 = vpop.f32.mrf.mxu0
        %v3803 = vadd.f32 0.0, %v3802
        %v3804 = vpop.f32.mrf.mxu0
        %v3805 = vadd.f32 0.0, %v3804
        %v3806 = vpop.f32.mrf.mxu0
        %v3807 = vpop.f32.mrf.mxu0
        %3808 = vdwg.mxu0
        %s3809 = smul.u32 %s3642, 8
        %s3810 = smul.addr %s3809, 8
        %s3811 = scalar_lea.vmem [#allocation2], %s3810
        %v3812 = vld [vmem:[%s3811] sm:$0xff]
        %v3813 = vld [vmem:[%s3811 + $0x8] sm:$0xff]
        %v3814 = vld [vmem:[%s3811 + $0x10] sm:$0xff]
        %v3815 = vld [vmem:[%s3811 + $0x18] sm:$0xff]
        %v3816 = vld [vmem:[%s3811 + $0x20] sm:$0xff]
        %v3817 = vld [vmem:[%s3811 + $0x28] sm:$0xff]
        %v3818 = vld [vmem:[%s3811 + $0x30] sm:$0xff]
        %v3819 = vld [vmem:[%s3811 + $0x38] sm:$0xff]
        %v3820 = vadd.f32 %v3812, %v3680
        %v3821 = vadd.f32 %v3813, %v3682
        %v3822 = vadd.f32 %v3814, %v3721
        %v3823 = vadd.f32 %v3815, %v3723
        %v3824 = vadd.f32 %v3816, %v3762
        %v3825 = vadd.f32 %v3817, %v3764
        %v3826 = vadd.f32 %v3818, %v3803
        %v3827 = vadd.f32 %v3819, %v3805
        %v3828 = vxor.u32 %v3820, 2147483648
        %v3829 = vxor.u32 %v3821, 2147483648
        %v3830 = vmul.f32 %v3828, 1.442695
        %v3831 = vpow.pop %v3830
        %v3832 = vmul.f32 %v3829, 1.442695
        %v3833 = vpow.pop %v3832
        %v3834 = vadd.f32 %v3831, 1.0
        %v3835 = vadd.f32 %v3833, 1.0
        %v3836 = vrcp.pop %v3834
        %v3837 = vmul.f32 1.0, %v3836
        %v3838 = vrcp.pop %v3835
        %v3839 = vmul.f32 1.0, %v3838
        %v3840 = vxor.u32 %v3822, 2147483648
        %v3841 = vxor.u32 %v3823, 2147483648
        %v3842 = vmul.f32 %v3840, 1.442695
        %v3843 = vpow.pop %v3842
        %v3844 = vmul.f32 %v3841, 1.442695
        %v3845 = vpow.pop %v3844
        %v3846 = vadd.f32 %v3843, 1.0
        %v3847 = vadd.f32 %v3845, 1.0
        %v3848 = vrcp.pop %v3846
        %v3849 = vmul.f32 1.0, %v3848
        %v3850 = vrcp.pop %v3847
        %v3851 = vmul.f32 1.0, %v3850
        %v3852 = vtanh.pop %v3824
        %v3853 = vtanh.pop %v3825
        %v3854 = vxor.u32 %v3826, 2147483648
        %v3855 = vxor.u32 %v3827, 2147483648
        %v3856 = vmul.f32 %v3854, 1.442695
        %v3857 = vpow.pop %v3856
        %v3858 = vmul.f32 %v3855, 1.442695
        %v3859 = vpow.pop %v3858
        %v3860 = vadd.f32 %v3857, 1.0
        %v3861 = vadd.f32 %v3859, 1.0
        %v3862 = vrcp.pop %v3860
        %v3863 = vmul.f32 1.0, %v3862
        %v3864 = vrcp.pop %v3861
        %v3865 = vmul.f32 1.0, %v3864
        %v3866 = vmul.f32 %v3849, %v3636
        %v3867 = vmul.f32 %v3851, %v3637
        %v3868 = vmul.f32 %v3837, %v3852
        %v3869 = vmul.f32 %v3839, %v3853
        %v3870 = vadd.f32 %v3866, %v3868
        %v3871 = vadd.f32 %v3867, %v3869
        %v3872 = vtanh.pop %v3870
        %v3873 = vtanh.pop %v3871
        %v3874 = vmul.f32 %v3863, %v3872
        %v3875 = vmul.f32 %v3865, %v3873
        %s3876 = ssub.s32 4, %s21
        %v3877 = vpack.c.bf16 %v3874, %v3874
        %v3878 = vpack.c.bf16 %v3875, %v3875
        %3879 = vmatprep.subr.bf16.mxu0 %v2742
        %3880 = vmatpush1.bf16.msra.mxu0 %v2741
        %3881 = vmatprep.subr.bf16.mxu0 %v2734
        %3882 = vmatpush1.bf16.msra.mxu0 %v2733
        %3883 = vmatprep.subr.bf16.mxu0 %v2726
        %3884 = vmatpush1.bf16.msra.mxu0 %v2725
        %3885 = vmatprep.subr.bf16.mxu0 %v2718
        %3886 = vmatpush1.bf16.msra.mxu0 %v2717
        %3887 = vmatprep.subr.bf16.mxu0 %v2710
        %3888 = vmatpush1.bf16.msra.mxu0 %v2709
        %3889 = vmatprep.subr.bf16.mxu0 %v2702
        %3890 = vmatpush1.bf16.msra.mxu0 %v2701
        %3891 = vmatprep.subr.bf16.mxu0 %v2694
        %3892 = vmatpush1.bf16.msra.mxu0 %v2693
        %3893 = vmatprep.subr.bf16.mxu0 %v2686
        %3894 = vmatpush1.bf16.msra.mxu0 %v2685
        %3895 = vmatprep.subr.bf16.mxu0 %v2806
        %3896 = vmatpush2.bf16.msra.mxu0 %v2805
        %3897 = vmatprep.subr.bf16.mxu0 %v2798
        %3898 = vmatpush2.bf16.msra.mxu0 %v2797
        %3899 = vmatprep.subr.bf16.mxu0 %v2790
        %3900 = vmatpush2.bf16.msra.mxu0 %v2789
        %3901 = vmatprep.subr.bf16.mxu0 %v2782
        %3902 = vmatpush2.bf16.msra.mxu0 %v2781
        %3903 = vmatprep.subr.bf16.mxu0 %v2774
        %3904 = vmatpush2.bf16.msra.mxu0 %v2773
        %3905 = vmatprep.subr.bf16.mxu0 %v2766
        %3906 = vmatpush2.bf16.msra.mxu0 %v2765
        %3907 = vmatprep.subr.bf16.mxu0 %v2758
        %3908 = vmatpush2.bf16.msra.mxu0 %v2757
        %3909 = vmatprep.subr.bf16.mxu0 %v2750
        %3910 = vmatpush2.bf16.msra.mxu0 %v2749
        %3911 = vmatprep.mubr.bf16.mxu0 %v3878
        %3912 = vmatmul.mubr.bf16.gmra.mxu0 %v3877
        %v3913 = vpop.f32.mrf.mxu0
        %v3914 = vadd.f32 0.0, %v3913
        %v3915 = vpop.f32.mrf.mxu0
        %v3916 = vadd.f32 0.0, %v3915
        %v3917 = vpop.f32.mrf.mxu0
        %v3918 = vpop.f32.mrf.mxu0
        %3919 = vdwg.mxu0
        %3920 = vmatprep.subr.bf16.mxu0 %v2744
        %3921 = vmatpush1.bf16.msra.mxu0 %v2743
        %3922 = vmatprep.subr.bf16.mxu0 %v2736
        %3923 = vmatpush1.bf16.msra.mxu0 %v2735
        %3924 = vmatprep.subr.bf16.mxu0 %v2728
        %3925 = vmatpush1.bf16.msra.mxu0 %v2727
        %3926 = vmatprep.subr.bf16.mxu0 %v2720
        %3927 = vmatpush1.bf16.msra.mxu0 %v2719
        %3928 = vmatprep.subr.bf16.mxu0 %v2712
        %3929 = vmatpush1.bf16.msra.mxu0 %v2711
        %3930 = vmatprep.subr.bf16.mxu0 %v2704
        %3931 = vmatpush1.bf16.msra.mxu0 %v2703
        %3932 = vmatprep.subr.bf16.mxu0 %v2696
        %3933 = vmatpush1.bf16.msra.mxu0 %v2695
        %3934 = vmatprep.subr.bf16.mxu0 %v2688
        %3935 = vmatpush1.bf16.msra.mxu0 %v2687
        %3936 = vmatprep.subr.bf16.mxu0 %v2808
        %3937 = vmatpush2.bf16.msra.mxu0 %v2807
        %3938 = vmatprep.subr.bf16.mxu0 %v2800
        %3939 = vmatpush2.bf16.msra.mxu0 %v2799
        %3940 = vmatprep.subr.bf16.mxu0 %v2792
        %3941 = vmatpush2.bf16.msra.mxu0 %v2791
        %3942 = vmatprep.subr.bf16.mxu0 %v2784
        %3943 = vmatpush2.bf16.msra.mxu0 %v2783
        %3944 = vmatprep.subr.bf16.mxu0 %v2776
        %3945 = vmatpush2.bf16.msra.mxu0 %v2775
        %3946 = vmatprep.subr.bf16.mxu0 %v2768
        %3947 = vmatpush2.bf16.msra.mxu0 %v2767
        %3948 = vmatprep.subr.bf16.mxu0 %v2760
        %3949 = vmatpush2.bf16.msra.mxu0 %v2759
        %3950 = vmatprep.subr.bf16.mxu0 %v2752
        %3951 = vmatpush2.bf16.msra.mxu0 %v2751
        %3952 = vmatprep.mubr.bf16.mxu0 %v3878
        %3953 = vmatmul.mubr.bf16.gmra.mxu0 %v3877
        %v3954 = vpop.f32.mrf.mxu0
        %v3955 = vadd.f32 0.0, %v3954
        %v3956 = vpop.f32.mrf.mxu0
        %v3957 = vadd.f32 0.0, %v3956
        %v3958 = vpop.f32.mrf.mxu0
        %v3959 = vpop.f32.mrf.mxu0
        %3960 = vdwg.mxu0
        %3961 = vmatprep.subr.bf16.mxu0 %v2746
        %3962 = vmatpush1.bf16.msra.mxu0 %v2745
        %3963 = vmatprep.subr.bf16.mxu0 %v2738
        %3964 = vmatpush1.bf16.msra.mxu0 %v2737
        %3965 = vmatprep.subr.bf16.mxu0 %v2730
        %3966 = vmatpush1.bf16.msra.mxu0 %v2729
        %3967 = vmatprep.subr.bf16.mxu0 %v2722
        %3968 = vmatpush1.bf16.msra.mxu0 %v2721
        %3969 = vmatprep.subr.bf16.mxu0 %v2714
        %3970 = vmatpush1.bf16.msra.mxu0 %v2713
        %3971 = vmatprep.subr.bf16.mxu0 %v2706
        %3972 = vmatpush1.bf16.msra.mxu0 %v2705
        %3973 = vmatprep.subr.bf16.mxu0 %v2698
        %3974 = vmatpush1.bf16.msra.mxu0 %v2697
        %3975 = vmatprep.subr.bf16.mxu0 %v2690
        %3976 = vmatpush1.bf16.msra.mxu0 %v2689
        %3977 = vmatprep.subr.bf16.mxu0 %v2810
        %3978 = vmatpush2.bf16.msra.mxu0 %v2809
        %3979 = vmatprep.subr.bf16.mxu0 %v2802
        %3980 = vmatpush2.bf16.msra.mxu0 %v2801
        %3981 = vmatprep.subr.bf16.mxu0 %v2794
        %3982 = vmatpush2.bf16.msra.mxu0 %v2793
        %3983 = vmatprep.subr.bf16.mxu0 %v2786
        %3984 = vmatpush2.bf16.msra.mxu0 %v2785
        %3985 = vmatprep.subr.bf16.mxu0 %v2778
        %3986 = vmatpush2.bf16.msra.mxu0 %v2777
        %3987 = vmatprep.subr.bf16.mxu0 %v2770
        %3988 = vmatpush2.bf16.msra.mxu0 %v2769
        %3989 = vmatprep.subr.bf16.mxu0 %v2762
        %3990 = vmatpush2.bf16.msra.mxu0 %v2761
        %3991 = vmatprep.subr.bf16.mxu0 %v2754
        %3992 = vmatpush2.bf16.msra.mxu0 %v2753
        %3993 = vmatprep.mubr.bf16.mxu0 %v3878
        %3994 = vmatmul.mubr.bf16.gmra.mxu0 %v3877
        %v3995 = vpop.f32.mrf.mxu0
        %v3996 = vadd.f32 0.0, %v3995
        %v3997 = vpop.f32.mrf.mxu0
        %v3998 = vadd.f32 0.0, %v3997
        %v3999 = vpop.f32.mrf.mxu0
        %v4000 = vpop.f32.mrf.mxu0
        %4001 = vdwg.mxu0
        %4002 = vmatprep.subr.bf16.mxu0 %v2748
        %4003 = vmatpush1.bf16.msra.mxu0 %v2747
        %4004 = vmatprep.subr.bf16.mxu0 %v2740
        %4005 = vmatpush1.bf16.msra.mxu0 %v2739
        %4006 = vmatprep.subr.bf16.mxu0 %v2732
        %4007 = vmatpush1.bf16.msra.mxu0 %v2731
        %4008 = vmatprep.subr.bf16.mxu0 %v2724
        %4009 = vmatpush1.bf16.msra.mxu0 %v2723
        %4010 = vmatprep.subr.bf16.mxu0 %v2716
        %4011 = vmatpush1.bf16.msra.mxu0 %v2715
        %4012 = vmatprep.subr.bf16.mxu0 %v2708
        %4013 = vmatpush1.bf16.msra.mxu0 %v2707
        %4014 = vmatprep.subr.bf16.mxu0 %v2700
        %4015 = vmatpush1.bf16.msra.mxu0 %v2699
        %4016 = vmatprep.subr.bf16.mxu0 %v2692
        %4017 = vmatpush1.bf16.msra.mxu0 %v2691
        %4018 = vmatprep.subr.bf16.mxu0 %v2812
        %4019 = vmatpush2.bf16.msra.mxu0 %v2811
        %4020 = vmatprep.subr.bf16.mxu0 %v2804
        %4021 = vmatpush2.bf16.msra.mxu0 %v2803
        %4022 = vmatprep.subr.bf16.mxu0 %v2796
        %4023 = vmatpush2.bf16.msra.mxu0 %v2795
        %4024 = vmatprep.subr.bf16.mxu0 %v2788
        %4025 = vmatpush2.bf16.msra.mxu0 %v2787
        %4026 = vmatprep.subr.bf16.mxu0 %v2780
        %4027 = vmatpush2.bf16.msra.mxu0 %v2779
        %4028 = vmatprep.subr.bf16.mxu0 %v2772
        %4029 = vmatpush2.bf16.msra.mxu0 %v2771
        %4030 = vmatprep.subr.bf16.mxu0 %v2764
        %4031 = vmatpush2.bf16.msra.mxu0 %v2763
        %4032 = vmatprep.subr.bf16.mxu0 %v2756
        %4033 = vmatpush2.bf16.msra.mxu0 %v2755
        %4034 = vmatprep.mubr.bf16.mxu0 %v3878
        %4035 = vmatmul.mubr.bf16.gmra.mxu0 %v3877
        %v4036 = vpop.f32.mrf.mxu0
        %v4037 = vadd.f32 0.0, %v4036
        %v4038 = vpop.f32.mrf.mxu0
        %v4039 = vadd.f32 0.0, %v4038
        %v4040 = vpop.f32.mrf.mxu0
        %v4041 = vpop.f32.mrf.mxu0
        %4042 = vdwg.mxu0
        %s4043 = smul.u32 %s3876, 8
        %s4044 = smul.addr %s4043, 8
        %s4045 = scalar_lea.vmem [#allocation2], %s4044
        %v4046 = vld [vmem:[%s4045] sm:$0xff]
        %v4047 = vld [vmem:[%s4045 + $0x8] sm:$0xff]
        %v4048 = vld [vmem:[%s4045 + $0x10] sm:$0xff]
        %v4049 = vld [vmem:[%s4045 + $0x18] sm:$0xff]
        %v4050 = vld [vmem:[%s4045 + $0x20] sm:$0xff]
        %v4051 = vld [vmem:[%s4045 + $0x28] sm:$0xff]
        %v4052 = vld [vmem:[%s4045 + $0x30] sm:$0xff]
        %v4053 = vld [vmem:[%s4045 + $0x38] sm:$0xff]
        %v4054 = vadd.f32 %v4046, %v3914
        %v4055 = vadd.f32 %v4047, %v3916
        %v4056 = vadd.f32 %v4048, %v3955
        %v4057 = vadd.f32 %v4049, %v3957
        %v4058 = vadd.f32 %v4050, %v3996
        %v4059 = vadd.f32 %v4051, %v3998
        %v4060 = vadd.f32 %v4052, %v4037
        %v4061 = vadd.f32 %v4053, %v4039
        %v4062 = vxor.u32 %v4054, 2147483648
        %v4063 = vxor.u32 %v4055, 2147483648
        %v4064 = vmul.f32 %v4062, 1.442695
        %v4065 = vpow.pop %v4064
        %v4066 = vmul.f32 %v4063, 1.442695
        %v4067 = vpow.pop %v4066
        %v4068 = vadd.f32 %v4065, 1.0
        %v4069 = vadd.f32 %v4067, 1.0
        %v4070 = vrcp.pop %v4068
        %v4071 = vmul.f32 1.0, %v4070
        %v4072 = vrcp.pop %v4069
        %v4073 = vmul.f32 1.0, %v4072
        %v4074 = vxor.u32 %v4056, 2147483648
        %v4075 = vxor.u32 %v4057, 2147483648
        %v4076 = vmul.f32 %v4074, 1.442695
        %v4077 = vpow.pop %v4076
        %v4078 = vmul.f32 %v4075, 1.442695
        %v4079 = vpow.pop %v4078
        %v4080 = vadd.f32 %v4077, 1.0
        %v4081 = vadd.f32 %v4079, 1.0
        %v4082 = vrcp.pop %v4080
        %v4083 = vmul.f32 1.0, %v4082
        %v4084 = vrcp.pop %v4081
        %v4085 = vmul.f32 1.0, %v4084
        %v4086 = vtanh.pop %v4058
        %v4087 = vtanh.pop %v4059
        %v4088 = vxor.u32 %v4060, 2147483648
        %v4089 = vxor.u32 %v4061, 2147483648
        %v4090 = vmul.f32 %v4088, 1.442695
        %v4091 = vpow.pop %v4090
        %v4092 = vmul.f32 %v4089, 1.442695
        %v4093 = vpow.pop %v4092
        %v4094 = vadd.f32 %v4091, 1.0
        %v4095 = vadd.f32 %v4093, 1.0
        %v4096 = vrcp.pop %v4094
        %v4097 = vmul.f32 1.0, %v4096
        %v4098 = vrcp.pop %v4095
        %v4099 = vmul.f32 1.0, %v4098
        %v4100 = vmul.f32 %v4083, %v3870
        %v4101 = vmul.f32 %v4085, %v3871
        %v4102 = vmul.f32 %v4071, %v4086
        %v4103 = vmul.f32 %v4073, %v4087
        %v4104 = vadd.f32 %v4100, %v4102
        %v4105 = vadd.f32 %v4101, %v4103
        %v4106 = vtanh.pop %v4104
        %v4107 = vtanh.pop %v4105
        %v4108 = vmul.f32 %v4097, %v4106
        %v4109 = vmul.f32 %v4099, %v4107
        %s4110 = smul.u32 %s21, 4294967293
        %s4111 = sadd.s32 %s4110, 5
        %v4112 = vpack.c.bf16 %v4108, %v4108
        %v4113 = vpack.c.bf16 %v4109, %v4109
        %4114 = vmatprep.subr.bf16.mxu0 %v2742
        %4115 = vmatpush1.bf16.msra.mxu0 %v2741
        %4116 = vmatprep.subr.bf16.mxu0 %v2734
        %4117 = vmatpush1.bf16.msra.mxu0 %v2733
        %4118 = vmatprep.subr.bf16.mxu0 %v2726
        %4119 = vmatpush1.bf16.msra.mxu0 %v2725
        %4120 = vmatprep.subr.bf16.mxu0 %v2718
        %4121 = vmatpush1.bf16.msra.mxu0 %v2717
        %4122 = vmatprep.subr.bf16.mxu0 %v2710
        %4123 = vmatpush1.bf16.msra.mxu0 %v2709
        %4124 = vmatprep.subr.bf16.mxu0 %v2702
        %4125 = vmatpush1.bf16.msra.mxu0 %v2701
        %4126 = vmatprep.subr.bf16.mxu0 %v2694
        %4127 = vmatpush1.bf16.msra.mxu0 %v2693
        %4128 = vmatprep.subr.bf16.mxu0 %v2686
        %4129 = vmatpush1.bf16.msra.mxu0 %v2685
        %4130 = vmatprep.subr.bf16.mxu0 %v2806
        %4131 = vmatpush2.bf16.msra.mxu0 %v2805
        %4132 = vmatprep.subr.bf16.mxu0 %v2798
        %4133 = vmatpush2.bf16.msra.mxu0 %v2797
        %4134 = vmatprep.subr.bf16.mxu0 %v2790
        %4135 = vmatpush2.bf16.msra.mxu0 %v2789
        %4136 = vmatprep.subr.bf16.mxu0 %v2782
        %4137 = vmatpush2.bf16.msra.mxu0 %v2781
        %4138 = vmatprep.subr.bf16.mxu0 %v2774
        %4139 = vmatpush2.bf16.msra.mxu0 %v2773
        %4140 = vmatprep.subr.bf16.mxu0 %v2766
        %4141 = vmatpush2.bf16.msra.mxu0 %v2765
        %4142 = vmatprep.subr.bf16.mxu0 %v2758
        %4143 = vmatpush2.bf16.msra.mxu0 %v2757
        %4144 = vmatprep.subr.bf16.mxu0 %v2750
        %4145 = vmatpush2.bf16.msra.mxu0 %v2749
        %4146 = vmatprep.mubr.bf16.mxu0 %v4113
        %4147 = vmatmul.mubr.bf16.gmra.mxu0 %v4112
        %v4148 = vpop.f32.mrf.mxu0
        %v4149 = vadd.f32 0.0, %v4148
        %v4150 = vpop.f32.mrf.mxu0
        %v4151 = vadd.f32 0.0, %v4150
        %v4152 = vpop.f32.mrf.mxu0
        %v4153 = vpop.f32.mrf.mxu0
        %4154 = vdwg.mxu0
        %4155 = vmatprep.subr.bf16.mxu0 %v2744
        %4156 = vmatpush1.bf16.msra.mxu0 %v2743
        %4157 = vmatprep.subr.bf16.mxu0 %v2736
        %4158 = vmatpush1.bf16.msra.mxu0 %v2735
        %4159 = vmatprep.subr.bf16.mxu0 %v2728
        %4160 = vmatpush1.bf16.msra.mxu0 %v2727
        %4161 = vmatprep.subr.bf16.mxu0 %v2720
        %4162 = vmatpush1.bf16.msra.mxu0 %v2719
        %4163 = vmatprep.subr.bf16.mxu0 %v2712
        %4164 = vmatpush1.bf16.msra.mxu0 %v2711
        %4165 = vmatprep.subr.bf16.mxu0 %v2704
        %4166 = vmatpush1.bf16.msra.mxu0 %v2703
        %4167 = vmatprep.subr.bf16.mxu0 %v2696
        %4168 = vmatpush1.bf16.msra.mxu0 %v2695
        %4169 = vmatprep.subr.bf16.mxu0 %v2688
        %4170 = vmatpush1.bf16.msra.mxu0 %v2687
        %4171 = vmatprep.subr.bf16.mxu0 %v2808
        %4172 = vmatpush2.bf16.msra.mxu0 %v2807
        %4173 = vmatprep.subr.bf16.mxu0 %v2800
        %4174 = vmatpush2.bf16.msra.mxu0 %v2799
        %4175 = vmatprep.subr.bf16.mxu0 %v2792
        %4176 = vmatpush2.bf16.msra.mxu0 %v2791
        %4177 = vmatprep.subr.bf16.mxu0 %v2784
        %4178 = vmatpush2.bf16.msra.mxu0 %v2783
        %4179 = vmatprep.subr.bf16.mxu0 %v2776
        %4180 = vmatpush2.bf16.msra.mxu0 %v2775
        %4181 = vmatprep.subr.bf16.mxu0 %v2768
        %4182 = vmatpush2.bf16.msra.mxu0 %v2767
        %4183 = vmatprep.subr.bf16.mxu0 %v2760
        %4184 = vmatpush2.bf16.msra.mxu0 %v2759
        %4185 = vmatprep.subr.bf16.mxu0 %v2752
        %4186 = vmatpush2.bf16.msra.mxu0 %v2751
        %4187 = vmatprep.mubr.bf16.mxu0 %v4113
        %4188 = vmatmul.mubr.bf16.gmra.mxu0 %v4112
        %v4189 = vpop.f32.mrf.mxu0
        %v4190 = vadd.f32 0.0, %v4189
        %v4191 = vpop.f32.mrf.mxu0
        %v4192 = vadd.f32 0.0, %v4191
        %v4193 = vpop.f32.mrf.mxu0
        %v4194 = vpop.f32.mrf.mxu0
        %4195 = vdwg.mxu0
        %4196 = vmatprep.subr.bf16.mxu0 %v2746
        %4197 = vmatpush1.bf16.msra.mxu0 %v2745
        %4198 = vmatprep.subr.bf16.mxu0 %v2738
        %4199 = vmatpush1.bf16.msra.mxu0 %v2737
        %4200 = vmatprep.subr.bf16.mxu0 %v2730
        %4201 = vmatpush1.bf16.msra.mxu0 %v2729
        %4202 = vmatprep.subr.bf16.mxu0 %v2722
        %4203 = vmatpush1.bf16.msra.mxu0 %v2721
        %4204 = vmatprep.subr.bf16.mxu0 %v2714
        %4205 = vmatpush1.bf16.msra.mxu0 %v2713
        %4206 = vmatprep.subr.bf16.mxu0 %v2706
        %4207 = vmatpush1.bf16.msra.mxu0 %v2705
        %4208 = vmatprep.subr.bf16.mxu0 %v2698
        %4209 = vmatpush1.bf16.msra.mxu0 %v2697
        %4210 = vmatprep.subr.bf16.mxu0 %v2690
        %4211 = vmatpush1.bf16.msra.mxu0 %v2689
        %4212 = vmatprep.subr.bf16.mxu0 %v2810
        %4213 = vmatpush2.bf16.msra.mxu0 %v2809
        %4214 = vmatprep.subr.bf16.mxu0 %v2802
        %4215 = vmatpush2.bf16.msra.mxu0 %v2801
        %4216 = vmatprep.subr.bf16.mxu0 %v2794
        %4217 = vmatpush2.bf16.msra.mxu0 %v2793
        %4218 = vmatprep.subr.bf16.mxu0 %v2786
        %4219 = vmatpush2.bf16.msra.mxu0 %v2785
        %4220 = vmatprep.subr.bf16.mxu0 %v2778
        %4221 = vmatpush2.bf16.msra.mxu0 %v2777
        %4222 = vmatprep.subr.bf16.mxu0 %v2770
        %4223 = vmatpush2.bf16.msra.mxu0 %v2769
        %4224 = vmatprep.subr.bf16.mxu0 %v2762
        %4225 = vmatpush2.bf16.msra.mxu0 %v2761
        %4226 = vmatprep.subr.bf16.mxu0 %v2754
        %4227 = vmatpush2.bf16.msra.mxu0 %v2753
        %4228 = vmatprep.mubr.bf16.mxu0 %v4113
        %4229 = vmatmul.mubr.bf16.gmra.mxu0 %v4112
        %v4230 = vpop.f32.mrf.mxu0
        %v4231 = vadd.f32 0.0, %v4230
        %v4232 = vpop.f32.mrf.mxu0
        %v4233 = vadd.f32 0.0, %v4232
        %v4234 = vpop.f32.mrf.mxu0
        %v4235 = vpop.f32.mrf.mxu0
        %4236 = vdwg.mxu0
        %4237 = vmatprep.subr.bf16.mxu0 %v2748
        %4238 = vmatpush1.bf16.msra.mxu0 %v2747
        %4239 = vmatprep.subr.bf16.mxu0 %v2740
        %4240 = vmatpush1.bf16.msra.mxu0 %v2739
        %4241 = vmatprep.subr.bf16.mxu0 %v2732
        %4242 = vmatpush1.bf16.msra.mxu0 %v2731
        %4243 = vmatprep.subr.bf16.mxu0 %v2724
        %4244 = vmatpush1.bf16.msra.mxu0 %v2723
        %4245 = vmatprep.subr.bf16.mxu0 %v2716
        %4246 = vmatpush1.bf16.msra.mxu0 %v2715
        %4247 = vmatprep.subr.bf16.mxu0 %v2708
        %4248 = vmatpush1.bf16.msra.mxu0 %v2707
        %4249 = vmatprep.subr.bf16.mxu0 %v2700
        %4250 = vmatpush1.bf16.msra.mxu0 %v2699
        %4251 = vmatprep.subr.bf16.mxu0 %v2692
        %4252 = vmatpush1.bf16.msra.mxu0 %v2691
        %4253 = vmatprep.subr.bf16.mxu0 %v2812
        %4254 = vmatpush2.bf16.msra.mxu0 %v2811
        %4255 = vmatprep.subr.bf16.mxu0 %v2804
        %4256 = vmatpush2.bf16.msra.mxu0 %v2803
        %4257 = vmatprep.subr.bf16.mxu0 %v2796
        %4258 = vmatpush2.bf16.msra.mxu0 %v2795
        %4259 = vmatprep.subr.bf16.mxu0 %v2788
        %4260 = vmatpush2.bf16.msra.mxu0 %v2787
        %4261 = vmatprep.subr.bf16.mxu0 %v2780
        %4262 = vmatpush2.bf16.msra.mxu0 %v2779
        %4263 = vmatprep.subr.bf16.mxu0 %v2772
        %4264 = vmatpush2.bf16.msra.mxu0 %v2771
        %4265 = vmatprep.subr.bf16.mxu0 %v2764
        %4266 = vmatpush2.bf16.msra.mxu0 %v2763
        %4267 = vmatprep.subr.bf16.mxu0 %v2756
        %4268 = vmatpush2.bf16.msra.mxu0 %v2755
        %4269 = vmatprep.mubr.bf16.mxu0 %v4113
        %4270 = vmatmul.mubr.bf16.gmra.mxu0 %v4112
        %v4271 = vpop.f32.mrf.mxu0
        %v4272 = vadd.f32 0.0, %v4271
        %v4273 = vpop.f32.mrf.mxu0
        %v4274 = vadd.f32 0.0, %v4273
        %v4275 = vpop.f32.mrf.mxu0
        %v4276 = vpop.f32.mrf.mxu0
        %4277 = vdwg.mxu0
        %s4278 = smul.u32 %s4111, 8
        %s4279 = smul.addr %s4278, 8
        %s4280 = scalar_lea.vmem [#allocation2], %s4279
        %v4281 = vld [vmem:[%s4280] sm:$0xff]
        %v4282 = vld [vmem:[%s4280 + $0x8] sm:$0xff]
        %v4283 = vld [vmem:[%s4280 + $0x10] sm:$0xff]
        %v4284 = vld [vmem:[%s4280 + $0x18] sm:$0xff]
        %v4285 = vld [vmem:[%s4280 + $0x20] sm:$0xff]
        %v4286 = vld [vmem:[%s4280 + $0x28] sm:$0xff]
        %v4287 = vld [vmem:[%s4280 + $0x30] sm:$0xff]
        %v4288 = vld [vmem:[%s4280 + $0x38] sm:$0xff]
        %v4289 = vadd.f32 %v4281, %v4149
        %v4290 = vadd.f32 %v4282, %v4151
        %v4291 = vadd.f32 %v4283, %v4190
        %v4292 = vadd.f32 %v4284, %v4192
        %v4293 = vadd.f32 %v4285, %v4231
        %v4294 = vadd.f32 %v4286, %v4233
        %v4295 = vadd.f32 %v4287, %v4272
        %v4296 = vadd.f32 %v4288, %v4274
        %v4297 = vxor.u32 %v4289, 2147483648
        %v4298 = vxor.u32 %v4290, 2147483648
        %v4299 = vmul.f32 %v4297, 1.442695
        %v4300 = vpow.pop %v4299
        %v4301 = vmul.f32 %v4298, 1.442695
        %v4302 = vpow.pop %v4301
        %v4303 = vadd.f32 %v4300, 1.0
        %v4304 = vadd.f32 %v4302, 1.0
        %v4305 = vrcp.pop %v4303
        %v4306 = vmul.f32 1.0, %v4305
        %v4307 = vrcp.pop %v4304
        %v4308 = vmul.f32 1.0, %v4307
        %v4309 = vxor.u32 %v4291, 2147483648
        %v4310 = vxor.u32 %v4292, 2147483648
        %v4311 = vmul.f32 %v4309, 1.442695
        %v4312 = vpow.pop %v4311
        %v4313 = vmul.f32 %v4310, 1.442695
        %v4314 = vpow.pop %v4313
        %v4315 = vadd.f32 %v4312, 1.0
        %v4316 = vadd.f32 %v4314, 1.0
        %v4317 = vrcp.pop %v4315
        %v4318 = vmul.f32 1.0, %v4317
        %v4319 = vrcp.pop %v4316
        %v4320 = vmul.f32 1.0, %v4319
        %v4321 = vtanh.pop %v4293
        %v4322 = vtanh.pop %v4294
        %v4323 = vxor.u32 %v4295, 2147483648
        %v4324 = vxor.u32 %v4296, 2147483648
        %v4325 = vmul.f32 %v4323, 1.442695
        %v4326 = vpow.pop %v4325
        %v4327 = vmul.f32 %v4324, 1.442695
        %v4328 = vpow.pop %v4327
        %v4329 = vadd.f32 %v4326, 1.0
        %v4330 = vadd.f32 %v4328, 1.0
        %v4331 = vrcp.pop %v4329
        %v4332 = vmul.f32 1.0, %v4331
        %v4333 = vrcp.pop %v4330
        %v4334 = vmul.f32 1.0, %v4333
        %v4335 = vmul.f32 %v4318, %v4104
        %v4336 = vmul.f32 %v4320, %v4105
        %v4337 = vmul.f32 %v4306, %v4321
        %v4338 = vmul.f32 %v4308, %v4322
        %v4339 = vadd.f32 %v4335, %v4337
        %v4340 = vadd.f32 %v4336, %v4338
        %v4341 = vtanh.pop %v4339
        %v4342 = vtanh.pop %v4340
        %v4343 = vmul.f32 %v4332, %v4341
        %v4344 = vmul.f32 %v4334, %v4342
        %s4345 = smul.u32 %s21, 4294967291
        %s4346 = sadd.s32 %s4345, 6
        %v4347 = vpack.c.bf16 %v4343, %v4343
        %v4348 = vpack.c.bf16 %v4344, %v4344
        %4349 = vmatprep.subr.bf16.mxu0 %v2742
        %4350 = vmatpush1.bf16.msra.mxu0 %v2741
        %4351 = vmatprep.subr.bf16.mxu0 %v2734
        %4352 = vmatpush1.bf16.msra.mxu0 %v2733
        %4353 = vmatprep.subr.bf16.mxu0 %v2726
        %4354 = vmatpush1.bf16.msra.mxu0 %v2725
        %4355 = vmatprep.subr.bf16.mxu0 %v2718
        %4356 = vmatpush1.bf16.msra.mxu0 %v2717
        %4357 = vmatprep.subr.bf16.mxu0 %v2710
        %4358 = vmatpush1.bf16.msra.mxu0 %v2709
        %4359 = vmatprep.subr.bf16.mxu0 %v2702
        %4360 = vmatpush1.bf16.msra.mxu0 %v2701
        %4361 = vmatprep.subr.bf16.mxu0 %v2694
        %4362 = vmatpush1.bf16.msra.mxu0 %v2693
        %4363 = vmatprep.subr.bf16.mxu0 %v2686
        %4364 = vmatpush1.bf16.msra.mxu0 %v2685
        %4365 = vmatprep.subr.bf16.mxu0 %v2806
        %4366 = vmatpush2.bf16.msra.mxu0 %v2805
        %4367 = vmatprep.subr.bf16.mxu0 %v2798
        %4368 = vmatpush2.bf16.msra.mxu0 %v2797
        %4369 = vmatprep.subr.bf16.mxu0 %v2790
        %4370 = vmatpush2.bf16.msra.mxu0 %v2789
        %4371 = vmatprep.subr.bf16.mxu0 %v2782
        %4372 = vmatpush2.bf16.msra.mxu0 %v2781
        %4373 = vmatprep.subr.bf16.mxu0 %v2774
        %4374 = vmatpush2.bf16.msra.mxu0 %v2773
        %4375 = vmatprep.subr.bf16.mxu0 %v2766
        %4376 = vmatpush2.bf16.msra.mxu0 %v2765
        %4377 = vmatprep.subr.bf16.mxu0 %v2758
        %4378 = vmatpush2.bf16.msra.mxu0 %v2757
        %4379 = vmatprep.subr.bf16.mxu0 %v2750
        %4380 = vmatpush2.bf16.msra.mxu0 %v2749
        %4381 = vmatprep.mubr.bf16.mxu0 %v4348
        %4382 = vmatmul.mubr.bf16.gmra.mxu0 %v4347
        %v4383 = vpop.f32.mrf.mxu0
        %v4384 = vadd.f32 0.0, %v4383
        %v4385 = vpop.f32.mrf.mxu0
        %v4386 = vadd.f32 0.0, %v4385
        %v4387 = vpop.f32.mrf.mxu0
        %v4388 = vpop.f32.mrf.mxu0
        %4389 = vdwg.mxu0
        %4390 = vmatprep.subr.bf16.mxu0 %v2744
        %4391 = vmatpush1.bf16.msra.mxu0 %v2743
        %4392 = vmatprep.subr.bf16.mxu0 %v2736
        %4393 = vmatpush1.bf16.msra.mxu0 %v2735
        %4394 = vmatprep.subr.bf16.mxu0 %v2728
        %4395 = vmatpush1.bf16.msra.mxu0 %v2727
        %4396 = vmatprep.subr.bf16.mxu0 %v2720
        %4397 = vmatpush1.bf16.msra.mxu0 %v2719
        %4398 = vmatprep.subr.bf16.mxu0 %v2712
        %4399 = vmatpush1.bf16.msra.mxu0 %v2711
        %4400 = vmatprep.subr.bf16.mxu0 %v2704
        %4401 = vmatpush1.bf16.msra.mxu0 %v2703
        %4402 = vmatprep.subr.bf16.mxu0 %v2696
        %4403 = vmatpush1.bf16.msra.mxu0 %v2695
        %4404 = vmatprep.subr.bf16.mxu0 %v2688
        %4405 = vmatpush1.bf16.msra.mxu0 %v2687
        %4406 = vmatprep.subr.bf16.mxu0 %v2808
        %4407 = vmatpush2.bf16.msra.mxu0 %v2807
        %4408 = vmatprep.subr.bf16.mxu0 %v2800
        %4409 = vmatpush2.bf16.msra.mxu0 %v2799
        %4410 = vmatprep.subr.bf16.mxu0 %v2792
        %4411 = vmatpush2.bf16.msra.mxu0 %v2791
        %4412 = vmatprep.subr.bf16.mxu0 %v2784
        %4413 = vmatpush2.bf16.msra.mxu0 %v2783
        %4414 = vmatprep.subr.bf16.mxu0 %v2776
        %4415 = vmatpush2.bf16.msra.mxu0 %v2775
        %4416 = vmatprep.subr.bf16.mxu0 %v2768
        %4417 = vmatpush2.bf16.msra.mxu0 %v2767
        %4418 = vmatprep.subr.bf16.mxu0 %v2760
        %4419 = vmatpush2.bf16.msra.mxu0 %v2759
        %4420 = vmatprep.subr.bf16.mxu0 %v2752
        %4421 = vmatpush2.bf16.msra.mxu0 %v2751
        %4422 = vmatprep.mubr.bf16.mxu0 %v4348
        %4423 = vmatmul.mubr.bf16.gmra.mxu0 %v4347
        %v4424 = vpop.f32.mrf.mxu0
        %v4425 = vadd.f32 0.0, %v4424
        %v4426 = vpop.f32.mrf.mxu0
        %v4427 = vadd.f32 0.0, %v4426
        %v4428 = vpop.f32.mrf.mxu0
        %v4429 = vpop.f32.mrf.mxu0
        %4430 = vdwg.mxu0
        %4431 = vmatprep.subr.bf16.mxu0 %v2746
        %4432 = vmatpush1.bf16.msra.mxu0 %v2745
        %4433 = vmatprep.subr.bf16.mxu0 %v2738
        %4434 = vmatpush1.bf16.msra.mxu0 %v2737
        %4435 = vmatprep.subr.bf16.mxu0 %v2730
        %4436 = vmatpush1.bf16.msra.mxu0 %v2729
        %4437 = vmatprep.subr.bf16.mxu0 %v2722
        %4438 = vmatpush1.bf16.msra.mxu0 %v2721
        %4439 = vmatprep.subr.bf16.mxu0 %v2714
        %4440 = vmatpush1.bf16.msra.mxu0 %v2713
        %4441 = vmatprep.subr.bf16.mxu0 %v2706
        %4442 = vmatpush1.bf16.msra.mxu0 %v2705
        %4443 = vmatprep.subr.bf16.mxu0 %v2698
        %4444 = vmatpush1.bf16.msra.mxu0 %v2697
        %4445 = vmatprep.subr.bf16.mxu0 %v2690
        %4446 = vmatpush1.bf16.msra.mxu0 %v2689
        %4447 = vmatprep.subr.bf16.mxu0 %v2810
        %4448 = vmatpush2.bf16.msra.mxu0 %v2809
        %4449 = vmatprep.subr.bf16.mxu0 %v2802
        %4450 = vmatpush2.bf16.msra.mxu0 %v2801
        %4451 = vmatprep.subr.bf16.mxu0 %v2794
        %4452 = vmatpush2.bf16.msra.mxu0 %v2793
        %4453 = vmatprep.subr.bf16.mxu0 %v2786
        %4454 = vmatpush2.bf16.msra.mxu0 %v2785
        %4455 = vmatprep.subr.bf16.mxu0 %v2778
        %4456 = vmatpush2.bf16.msra.mxu0 %v2777
        %4457 = vmatprep.subr.bf16.mxu0 %v2770
        %4458 = vmatpush2.bf16.msra.mxu0 %v2769
        %4459 = vmatprep.subr.bf16.mxu0 %v2762
        %4460 = vmatpush2.bf16.msra.mxu0 %v2761
        %4461 = vmatprep.subr.bf16.mxu0 %v2754
        %4462 = vmatpush2.bf16.msra.mxu0 %v2753
        %4463 = vmatprep.mubr.bf16.mxu0 %v4348
        %4464 = vmatmul.mubr.bf16.gmra.mxu0 %v4347
        %v4465 = vpop.f32.mrf.mxu0
        %v4466 = vadd.f32 0.0, %v4465
        %v4467 = vpop.f32.mrf.mxu0
        %v4468 = vadd.f32 0.0, %v4467
        %v4469 = vpop.f32.mrf.mxu0
        %v4470 = vpop.f32.mrf.mxu0
        %4471 = vdwg.mxu0
        %4472 = vmatprep.subr.bf16.mxu0 %v2748
        %4473 = vmatpush1.bf16.msra.mxu0 %v2747
        %4474 = vmatprep.subr.bf16.mxu0 %v2740
        %4475 = vmatpush1.bf16.msra.mxu0 %v2739
        %4476 = vmatprep.subr.bf16.mxu0 %v2732
        %4477 = vmatpush1.bf16.msra.mxu0 %v2731
        %4478 = vmatprep.subr.bf16.mxu0 %v2724
        %4479 = vmatpush1.bf16.msra.mxu0 %v2723
        %4480 = vmatprep.subr.bf16.mxu0 %v2716
        %4481 = vmatpush1.bf16.msra.mxu0 %v2715
        %4482 = vmatprep.subr.bf16.mxu0 %v2708
        %4483 = vmatpush1.bf16.msra.mxu0 %v2707
        %4484 = vmatprep.subr.bf16.mxu0 %v2700
        %4485 = vmatpush1.bf16.msra.mxu0 %v2699
        %4486 = vmatprep.subr.bf16.mxu0 %v2692
        %4487 = vmatpush1.bf16.msra.mxu0 %v2691
        %4488 = vmatprep.subr.bf16.mxu0 %v2812
        %4489 = vmatpush2.bf16.msra.mxu0 %v2811
        %4490 = vmatprep.subr.bf16.mxu0 %v2804
        %4491 = vmatpush2.bf16.msra.mxu0 %v2803
        %4492 = vmatprep.subr.bf16.mxu0 %v2796
        %4493 = vmatpush2.bf16.msra.mxu0 %v2795
        %4494 = vmatprep.subr.bf16.mxu0 %v2788
        %4495 = vmatpush2.bf16.msra.mxu0 %v2787
        %4496 = vmatprep.subr.bf16.mxu0 %v2780
        %4497 = vmatpush2.bf16.msra.mxu0 %v2779
        %4498 = vmatprep.subr.bf16.mxu0 %v2772
        %4499 = vmatpush2.bf16.msra.mxu0 %v2771
        %4500 = vmatprep.subr.bf16.mxu0 %v2764
        %4501 = vmatpush2.bf16.msra.mxu0 %v2763
        %4502 = vmatprep.subr.bf16.mxu0 %v2756
        %4503 = vmatpush2.bf16.msra.mxu0 %v2755
        %4504 = vmatprep.mubr.bf16.mxu0 %v4348
        %4505 = vmatmul.mubr.bf16.gmra.mxu0 %v4347
        %v4506 = vpop.f32.mrf.mxu0
        %v4507 = vadd.f32 0.0, %v4506
        %v4508 = vpop.f32.mrf.mxu0
        %v4509 = vadd.f32 0.0, %v4508
        %v4510 = vpop.f32.mrf.mxu0
        %v4511 = vpop.f32.mrf.mxu0
        %4512 = vdwg.mxu0
        %s4513 = smul.u32 %s4346, 8
        %s4514 = smul.addr %s4513, 8
        %s4515 = scalar_lea.vmem [#allocation2], %s4514
        %v4516 = vld [vmem:[%s4515] sm:$0xff]
        %v4517 = vld [vmem:[%s4515 + $0x8] sm:$0xff]
        %v4518 = vld [vmem:[%s4515 + $0x10] sm:$0xff]
        %v4519 = vld [vmem:[%s4515 + $0x18] sm:$0xff]
        %v4520 = vld [vmem:[%s4515 + $0x20] sm:$0xff]
        %v4521 = vld [vmem:[%s4515 + $0x28] sm:$0xff]
        %v4522 = vld [vmem:[%s4515 + $0x30] sm:$0xff]
        %v4523 = vld [vmem:[%s4515 + $0x38] sm:$0xff]
        %v4524 = vadd.f32 %v4516, %v4384
        %v4525 = vadd.f32 %v4517, %v4386
        %v4526 = vadd.f32 %v4518, %v4425
        %v4527 = vadd.f32 %v4519, %v4427
        %v4528 = vadd.f32 %v4520, %v4466
        %v4529 = vadd.f32 %v4521, %v4468
        %v4530 = vadd.f32 %v4522, %v4507
        %v4531 = vadd.f32 %v4523, %v4509
        %v4532 = vxor.u32 %v4524, 2147483648
        %v4533 = vxor.u32 %v4525, 2147483648
        %v4534 = vmul.f32 %v4532, 1.442695
        %v4535 = vpow.pop %v4534
        %v4536 = vmul.f32 %v4533, 1.442695
        %v4537 = vpow.pop %v4536
        %v4538 = vadd.f32 %v4535, 1.0
        %v4539 = vadd.f32 %v4537, 1.0
        %v4540 = vrcp.pop %v4538
        %v4541 = vmul.f32 1.0, %v4540
        %v4542 = vrcp.pop %v4539
        %v4543 = vmul.f32 1.0, %v4542
        %v4544 = vxor.u32 %v4526, 2147483648
        %v4545 = vxor.u32 %v4527, 2147483648
        %v4546 = vmul.f32 %v4544, 1.442695
        %v4547 = vpow.pop %v4546
        %v4548 = vmul.f32 %v4545, 1.442695
        %v4549 = vpow.pop %v4548
        %v4550 = vadd.f32 %v4547, 1.0
        %v4551 = vadd.f32 %v4549, 1.0
        %v4552 = vrcp.pop %v4550
        %v4553 = vmul.f32 1.0, %v4552
        %v4554 = vrcp.pop %v4551
        %v4555 = vmul.f32 1.0, %v4554
        %v4556 = vtanh.pop %v4528
        %v4557 = vtanh.pop %v4529
        %v4558 = vxor.u32 %v4530, 2147483648
        %v4559 = vxor.u32 %v4531, 2147483648
        %v4560 = vmul.f32 %v4558, 1.442695
        %v4561 = vpow.pop %v4560
        %v4562 = vmul.f32 %v4559, 1.442695
        %v4563 = vpow.pop %v4562
        %v4564 = vadd.f32 %v4561, 1.0
        %v4565 = vadd.f32 %v4563, 1.0
        %v4566 = vrcp.pop %v4564
        %v4567 = vmul.f32 1.0, %v4566
        %v4568 = vrcp.pop %v4565
        %v4569 = vmul.f32 1.0, %v4568
        %v4570 = vmul.f32 %v4553, %v4339
        %v4571 = vmul.f32 %v4555, %v4340
        %v4572 = vmul.f32 %v4541, %v4556
        %v4573 = vmul.f32 %v4543, %v4557
        %v4574 = vadd.f32 %v4570, %v4572
        %v4575 = vadd.f32 %v4571, %v4573
        %v4576 = vtanh.pop %v4574
        %v4577 = vtanh.pop %v4575
        %v4578 = vmul.f32 %v4567, %v4576
        %v4579 = vmul.f32 %v4569, %v4577
        %s4580 = smul.u32 %s21, 4294967289
        %s4581 = sadd.s32 %s4580, 7
        %v4582 = vpack.c.bf16 %v4578, %v4578
        %v4583 = vpack.c.bf16 %v4579, %v4579
        %4584 = vmatprep.subr.bf16.mxu0 %v2742
        %4585 = vmatpush1.bf16.msra.mxu0 %v2741
        %4586 = vmatprep.subr.bf16.mxu0 %v2734
        %4587 = vmatpush1.bf16.msra.mxu0 %v2733
        %4588 = vmatprep.subr.bf16.mxu0 %v2726
        %4589 = vmatpush1.bf16.msra.mxu0 %v2725
        %4590 = vmatprep.subr.bf16.mxu0 %v2718
        %4591 = vmatpush1.bf16.msra.mxu0 %v2717
        %4592 = vmatprep.subr.bf16.mxu0 %v2710
        %4593 = vmatpush1.bf16.msra.mxu0 %v2709
        %4594 = vmatprep.subr.bf16.mxu0 %v2702
        %4595 = vmatpush1.bf16.msra.mxu0 %v2701
        %4596 = vmatprep.subr.bf16.mxu0 %v2694
        %4597 = vmatpush1.bf16.msra.mxu0 %v2693
        %4598 = vmatprep.subr.bf16.mxu0 %v2686
        %4599 = vmatpush1.bf16.msra.mxu0 %v2685
        %4600 = vmatprep.subr.bf16.mxu0 %v2806
        %4601 = vmatpush2.bf16.msra.mxu0 %v2805
        %4602 = vmatprep.subr.bf16.mxu0 %v2798
        %4603 = vmatpush2.bf16.msra.mxu0 %v2797
        %4604 = vmatprep.subr.bf16.mxu0 %v2790
        %4605 = vmatpush2.bf16.msra.mxu0 %v2789
        %4606 = vmatprep.subr.bf16.mxu0 %v2782
        %4607 = vmatpush2.bf16.msra.mxu0 %v2781
        %4608 = vmatprep.subr.bf16.mxu0 %v2774
        %4609 = vmatpush2.bf16.msra.mxu0 %v2773
        %4610 = vmatprep.subr.bf16.mxu0 %v2766
        %4611 = vmatpush2.bf16.msra.mxu0 %v2765
        %4612 = vmatprep.subr.bf16.mxu0 %v2758
        %4613 = vmatpush2.bf16.msra.mxu0 %v2757
        %4614 = vmatprep.subr.bf16.mxu0 %v2750
        %4615 = vmatpush2.bf16.msra.mxu0 %v2749
        %4616 = vmatprep.mubr.bf16.mxu0 %v4583
        %4617 = vmatmul.mubr.bf16.gmra.mxu0 %v4582
        %v4618 = vpop.f32.mrf.mxu0
        %v4619 = vadd.f32 0.0, %v4618
        %v4620 = vpop.f32.mrf.mxu0
        %v4621 = vadd.f32 0.0, %v4620
        %v4622 = vpop.f32.mrf.mxu0
        %v4623 = vpop.f32.mrf.mxu0
        %4624 = vdwg.mxu0
        %4625 = vmatprep.subr.bf16.mxu0 %v2744
        %4626 = vmatpush1.bf16.msra.mxu0 %v2743
        %4627 = vmatprep.subr.bf16.mxu0 %v2736
        %4628 = vmatpush1.bf16.msra.mxu0 %v2735
        %4629 = vmatprep.subr.bf16.mxu0 %v2728
        %4630 = vmatpush1.bf16.msra.mxu0 %v2727
        %4631 = vmatprep.subr.bf16.mxu0 %v2720
        %4632 = vmatpush1.bf16.msra.mxu0 %v2719
        %4633 = vmatprep.subr.bf16.mxu0 %v2712
        %4634 = vmatpush1.bf16.msra.mxu0 %v2711
        %4635 = vmatprep.subr.bf16.mxu0 %v2704
        %4636 = vmatpush1.bf16.msra.mxu0 %v2703
        %4637 = vmatprep.subr.bf16.mxu0 %v2696
        %4638 = vmatpush1.bf16.msra.mxu0 %v2695
        %4639 = vmatprep.subr.bf16.mxu0 %v2688
        %4640 = vmatpush1.bf16.msra.mxu0 %v2687
        %4641 = vmatprep.subr.bf16.mxu0 %v2808
        %4642 = vmatpush2.bf16.msra.mxu0 %v2807
        %4643 = vmatprep.subr.bf16.mxu0 %v2800
        %4644 = vmatpush2.bf16.msra.mxu0 %v2799
        %4645 = vmatprep.subr.bf16.mxu0 %v2792
        %4646 = vmatpush2.bf16.msra.mxu0 %v2791
        %4647 = vmatprep.subr.bf16.mxu0 %v2784
        %4648 = vmatpush2.bf16.msra.mxu0 %v2783
        %4649 = vmatprep.subr.bf16.mxu0 %v2776
        %4650 = vmatpush2.bf16.msra.mxu0 %v2775
        %4651 = vmatprep.subr.bf16.mxu0 %v2768
        %4652 = vmatpush2.bf16.msra.mxu0 %v2767
        %4653 = vmatprep.subr.bf16.mxu0 %v2760
        %4654 = vmatpush2.bf16.msra.mxu0 %v2759
        %4655 = vmatprep.subr.bf16.mxu0 %v2752
        %4656 = vmatpush2.bf16.msra.mxu0 %v2751
        %4657 = vmatprep.mubr.bf16.mxu0 %v4583
        %4658 = vmatmul.mubr.bf16.gmra.mxu0 %v4582
        %v4659 = vpop.f32.mrf.mxu0
        %v4660 = vadd.f32 0.0, %v4659
        %v4661 = vpop.f32.mrf.mxu0
        %v4662 = vadd.f32 0.0, %v4661
        %v4663 = vpop.f32.mrf.mxu0
        %v4664 = vpop.f32.mrf.mxu0
        %4665 = vdwg.mxu0
        %4666 = vmatprep.subr.bf16.mxu0 %v2746
        %4667 = vmatpush1.bf16.msra.mxu0 %v2745
        %4668 = vmatprep.subr.bf16.mxu0 %v2738
        %4669 = vmatpush1.bf16.msra.mxu0 %v2737
        %4670 = vmatprep.subr.bf16.mxu0 %v2730
        %4671 = vmatpush1.bf16.msra.mxu0 %v2729
        %4672 = vmatprep.subr.bf16.mxu0 %v2722
        %4673 = vmatpush1.bf16.msra.mxu0 %v2721
        %4674 = vmatprep.subr.bf16.mxu0 %v2714
        %4675 = vmatpush1.bf16.msra.mxu0 %v2713
        %4676 = vmatprep.subr.bf16.mxu0 %v2706
        %4677 = vmatpush1.bf16.msra.mxu0 %v2705
        %4678 = vmatprep.subr.bf16.mxu0 %v2698
        %4679 = vmatpush1.bf16.msra.mxu0 %v2697
        %4680 = vmatprep.subr.bf16.mxu0 %v2690
        %4681 = vmatpush1.bf16.msra.mxu0 %v2689
        %4682 = vmatprep.subr.bf16.mxu0 %v2810
        %4683 = vmatpush2.bf16.msra.mxu0 %v2809
        %4684 = vmatprep.subr.bf16.mxu0 %v2802
        %4685 = vmatpush2.bf16.msra.mxu0 %v2801
        %4686 = vmatprep.subr.bf16.mxu0 %v2794
        %4687 = vmatpush2.bf16.msra.mxu0 %v2793
        %4688 = vmatprep.subr.bf16.mxu0 %v2786
        %4689 = vmatpush2.bf16.msra.mxu0 %v2785
        %4690 = vmatprep.subr.bf16.mxu0 %v2778
        %4691 = vmatpush2.bf16.msra.mxu0 %v2777
        %4692 = vmatprep.subr.bf16.mxu0 %v2770
        %4693 = vmatpush2.bf16.msra.mxu0 %v2769
        %4694 = vmatprep.subr.bf16.mxu0 %v2762
        %4695 = vmatpush2.bf16.msra.mxu0 %v2761
        %4696 = vmatprep.subr.bf16.mxu0 %v2754
        %4697 = vmatpush2.bf16.msra.mxu0 %v2753
        %4698 = vmatprep.mubr.bf16.mxu0 %v4583
        %4699 = vmatmul.mubr.bf16.gmra.mxu0 %v4582
        %v4700 = vpop.f32.mrf.mxu0
        %v4701 = vadd.f32 0.0, %v4700
        %v4702 = vpop.f32.mrf.mxu0
        %v4703 = vadd.f32 0.0, %v4702
        %v4704 = vpop.f32.mrf.mxu0
        %v4705 = vpop.f32.mrf.mxu0
        %4706 = vdwg.mxu0
        %4707 = vmatprep.subr.bf16.mxu0 %v2748
        %4708 = vmatpush1.bf16.msra.mxu0 %v2747
        %4709 = vmatprep.subr.bf16.mxu0 %v2740
        %4710 = vmatpush1.bf16.msra.mxu0 %v2739
        %4711 = vmatprep.subr.bf16.mxu0 %v2732
        %4712 = vmatpush1.bf16.msra.mxu0 %v2731
        %4713 = vmatprep.subr.bf16.mxu0 %v2724
        %4714 = vmatpush1.bf16.msra.mxu0 %v2723
        %4715 = vmatprep.subr.bf16.mxu0 %v2716
        %4716 = vmatpush1.bf16.msra.mxu0 %v2715
        %4717 = vmatprep.subr.bf16.mxu0 %v2708
        %4718 = vmatpush1.bf16.msra.mxu0 %v2707
        %4719 = vmatprep.subr.bf16.mxu0 %v2700
        %4720 = vmatpush1.bf16.msra.mxu0 %v2699
        %4721 = vmatprep.subr.bf16.mxu0 %v2692
        %4722 = vmatpush1.bf16.msra.mxu0 %v2691
        %4723 = vmatprep.subr.bf16.mxu0 %v2812
        %4724 = vmatpush2.bf16.msra.mxu0 %v2811
        %4725 = vmatprep.subr.bf16.mxu0 %v2804
        %4726 = vmatpush2.bf16.msra.mxu0 %v2803
        %4727 = vmatprep.subr.bf16.mxu0 %v2796
        %4728 = vmatpush2.bf16.msra.mxu0 %v2795
        %4729 = vmatprep.subr.bf16.mxu0 %v2788
        %4730 = vmatpush2.bf16.msra.mxu0 %v2787
        %4731 = vmatprep.subr.bf16.mxu0 %v2780
        %4732 = vmatpush2.bf16.msra.mxu0 %v2779
        %4733 = vmatprep.subr.bf16.mxu0 %v2772
        %4734 = vmatpush2.bf16.msra.mxu0 %v2771
        %4735 = vmatprep.subr.bf16.mxu0 %v2764
        %4736 = vmatpush2.bf16.msra.mxu0 %v2763
        %4737 = vmatprep.subr.bf16.mxu0 %v2756
        %4738 = vmatpush2.bf16.msra.mxu0 %v2755
        %4739 = vmatprep.mubr.bf16.mxu0 %v4583
        %4740 = vmatmul.mubr.bf16.gmra.mxu0 %v4582
        %v4741 = vpop.f32.mrf.mxu0
        %v4742 = vadd.f32 0.0, %v4741
        %v4743 = vpop.f32.mrf.mxu0
        %v4744 = vadd.f32 0.0, %v4743
        %v4745 = vpop.f32.mrf.mxu0
        %v4746 = vpop.f32.mrf.mxu0
        %4747 = vdwg.mxu0
        %s4748 = smul.u32 %s4581, 8
        %s4749 = smul.addr %s4748, 8
        %s4750 = scalar_lea.vmem [#allocation2], %s4749
        %v4751 = vld [vmem:[%s4750] sm:$0xff]
        %v4752 = vld [vmem:[%s4750 + $0x8] sm:$0xff]
        %v4753 = vld [vmem:[%s4750 + $0x10] sm:$0xff]
        %v4754 = vld [vmem:[%s4750 + $0x18] sm:$0xff]
        %v4755 = vld [vmem:[%s4750 + $0x20] sm:$0xff]
        %v4756 = vld [vmem:[%s4750 + $0x28] sm:$0xff]
        %v4757 = vld [vmem:[%s4750 + $0x30] sm:$0xff]
        %v4758 = vld [vmem:[%s4750 + $0x38] sm:$0xff]
        %v4759 = vadd.f32 %v4751, %v4619
        %v4760 = vadd.f32 %v4752, %v4621
        %v4761 = vadd.f32 %v4753, %v4660
        %v4762 = vadd.f32 %v4754, %v4662
        %v4763 = vadd.f32 %v4755, %v4701
        %v4764 = vadd.f32 %v4756, %v4703
        %v4765 = vadd.f32 %v4757, %v4742
        %v4766 = vadd.f32 %v4758, %v4744
        %v4767 = vxor.u32 %v4759, 2147483648
        %v4768 = vxor.u32 %v4760, 2147483648
        %v4769 = vmul.f32 %v4767, 1.442695
        %v4770 = vpow.pop %v4769
        %v4771 = vmul.f32 %v4768, 1.442695
        %v4772 = vpow.pop %v4771
        %v4773 = vadd.f32 %v4770, 1.0
        %v4774 = vadd.f32 %v4772, 1.0
        %v4775 = vrcp.pop %v4773
        %v4776 = vmul.f32 1.0, %v4775
        %v4777 = vrcp.pop %v4774
        %v4778 = vmul.f32 1.0, %v4777
        %v4779 = vxor.u32 %v4761, 2147483648
        %v4780 = vxor.u32 %v4762, 2147483648
        %v4781 = vmul.f32 %v4779, 1.442695
        %v4782 = vpow.pop %v4781
        %v4783 = vmul.f32 %v4780, 1.442695
        %v4784 = vpow.pop %v4783
        %v4785 = vadd.f32 %v4782, 1.0
        %v4786 = vadd.f32 %v4784, 1.0
        %v4787 = vrcp.pop %v4785
        %v4788 = vmul.f32 1.0, %v4787
        %v4789 = vrcp.pop %v4786
        %v4790 = vmul.f32 1.0, %v4789
        %v4791 = vtanh.pop %v4763
        %v4792 = vtanh.pop %v4764
        %v4793 = vxor.u32 %v4765, 2147483648
        %v4794 = vxor.u32 %v4766, 2147483648
        %v4795 = vmul.f32 %v4793, 1.442695
        %v4796 = vpow.pop %v4795
        %v4797 = vmul.f32 %v4794, 1.442695
        %v4798 = vpow.pop %v4797
        %v4799 = vadd.f32 %v4796, 1.0
        %v4800 = vadd.f32 %v4798, 1.0
        %v4801 = vrcp.pop %v4799
        %v4802 = vmul.f32 1.0, %v4801
        %v4803 = vrcp.pop %v4800
        %v4804 = vmul.f32 1.0, %v4803
        %v4805 = vmul.f32 %v4788, %v4574
        %v4806 = vmul.f32 %v4790, %v4575
        %v4807 = vmul.f32 %v4776, %v4791
        %v4808 = vmul.f32 %v4778, %v4792
        %v4809 = vadd.f32 %v4805, %v4807
        %v4810 = vadd.f32 %v4806, %v4808
        %v4811 = vtanh.pop %v4809
        %v4812 = vtanh.pop %v4810
        %v4813 = vmul.f32 %v4802, %v4811
        %v4814 = vmul.f32 %v4804, %v4812
        %4815 = vst [vmem:[%s292] sm:$0xff] %v4813
        %4816 = vst [vmem:[%s292 + $0x8] sm:$0xff] %v4814
        %4817 = vst [vmem:[%s292 + $0x10] sm:$0xff] %v4809
        %4818 = vst [vmem:[%s292 + $0x18] sm:$0xff] %v4810
        %p4819 = scmp.lt.s32.totalorder %s21, 1
        %s4820 = scalar_select %p4819, %s21, 1
        %s4821 = smul.addr %s4820, 4
        %s4822 = smul.addr %s4821, 8
        %s4823 = scalar_lea.vmem %s4, %s4822
        // Predicated region
        $region49: #{lstm_autoencoder_forward.2} parent=35 // pred_check
          %p4824 = pneg %p138
        $region50: #{lstm_autoencoder_forward.2} parent=35 // pred_check_branch
          %4826 = sbr.rel (%p4824) target = $region52
        $region51: #{lstm_autoencoder_forward.2} parent=35 // pred_region
          _
        $region52: #{lstm_autoencoder_forward.2} parent=35 // pred_fallthru
          _
      $region36: #{lstm_autoencoder_forward.2} parent=5 // pred_fallthru
        _
      %p4827 = scmp.le.s32.totalorder 2, %s16
      // Predicated region
      $region53: #{lstm_autoencoder_forward.2} parent=5 // pred_check
        %p4828 = pneg %p4827
      $region54: #{lstm_autoencoder_forward.2} parent=5 // pred_check_branch
        %4830 = sbr.rel (%p4828) target = $region56
      $region55: #{lstm_autoencoder_forward.2} parent=5 // pred_region
        %s4831 = ssub.s32 %s16, 2
        // Predicated region
        $region57: #{lstm_autoencoder_forward.2} parent=55 // pred_check
          %p4832 = pneg %p144
        $region58: #{lstm_autoencoder_forward.2} parent=55 // pred_check_branch
          %4834 = sbr.rel (%p4832) target = $region60
        $region59: #{lstm_autoencoder_forward.2} parent=55 // pred_region
          %p4835 = scmp.lt.s32.totalorder %s22, 1
          %s4836 = scalar_select %p4835, %s22, 1
          %s4837 = smul.addr %s4836, 4
          %s4838 = smul.addr %s4837, 8
          %s4839 = scalar_lea.vmem %s4, %s4838
        $region60: #{lstm_autoencoder_forward.2} parent=55 // pred_fallthru
          _
      $region56: #{lstm_autoencoder_forward.2} parent=5 // pred_fallthru
        _
    $region6: #{lstm_autoencoder_forward.2} parent=1 // loop_footer
      %s20 = sadd.s32 1, %s16
    $region7: #{lstm_autoencoder_forward.2} parent=1 // loop_footer_branch
      %15 = sbr.rel target = $region3
    $region8: #{lstm_autoencoder_forward.2} parent=1 // loop_exit
      _
    %4840 = vsyncpa [#allocation4], 1
    %s4841 = scalar_lea.sflag [#allocation4], 1
    %4842 = vsyncpa %s4841, 1
    %4843 = vsyncpa [#allocation6], 1
    %s4844 = scalar_lea.sflag [#allocation6], 1
    %4845 = vsyncpa %s4844, 1

</llo_original>
